<compile_context>
chip_gen: v5e
topology: v5e:2x2
jax: 0.10.0
libtpu: 0.0.40
codegen_flags: <defaults>
</compile_context>

<pallas_src>
import functools
import math

import jax
import jax.numpy as jnp
from jax.experimental import pallas as pl
from jax.experimental.pallas import tpu as pltpu

# ----------------------------- configuration --------------------------------
LAYER_NAMES = ("linear1", "fc")    # hooked base-model layers (last one is the fc)
SEQ_LEN = len(LAYER_NAMES)         # meta-transformer sequence length L == 2
BASE_HIDDEN = 64                   # base-model hidden width (linear1 out_features)
NUM_CLASSES = 10                   # base-model fc out_features -> num_classes
NUM_HEADS = 8
PROJECTION_DIM = 128 // NUM_HEADS * NUM_HEADS   # == 128 (module rounds to heads)
HEAD_DIM = PROJECTION_DIM // NUM_HEADS          # == 16
NUM_TRANSFORMER_LAYERS = 2         # small stand-in for the torch default 6
DIM_FEEDFORWARD = 256              # small stand-in for the torch default 2048
LN_EPS = 1e-5                      # torch.nn.LayerNorm default
LANE = 128
PAD_CLASSES = LANE                 # class dim zero-padded to a full lane width
MATMUL_DTYPE = jnp.bfloat16        # MXU operand dtype (f32 accumulation)


# ------------------------- in-kernel helper math -----------------------------
def _mm(a, w):
    """MXU matmul: bf16 operands, f32 accumulation."""
    return jnp.dot(a.astype(MATMUL_DTYPE), w.astype(MATMUL_DTYPE),
                   preferred_element_type=jnp.float32)


def _layernorm(x, g, b):
    mu = jnp.mean(x, axis=-1, keepdims=True)
    d = x - mu
    var = jnp.mean(d * d, axis=-1, keepdims=True)       # biased, like torch LN
    return d * jax.lax.rsqrt(var + LN_EPS) * g + b


def _gelu_tanh(x):
    # TODO(synk): torch's default GELU is exact erf; the tanh approximation is used
    # in-kernel (EUP tanh, Mosaic-safe) since an erf lowering is not guaranteed.
    c = math.sqrt(2.0 / math.pi)
    return 0.5 * x * (1.0 + jnp.tanh(c * (x + 0.044715 * (x * x * x))))


# ------------------------------ fused kernel ---------------------------------
def _fused_forward_kernel(
    x_ref,
    bl1_w_ref, bl1_b_ref, bfc_w_ref, bfc_b_ref,
    emb1_w_ref, emb1_b_ref, embfc_w_ref, embfc_b_ref,
    in_w_ref, in_b_ref, out_w_ref, out_b_ref,
    ff1_w_ref, ff1_b_ref, ff2_w_ref, ff2_b_ref,
    ln1_g_ref, ln1_b_ref, ln2_g_ref, ln2_b_ref,
    head_w_ref, head_b_ref,
    o_ref,
    *, tb):
    P = PROJECTION_DIM
    LB = SEQ_LEN * tb
    scale = 1.0 / math.sqrt(HEAD_DIM)

    # ---- frozen base model; forward hooks capture linear1 / fc outputs ----
    x = x_ref[...]                                                    # (tb, C*H*W)
    a_l1 = _mm(x, bl1_w_ref[...]) + bl1_b_ref[...]                    # hook "linear1" (tb, 64)
    a_fc = _mm(jnp.maximum(a_l1, 0.0), bfc_w_ref[...]) + bfc_b_ref[...]  # hook "fc" (tb, 128pad)

    # ---- activation embeddings -> lane-dense (L*tb, P) sequence slab ----
    # "fc" token goes in rows [0:tb] (permutation-equivariant encoder, see header).
    p_fc = _mm(a_fc, embfc_w_ref[...]) + embfc_b_ref[...]             # (tb, P)
    p_l1 = _mm(a_l1, emb1_w_ref[...]) + emb1_b_ref[...]               # (tb, P)
    seq = jnp.concatenate([p_fc, p_l1], axis=0)                       # (LB, P)

    # attention validity: rows r, c may attend iff they belong to the same batch
    rows = jax.lax.broadcasted_iota(jnp.int32, (LB, LB), 0)
    cols = jax.lax.broadcasted_iota(jnp.int32, (LB, LB), 1)
    same_batch = (rows % tb) == (cols % tb)

    for l in range(NUM_TRANSFORMER_LAYERS):
        in_w = in_w_ref[l]                                            # (P, 3P)
        out_w = out_w_ref[l]                                          # (P, P)

        # fused q/k/v projection; q,k,v are 128-lane-aligned column slices
        qkv = _mm(seq, in_w) + in_b_ref[l]                            # (LB, 3P)
        q = qkv[:, 0:P]
        k = qkv[:, P:2 * P]
        v = qkv[:, 2 * P:3 * P]

        # per-head attention with the out-projection folded into the head loop
        attn = jnp.zeros((LB, P), jnp.float32)
        for h in range(NUM_HEADS):
            c0 = h * HEAD_DIM
            qh = q[:, c0:c0 + HEAD_DIM]
            kh = k[:, c0:c0 + HEAD_DIM]
            vh = v[:, c0:c0 + HEAD_DIM]
            s = jax.lax.dot_general(
                qh.astype(MATMUL_DTYPE), kh.astype(MATMUL_DTYPE),
                (((1,), (1,)), ((), ())),
                preferred_element_type=jnp.float32) * scale           # (LB, LB)
            s = jnp.where(same_batch, s, -1e30)
            s = s - jnp.max(s, axis=-1, keepdims=True)
            e = jnp.exp(s)
            prob = e / jnp.sum(e, axis=-1, keepdims=True)             # f32 softmax
            oh = _mm(prob, vh)                                        # (LB, HEAD_DIM)
            attn = attn + _mm(oh, out_w[c0:c0 + HEAD_DIM, :])         # += o_h @ W_out[h]
        attn = attn + out_b_ref[l]

        # residual + LN1, feed-forward with fused GELU, residual + LN2 (post-norm)
        seq = _layernorm(seq + attn, ln1_g_ref[l], ln1_b_ref[l])
        ff = _gelu_tanh(_mm(seq, ff1_w_ref[l]) + ff1_b_ref[l])
        ff = _mm(ff, ff2_w_ref[l]) + ff2_b_ref[l]
        seq = _layernorm(seq + ff, ln2_g_ref[l], ln2_b_ref[l])

    # classifier head only on the "fc"-token rows; lane-dense padded output store
    last = seq[0:tb, :]                                               # (tb, P)
    o_ref[...] = (_mm(last, head_w_ref[...]) + head_b_ref[...]).astype(o_ref.dtype)


# ------------------------------ forward wrapper -------------------------------
def meta_transformer_forward(params, x):
    B = x.shape[0]
    xf = x.reshape(B, -1).astype(jnp.float32)       # torch.flatten(..., start_dim=1)
    in_f = xf.shape[1]

    # Batch-row tiling: trivially one step at B=2; the "parallel" axis lets larger
    # batches shard across v7x's two TensorCores and keeps per-step blocks in VMEM.
    tb = B if B <= 128 else 128
    assert B % tb == 0, "batch must be a multiple of the row tile"
    grid = (B // tb,)

    weights = (
        params["bl1_w"], params["bl1_b"], params["bfc_w"], params["bfc_b"],
        params["emb1_w"], params["emb1_b"], params["embfc_w"], params["embfc_b"],
        params["in_w"], params["in_b"], params["out_w"], params["out_b"],
        params["ff1_w"], params["ff1_b"], params["ff2_w"], params["ff2_b"],
        params["ln1_g"], params["ln1_b"], params["ln2_g"], params["ln2_b"],
        params["head_w"], params["head_b"],
    )

    def rep_spec(a):  # whole-array VMEM-resident block, same for every grid step
        zeros = (0,) * a.ndim
        return pl.BlockSpec(a.shape, lambda i, z=zeros: z)

    out_padded = pl.pallas_call(
        functools.partial(_fused_forward_kernel, tb=tb),
        out_shape=jax.ShapeDtypeStruct((B, PAD_CLASSES), jnp.float32),
        grid=grid,
        in_specs=[pl.BlockSpec((tb, in_f), lambda i: (i, 0))]
                 + [rep_spec(a) for a in weights],
        out_specs=pl.BlockSpec((tb, PAD_CLASSES), lambda i: (i, 0)),
        compiler_params=pltpu.CompilerParams(dimension_semantics=("parallel",)),
    )(xf, *weights)

    return out_padded[:, :NUM_CLASSES]              # drop lane padding


# ------------------------------ parameter init --------------------------------
def _uniform_linear(key, fan_in, fan_out):
    kw, kb = jax.random.split(key)
    bound = 1.0 / math.sqrt(fan_in)
    w = jax.random.uniform(kw, (fan_in, fan_out), jnp.float32, -bound, bound)
    b = jax.random.uniform(kb, (fan_out,), jnp.float32, -bound, bound)
    return w, b


def _pad_cols(a, n):
    return jnp.pad(a, ((0, 0), (0, n - a.shape[1])))


def _pad_rows(a, n):
    return jnp.pad(a, ((0, n - a.shape[0]), (0, 0)))


def init_params(key, in_features):
    keys = iter(jax.random.split(key, 64))
    wdt = MATMUL_DTYPE

    def lin(fi, fo):
        return _uniform_linear(next(keys), fi, fo)

    p = {}
    # frozen base model: linear1 -> relu -> fc
    w, b = lin(in_features, BASE_HIDDEN)
    p["bl1_w"], p["bl1_b"] = w.astype(wdt), b.reshape(1, -1)
    w, b = lin(BASE_HIDDEN, NUM_CLASSES)                 # class dim zero-padded to 128
    p["bfc_w"] = _pad_cols(w, PAD_CLASSES).astype(wdt)
    p["bfc_b"] = _pad_cols(b.reshape(1, -1), PAD_CLASSES)

    # activation embeddings
    w, b = lin(BASE_HIDDEN, PROJECTION_DIM)              # embeddings["linear1"]
    p["emb1_w"], p["emb1_b"] = w.astype(wdt), b.reshape(1, -1)
    w, b = lin(NUM_CLASSES, PROJECTION_DIM)              # embeddings["fc"]; rows padded
    p["embfc_w"] = _pad_rows(w, PAD_CLASSES).astype(wdt)
    p["embfc_b"] = b.reshape(1, -1)

    # transformer encoder layers (stacked along a leading layer axis)
    in_w, in_b, out_w, out_b = [], [], [], []
    ff1_w, ff1_b, ff2_w, ff2_b = [], [], [], []
    ln1_g, ln1_b, ln2_g, ln2_b = [], [], [], []
    for _ in range(NUM_TRANSFORMER_LAYERS):
        w, b = lin(PROJECTION_DIM, 3 * PROJECTION_DIM)   # packed [q | k | v] columns
        in_w.append(w); in_b.append(b.reshape(1, -1))
        w, b = lin(PROJECTION_DIM, PROJECTION_DIM)
        out_w.append(w); out_b.append(b.reshape(1, -1))
        w, b = lin(PROJECTION_DIM, DIM_FEEDFORWARD)
        ff1_w.append(w); ff1_b.append(b.reshape(1, -1))
        w, b = lin(DIM_FEEDFORWARD, PROJECTION_DIM)
        ff2_w.append(w); ff2_b.append(b.reshape(1, -1))
        ln1_g.append(jnp.ones((1, PROJECTION_DIM), jnp.float32))
        ln1_b.append(jnp.zeros((1, PROJECTION_DIM), jnp.float32))
        ln2_g.append(jnp.ones((1, PROJECTION_DIM), jnp.float32))
        ln2_b.append(jnp.zeros((1, PROJECTION_DIM), jnp.float32))
    p["in_w"] = jnp.stack(in_w).astype(wdt);  p["in_b"] = jnp.stack(in_b)
    p["out_w"] = jnp.stack(out_w).astype(wdt); p["out_b"] = jnp.stack(out_b)
    p["ff1_w"] = jnp.stack(ff1_w).astype(wdt); p["ff1_b"] = jnp.stack(ff1_b)
    p["ff2_w"] = jnp.stack(ff2_w).astype(wdt); p["ff2_b"] = jnp.stack(ff2_b)
    p["ln1_g"] = jnp.stack(ln1_g); p["ln1_b"] = jnp.stack(ln1_b)
    p["ln2_g"] = jnp.stack(ln2_g); p["ln2_b"] = jnp.stack(ln2_b)

    # classifier head (class dim zero-padded to 128 for lane-dense output stores)
    w, b = lin(PROJECTION_DIM, NUM_CLASSES)
    p["head_w"] = _pad_cols(w, PAD_CLASSES).astype(wdt)
    p["head_b"] = _pad_cols(b.reshape(1, -1), PAD_CLASSES)
    return p


# ----------------------------------- main -------------------------------------
if __name__ == "__main__":
    key = jax.random.PRNGKey(0)
    k_x, k_p = jax.random.split(key)

    B, C, H, W = 2, 4, 16, 16
    x = jax.random.normal(k_x, (B, C, H, W), jnp.float32)   # NCHW, like PyTorch
    params = init_params(k_p, in_features=C * H * W)

    fwd = jax.jit(meta_transformer_forward)
    out = jax.block_until_ready(fwd(params, x))

    assert out.shape == (B, NUM_CLASSES), out.shape
    assert out.dtype == jnp.float32
    assert bool(jnp.all(jnp.isfinite(out)))
    print("KERNEL_OK")
</pallas_src>

<mosaic_0001>
module attributes {stable_mosaic.version = 11 : i64} {
  func.func @_fused_forward_kernel(%arg0: i32, %arg1: memref<2x1024xf32, #tpu.memory_space<vmem>>, %arg2: memref<1024x64xbf16, #tpu.memory_space<vmem>>, %arg3: memref<1x64xf32, #tpu.memory_space<vmem>>, %arg4: memref<64x128xbf16, #tpu.memory_space<vmem>>, %arg5: memref<1x128xf32, #tpu.memory_space<vmem>>, %arg6: memref<64x128xbf16, #tpu.memory_space<vmem>>, %arg7: memref<1x128xf32, #tpu.memory_space<vmem>>, %arg8: memref<128x128xbf16, #tpu.memory_space<vmem>>, %arg9: memref<1x128xf32, #tpu.memory_space<vmem>>, %arg10: memref<2x128x384xbf16, #tpu.memory_space<vmem>>, %arg11: memref<2x1x384xf32, #tpu.memory_space<vmem>>, %arg12: memref<2x128x128xbf16, #tpu.memory_space<vmem>>, %arg13: memref<2x1x128xf32, #tpu.memory_space<vmem>>, %arg14: memref<2x128x256xbf16, #tpu.memory_space<vmem>>, %arg15: memref<2x1x256xf32, #tpu.memory_space<vmem>>, %arg16: memref<2x256x128xbf16, #tpu.memory_space<vmem>>, %arg17: memref<2x1x128xf32, #tpu.memory_space<vmem>>, %arg18: memref<2x1x128xf32, #tpu.memory_space<vmem>>, %arg19: memref<2x1x128xf32, #tpu.memory_space<vmem>>, %arg20: memref<2x1x128xf32, #tpu.memory_space<vmem>>, %arg21: memref<2x1x128xf32, #tpu.memory_space<vmem>>, %arg22: memref<128x128xbf16, #tpu.memory_space<vmem>>, %arg23: memref<1x128xf32, #tpu.memory_space<vmem>>, %arg24: memref<2x128xf32, #tpu.memory_space<vmem>>) attributes {dimension_semantics = [#tpu.dimension_semantics<parallel>], iteration_bounds = array<i64: 1>, scalar_prefetch = 0 : i64, scratch_operands = 0 : i64, tpu.core_type = #tpu.core_type<tc>, window_params = [{transform_indices = @transform_0, window_bounds = array<i64: 2, 1024>}, {pipeline_mode = #tpu.pipeline_mode<synchronous>, transform_indices = @transform_1, window_bounds = array<i64: 1024, 64>}, {pipeline_mode = #tpu.pipeline_mode<synchronous>, transform_indices = @transform_2, window_bounds = array<i64: 1, 64>}, {pipeline_mode = #tpu.pipeline_mode<synchronous>, transform_indices = @transform_3, window_bounds = array<i64: 64, 128>}, {pipeline_mode = #tpu.pipeline_mode<synchronous>, transform_indices = @transform_4, window_bounds = array<i64: 1, 128>}, {pipeline_mode = #tpu.pipeline_mode<synchronous>, transform_indices = @transform_5, window_bounds = array<i64: 64, 128>}, {pipeline_mode = #tpu.pipeline_mode<synchronous>, transform_indices = @transform_6, window_bounds = array<i64: 1, 128>}, {pipeline_mode = #tpu.pipeline_mode<synchronous>, transform_indices = @transform_7, window_bounds = array<i64: 128, 128>}, {pipeline_mode = #tpu.pipeline_mode<synchronous>, transform_indices = @transform_8, window_bounds = array<i64: 1, 128>}, {pipeline_mode = #tpu.pipeline_mode<synchronous>, transform_indices = @transform_9, window_bounds = array<i64: 2, 128, 384>}, {pipeline_mode = #tpu.pipeline_mode<synchronous>, transform_indices = @transform_10, window_bounds = array<i64: 2, 1, 384>}, {pipeline_mode = #tpu.pipeline_mode<synchronous>, transform_indices = @transform_11, window_bounds = array<i64: 2, 128, 128>}, {pipeline_mode = #tpu.pipeline_mode<synchronous>, transform_indices = @transform_12, window_bounds = array<i64: 2, 1, 128>}, {pipeline_mode = #tpu.pipeline_mode<synchronous>, transform_indices = @transform_13, window_bounds = array<i64: 2, 128, 256>}, {pipeline_mode = #tpu.pipeline_mode<synchronous>, transform_indices = @transform_14, window_bounds = array<i64: 2, 1, 256>}, {pipeline_mode = #tpu.pipeline_mode<synchronous>, transform_indices = @transform_15, window_bounds = array<i64: 2, 256, 128>}, {pipeline_mode = #tpu.pipeline_mode<synchronous>, transform_indices = @transform_16, window_bounds = array<i64: 2, 1, 128>}, {pipeline_mode = #tpu.pipeline_mode<synchronous>, transform_indices = @transform_17, window_bounds = array<i64: 2, 1, 128>}, {pipeline_mode = #tpu.pipeline_mode<synchronous>, transform_indices = @transform_18, window_bounds = array<i64: 2, 1, 128>}, {pipeline_mode = #tpu.pipeline_mode<synchronous>, transform_indices = @transform_19, window_bounds = array<i64: 2, 1, 128>}, {pipeline_mode = #tpu.pipeline_mode<synchronous>, transform_indices = @transform_20, window_bounds = array<i64: 2, 1, 128>}, {pipeline_mode = #tpu.pipeline_mode<synchronous>, transform_indices = @transform_21, window_bounds = array<i64: 128, 128>}, {pipeline_mode = #tpu.pipeline_mode<synchronous>, transform_indices = @transform_22, window_bounds = array<i64: 1, 128>}, {transform_indices = @transform_23, window_bounds = array<i64: 2, 128>}]} {
    %c0 = arith.constant 0 : index
    %c0_0 = arith.constant 0 : index
    %0 = vector.load %arg1[%c0, %c0_0] : memref<2x1024xf32, #tpu.memory_space<vmem>>, vector<2x1024xf32>
    %c0_1 = arith.constant 0 : index
    %c0_2 = arith.constant 0 : index
    %1 = vector.load %arg2[%c0_1, %c0_2] : memref<1024x64xbf16, #tpu.memory_space<vmem>>, vector<1024x64xbf16>
    %2 = arith.truncf %0 : vector<2x1024xf32> to vector<2x1024xbf16>
    %cst = arith.constant dense<0.000000e+00> : vector<2x64xf32>
    %3 = tpu.matmul %2, %1, %cst {dimension_numbers = #tpu.dot_dimension_numbers<[1], [0], [0], [1], [0, 0, 1, 1], [], []>} : vector<2x1024xbf16>, vector<1024x64xbf16>, vector<2x64xf32> -> vector<2x64xf32>
    %c0_3 = arith.constant 0 : index
    %c0_4 = arith.constant 0 : index
    %4 = vector.load %arg3[%c0_3, %c0_4] : memref<1x64xf32, #tpu.memory_space<vmem>>, vector<1x64xf32>
    %5 = vector.broadcast %4 : vector<1x64xf32> to vector<2x64xf32>
    %6 = arith.addf %3, %5 : vector<2x64xf32>
    %cst_5 = arith.constant 0.000000e+00 : f32
    %7 = vector.broadcast %cst_5 : f32 to vector<2x64xf32>
    %8 = arith.maximumf %6, %7 : vector<2x64xf32>
    %c0_6 = arith.constant 0 : index
    %c0_7 = arith.constant 0 : index
    %9 = vector.load %arg4[%c0_6, %c0_7] : memref<64x128xbf16, #tpu.memory_space<vmem>>, vector<64x128xbf16>
    %10 = arith.truncf %8 : vector<2x64xf32> to vector<2x64xbf16>
    %cst_8 = arith.constant dense<0.000000e+00> : vector<2x128xf32>
    %11 = tpu.matmul %10, %9, %cst_8 {dimension_numbers = #tpu.dot_dimension_numbers<[1], [0], [0], [1], [0, 0, 1, 1], [], []>} : vector<2x64xbf16>, vector<64x128xbf16>, vector<2x128xf32> -> vector<2x128xf32>
    %c0_9 = arith.constant 0 : index
    %c0_10 = arith.constant 0 : index
    %12 = vector.load %arg5[%c0_9, %c0_10] : memref<1x128xf32, #tpu.memory_space<vmem>>, vector<1x128xf32>
    %13 = vector.broadcast %12 : vector<1x128xf32> to vector<2x128xf32>
    %14 = arith.addf %11, %13 : vector<2x128xf32>
    %c0_11 = arith.constant 0 : index
    %c0_12 = arith.constant 0 : index
    %15 = vector.load %arg8[%c0_11, %c0_12] : memref<128x128xbf16, #tpu.memory_space<vmem>>, vector<128x128xbf16>
    %16 = arith.truncf %14 : vector<2x128xf32> to vector<2x128xbf16>
    %cst_13 = arith.constant dense<0.000000e+00> : vector<2x128xf32>
    %17 = tpu.matmul %16, %15, %cst_13 {dimension_numbers = #tpu.dot_dimension_numbers<[1], [0], [0], [1], [0, 0, 1, 1], [], []>} : vector<2x128xbf16>, vector<128x128xbf16>, vector<2x128xf32> -> vector<2x128xf32>
    %c0_14 = arith.constant 0 : index
    %c0_15 = arith.constant 0 : index
    %18 = vector.load %arg9[%c0_14, %c0_15] : memref<1x128xf32, #tpu.memory_space<vmem>>, vector<1x128xf32>
    %19 = vector.broadcast %18 : vector<1x128xf32> to vector<2x128xf32>
    %20 = arith.addf %17, %19 : vector<2x128xf32>
    %c0_16 = arith.constant 0 : index
    %c0_17 = arith.constant 0 : index
    %21 = vector.load %arg6[%c0_16, %c0_17] : memref<64x128xbf16, #tpu.memory_space<vmem>>, vector<64x128xbf16>
    %22 = arith.truncf %6 : vector<2x64xf32> to vector<2x64xbf16>
    %cst_18 = arith.constant dense<0.000000e+00> : vector<2x128xf32>
    %23 = tpu.matmul %22, %21, %cst_18 {dimension_numbers = #tpu.dot_dimension_numbers<[1], [0], [0], [1], [0, 0, 1, 1], [], []>} : vector<2x64xbf16>, vector<64x128xbf16>, vector<2x128xf32> -> vector<2x128xf32>
    %c0_19 = arith.constant 0 : index
    %c0_20 = arith.constant 0 : index
    %24 = vector.load %arg7[%c0_19, %c0_20] : memref<1x128xf32, #tpu.memory_space<vmem>>, vector<1x128xf32>
    %25 = vector.broadcast %24 : vector<1x128xf32> to vector<2x128xf32>
    %26 = arith.addf %23, %25 : vector<2x128xf32>
    %27 = tpu.concatenate %20, %26 in 0 : vector<2x128xf32>, vector<2x128xf32> -> vector<4x128xf32>
    %28 = tpu.iota {dimensions = array<i32: 0>} : vector<4x4xi32>
    %29 = tpu.iota {dimensions = array<i32: 1>} : vector<4x4xi32>
    %c2_i32 = arith.constant 2 : i32
    %c0_i32 = arith.constant 0 : i32
    %30 = arith.cmpi eq, %c2_i32, %c0_i32 : i32
    %c1_i32 = arith.constant 1 : i32
    %31 = arith.select %30, %c1_i32, %c2_i32 : i32
    %32 = vector.broadcast %31 : i32 to vector<4x4xi32>
    %33 = arith.remsi %28, %32 : vector<4x4xi32>
    %c0_i32_21 = arith.constant 0 : i32
    %34 = vector.broadcast %c0_i32_21 : i32 to vector<4x4xi32>
    %35 = arith.cmpi ne, %33, %34 : vector<4x4xi32>
    %c0_i32_22 = arith.constant 0 : i32
    %36 = vector.broadcast %c0_i32_22 : i32 to vector<4x4xi32>
    %37 = arith.cmpi slt, %33, %36 : vector<4x4xi32>
    %c0_i32_23 = arith.constant 0 : i32
    %38 = arith.cmpi slt, %31, %c0_i32_23 : i32
    %39 = vector.broadcast %38 : i1 to vector<4x4xi1>
    %40 = vector.broadcast %39 : vector<4x4xi1> to vector<4x4xi1>
    %41 = arith.xori %37, %40 : vector<4x4xi1>
    %42 = arith.andi %41, %35 : vector<4x4xi1>
    %43 = vector.broadcast %31 : i32 to vector<4x4xi32>
    %44 = arith.addi %33, %43 : vector<4x4xi32>
    %45 = arith.select %42, %44, %33 : vector<4x4xi1>, vector<4x4xi32>
    %c2_i32_24 = arith.constant 2 : i32
    %c0_i32_25 = arith.constant 0 : i32
    %46 = arith.cmpi eq, %c2_i32_24, %c0_i32_25 : i32
    %c1_i32_26 = arith.constant 1 : i32
    %47 = arith.select %46, %c1_i32_26, %c2_i32_24 : i32
    %48 = vector.broadcast %47 : i32 to vector<4x4xi32>
    %49 = arith.remsi %29, %48 : vector<4x4xi32>
    %c0_i32_27 = arith.constant 0 : i32
    %50 = vector.broadcast %c0_i32_27 : i32 to vector<4x4xi32>
    %51 = arith.cmpi ne, %49, %50 : vector<4x4xi32>
    %c0_i32_28 = arith.constant 0 : i32
    %52 = vector.broadcast %c0_i32_28 : i32 to vector<4x4xi32>
    %53 = arith.cmpi slt, %49, %52 : vector<4x4xi32>
    %c0_i32_29 = arith.constant 0 : i32
    %54 = arith.cmpi slt, %47, %c0_i32_29 : i32
    %55 = vector.broadcast %54 : i1 to vector<4x4xi1>
    %56 = vector.broadcast %55 : vector<4x4xi1> to vector<4x4xi1>
    %57 = arith.xori %53, %56 : vector<4x4xi1>
    %58 = arith.andi %57, %51 : vector<4x4xi1>
    %59 = vector.broadcast %47 : i32 to vector<4x4xi32>
    %60 = arith.addi %49, %59 : vector<4x4xi32>
    %61 = arith.select %58, %60, %49 : vector<4x4xi1>, vector<4x4xi32>
    %62 = arith.cmpi eq, %45, %61 : vector<4x4xi32>
    %c0_30 = arith.constant 0 : index
    %c0_31 = arith.constant 0 : index
    %c0_32 = arith.constant 0 : index
    %63 = vector.load %arg10[%c0_30, %c0_31, %c0_32] : memref<2x128x384xbf16, #tpu.memory_space<vmem>>, vector<1x128x384xbf16>
    %64 = vector.shape_cast %63 : vector<1x128x384xbf16> to vector<128x384xbf16>
    %c0_33 = arith.constant 0 : index
    %c0_34 = arith.constant 0 : index
    %c0_35 = arith.constant 0 : index
    %65 = vector.load %arg12[%c0_33, %c0_34, %c0_35] : memref<2x128x128xbf16, #tpu.memory_space<vmem>>, vector<1x128x128xbf16>
    %66 = vector.shape_cast %65 : vector<1x128x128xbf16> to vector<128x128xbf16>
    %67 = arith.truncf %27 : vector<4x128xf32> to vector<4x128xbf16>
    %cst_36 = arith.constant dense<0.000000e+00> : vector<4x384xf32>
    %68 = tpu.matmul %67, %64, %cst_36 {dimension_numbers = #tpu.dot_dimension_numbers<[1], [0], [0], [1], [0, 0, 1, 1], [], []>} : vector<4x128xbf16>, vector<128x384xbf16>, vector<4x384xf32> -> vector<4x384xf32>
    %c0_37 = arith.constant 0 : index
    %c0_38 = arith.constant 0 : index
    %c0_39 = arith.constant 0 : index
    %69 = vector.load %arg11[%c0_37, %c0_38, %c0_39] : memref<2x1x384xf32, #tpu.memory_space<vmem>>, vector<1x1x384xf32>
    %70 = vector.shape_cast %69 : vector<1x1x384xf32> to vector<1x384xf32>
    %71 = vector.broadcast %70 : vector<1x384xf32> to vector<4x384xf32>
    %72 = arith.addf %68, %71 : vector<4x384xf32>
    %73 = vector.extract_strided_slice %72 {offsets = [0, 0], sizes = [4, 128], strides = [1, 1]} : vector<4x384xf32> to vector<4x128xf32>
    %74 = vector.extract_strided_slice %72 {offsets = [0, 128], sizes = [4, 128], strides = [1, 1]} : vector<4x384xf32> to vector<4x128xf32>
    %75 = vector.extract_strided_slice %72 {offsets = [0, 256], sizes = [4, 128], strides = [1, 1]} : vector<4x384xf32> to vector<4x128xf32>
    %cst_40 = arith.constant 0.000000e+00 : f32
    %76 = vector.broadcast %cst_40 : f32 to vector<4x128xf32>
    %77 = vector.extract_strided_slice %73 {offsets = [0, 0], sizes = [4, 16], strides = [1, 1]} : vector<4x128xf32> to vector<4x16xf32>
    %78 = vector.extract_strided_slice %74 {offsets = [0, 0], sizes = [4, 16], strides = [1, 1]} : vector<4x128xf32> to vector<4x16xf32>
    %79 = vector.extract_strided_slice %75 {offsets = [0, 0], sizes = [4, 16], strides = [1, 1]} : vector<4x128xf32> to vector<4x16xf32>
    %80 = arith.truncf %77 : vector<4x16xf32> to vector<4x16xbf16>
    %81 = arith.truncf %78 : vector<4x16xf32> to vector<4x16xbf16>
    %cst_41 = arith.constant dense<0.000000e+00> : vector<4x4xf32>
    %82 = tpu.matmul %80, %81, %cst_41 {dimension_numbers = #tpu.dot_dimension_numbers<[1], [1], [0], [0], [0, 0, 1, 0], [], []>} : vector<4x16xbf16>, vector<4x16xbf16>, vector<4x4xf32> -> vector<4x4xf32>
    %cst_42 = arith.constant 2.500000e-01 : f32
    %83 = vector.broadcast %cst_42 : f32 to vector<4x4xf32>
    %84 = arith.mulf %82, %83 : vector<4x4xf32>
    %cst_43 = arith.constant -1.000000e+30 : f32
    %85 = vector.broadcast %cst_43 : f32 to vector<4x4xf32>
    %86 = arith.select %62, %84, %85 : vector<4x4xi1>, vector<4x4xf32>
    %cst_44 = arith.constant dense<0xFF800000> : vector<4xf32>
    %87 = vector.multi_reduction <maximumf>, %86, %cst_44 [1] : vector<4x4xf32> to vector<4xf32>
    %88 = vector.shape_cast %87 : vector<4xf32> to vector<4x1xf32>
    %89 = vector.broadcast %88 : vector<4x1xf32> to vector<4x4xf32>
    %90 = arith.subf %86, %89 : vector<4x4xf32>
    %91 = math.exp %90 : vector<4x4xf32>
    %cst_45 = arith.constant dense<0.000000e+00> : vector<4xf32>
    %92 = vector.multi_reduction <add>, %91, %cst_45 [1] : vector<4x4xf32> to vector<4xf32>
    %93 = vector.shape_cast %92 : vector<4xf32> to vector<4x1xf32>
    %94 = vector.broadcast %93 : vector<4x1xf32> to vector<4x4xf32>
    %95 = arith.divf %91, %94 : vector<4x4xf32>
    %96 = arith.truncf %95 : vector<4x4xf32> to vector<4x4xbf16>
    %97 = arith.truncf %79 : vector<4x16xf32> to vector<4x16xbf16>
    %cst_46 = arith.constant dense<0.000000e+00> : vector<4x16xf32>
    %98 = tpu.matmul %96, %97, %cst_46 {dimension_numbers = #tpu.dot_dimension_numbers<[1], [0], [0], [1], [0, 0, 1, 1], [], []>} : vector<4x4xbf16>, vector<4x16xbf16>, vector<4x16xf32> -> vector<4x16xf32>
    %99 = vector.extract_strided_slice %66 {offsets = [0, 0], sizes = [16, 128], strides = [1, 1]} : vector<128x128xbf16> to vector<16x128xbf16>
    %100 = arith.truncf %98 : vector<4x16xf32> to vector<4x16xbf16>
    %cst_47 = arith.constant dense<0.000000e+00> : vector<4x128xf32>
    %101 = tpu.matmul %100, %99, %cst_47 {dimension_numbers = #tpu.dot_dimension_numbers<[1], [0], [0], [1], [0, 0, 1, 1], [], []>} : vector<4x16xbf16>, vector<16x128xbf16>, vector<4x128xf32> -> vector<4x128xf32>
    %102 = arith.addf %76, %101 : vector<4x128xf32>
    %103 = vector.extract_strided_slice %73 {offsets = [0, 16], sizes = [4, 16], strides = [1, 1]} : vector<4x128xf32> to vector<4x16xf32>
    %104 = vector.extract_strided_slice %74 {offsets = [0, 16], sizes = [4, 16], strides = [1, 1]} : vector<4x128xf32> to vector<4x16xf32>
    %105 = vector.extract_strided_slice %75 {offsets = [0, 16], sizes = [4, 16], strides = [1, 1]} : vector<4x128xf32> to vector<4x16xf32>
    %106 = arith.truncf %103 : vector<4x16xf32> to vector<4x16xbf16>
    %107 = arith.truncf %104 : vector<4x16xf32> to vector<4x16xbf16>
    %cst_48 = arith.constant dense<0.000000e+00> : vector<4x4xf32>
    %108 = tpu.matmul %106, %107, %cst_48 {dimension_numbers = #tpu.dot_dimension_numbers<[1], [1], [0], [0], [0, 0, 1, 0], [], []>} : vector<4x16xbf16>, vector<4x16xbf16>, vector<4x4xf32> -> vector<4x4xf32>
    %cst_49 = arith.constant 2.500000e-01 : f32
    %109 = vector.broadcast %cst_49 : f32 to vector<4x4xf32>
    %110 = arith.mulf %108, %109 : vector<4x4xf32>
    %cst_50 = arith.constant -1.000000e+30 : f32
    %111 = vector.broadcast %cst_50 : f32 to vector<4x4xf32>
    %112 = arith.select %62, %110, %111 : vector<4x4xi1>, vector<4x4xf32>
    %cst_51 = arith.constant dense<0xFF800000> : vector<4xf32>
    %113 = vector.multi_reduction <maximumf>, %112, %cst_51 [1] : vector<4x4xf32> to vector<4xf32>
    %114 = vector.shape_cast %113 : vector<4xf32> to vector<4x1xf32>
    %115 = vector.broadcast %114 : vector<4x1xf32> to vector<4x4xf32>
    %116 = arith.subf %112, %115 : vector<4x4xf32>
    %117 = math.exp %116 : vector<4x4xf32>
    %cst_52 = arith.constant dense<0.000000e+00> : vector<4xf32>
    %118 = vector.multi_reduction <add>, %117, %cst_52 [1] : vector<4x4xf32> to vector<4xf32>
    %119 = vector.shape_cast %118 : vector<4xf32> to vector<4x1xf32>
    %120 = vector.broadcast %119 : vector<4x1xf32> to vector<4x4xf32>
    %121 = arith.divf %117, %120 : vector<4x4xf32>
    %122 = arith.truncf %121 : vector<4x4xf32> to vector<4x4xbf16>
    %123 = arith.truncf %105 : vector<4x16xf32> to vector<4x16xbf16>
    %cst_53 = arith.constant dense<0.000000e+00> : vector<4x16xf32>
    %124 = tpu.matmul %122, %123, %cst_53 {dimension_numbers = #tpu.dot_dimension_numbers<[1], [0], [0], [1], [0, 0, 1, 1], [], []>} : vector<4x4xbf16>, vector<4x16xbf16>, vector<4x16xf32> -> vector<4x16xf32>
    %125 = vector.extract_strided_slice %66 {offsets = [16, 0], sizes = [16, 128], strides = [1, 1]} : vector<128x128xbf16> to vector<16x128xbf16>
    %126 = arith.truncf %124 : vector<4x16xf32> to vector<4x16xbf16>
    %cst_54 = arith.constant dense<0.000000e+00> : vector<4x128xf32>
    %127 = tpu.matmul %126, %125, %cst_54 {dimension_numbers = #tpu.dot_dimension_numbers<[1], [0], [0], [1], [0, 0, 1, 1], [], []>} : vector<4x16xbf16>, vector<16x128xbf16>, vector<4x128xf32> -> vector<4x128xf32>
    %128 = arith.addf %102, %127 : vector<4x128xf32>
    %129 = vector.extract_strided_slice %73 {offsets = [0, 32], sizes = [4, 16], strides = [1, 1]} : vector<4x128xf32> to vector<4x16xf32>
    %130 = vector.extract_strided_slice %74 {offsets = [0, 32], sizes = [4, 16], strides = [1, 1]} : vector<4x128xf32> to vector<4x16xf32>
    %131 = vector.extract_strided_slice %75 {offsets = [0, 32], sizes = [4, 16], strides = [1, 1]} : vector<4x128xf32> to vector<4x16xf32>
    %132 = arith.truncf %129 : vector<4x16xf32> to vector<4x16xbf16>
    %133 = arith.truncf %130 : vector<4x16xf32> to vector<4x16xbf16>
    %cst_55 = arith.constant dense<0.000000e+00> : vector<4x4xf32>
    %134 = tpu.matmul %132, %133, %cst_55 {dimension_numbers = #tpu.dot_dimension_numbers<[1], [1], [0], [0], [0, 0, 1, 0], [], []>} : vector<4x16xbf16>, vector<4x16xbf16>, vector<4x4xf32> -> vector<4x4xf32>
    %cst_56 = arith.constant 2.500000e-01 : f32
    %135 = vector.broadcast %cst_56 : f32 to vector<4x4xf32>
    %136 = arith.mulf %134, %135 : vector<4x4xf32>
    %cst_57 = arith.constant -1.000000e+30 : f32
    %137 = vector.broadcast %cst_57 : f32 to vector<4x4xf32>
    %138 = arith.select %62, %136, %137 : vector<4x4xi1>, vector<4x4xf32>
    %cst_58 = arith.constant dense<0xFF800000> : vector<4xf32>
    %139 = vector.multi_reduction <maximumf>, %138, %cst_58 [1] : vector<4x4xf32> to vector<4xf32>
    %140 = vector.shape_cast %139 : vector<4xf32> to vector<4x1xf32>
    %141 = vector.broadcast %140 : vector<4x1xf32> to vector<4x4xf32>
    %142 = arith.subf %138, %141 : vector<4x4xf32>
    %143 = math.exp %142 : vector<4x4xf32>
    %cst_59 = arith.constant dense<0.000000e+00> : vector<4xf32>
    %144 = vector.multi_reduction <add>, %143, %cst_59 [1] : vector<4x4xf32> to vector<4xf32>
    %145 = vector.shape_cast %144 : vector<4xf32> to vector<4x1xf32>
    %146 = vector.broadcast %145 : vector<4x1xf32> to vector<4x4xf32>
    %147 = arith.divf %143, %146 : vector<4x4xf32>
    %148 = arith.truncf %147 : vector<4x4xf32> to vector<4x4xbf16>
    %149 = arith.truncf %131 : vector<4x16xf32> to vector<4x16xbf16>
    %cst_60 = arith.constant dense<0.000000e+00> : vector<4x16xf32>
    %150 = tpu.matmul %148, %149, %cst_60 {dimension_numbers = #tpu.dot_dimension_numbers<[1], [0], [0], [1], [0, 0, 1, 1], [], []>} : vector<4x4xbf16>, vector<4x16xbf16>, vector<4x16xf32> -> vector<4x16xf32>
    %151 = vector.extract_strided_slice %66 {offsets = [32, 0], sizes = [16, 128], strides = [1, 1]} : vector<128x128xbf16> to vector<16x128xbf16>
    %152 = arith.truncf %150 : vector<4x16xf32> to vector<4x16xbf16>
    %cst_61 = arith.constant dense<0.000000e+00> : vector<4x128xf32>
    %153 = tpu.matmul %152, %151, %cst_61 {dimension_numbers = #tpu.dot_dimension_numbers<[1], [0], [0], [1], [0, 0, 1, 1], [], []>} : vector<4x16xbf16>, vector<16x128xbf16>, vector<4x128xf32> -> vector<4x128xf32>
    %154 = arith.addf %128, %153 : vector<4x128xf32>
    %155 = vector.extract_strided_slice %73 {offsets = [0, 48], sizes = [4, 16], strides = [1, 1]} : vector<4x128xf32> to vector<4x16xf32>
    %156 = vector.extract_strided_slice %74 {offsets = [0, 48], sizes = [4, 16], strides = [1, 1]} : vector<4x128xf32> to vector<4x16xf32>
    %157 = vector.extract_strided_slice %75 {offsets = [0, 48], sizes = [4, 16], strides = [1, 1]} : vector<4x128xf32> to vector<4x16xf32>
    %158 = arith.truncf %155 : vector<4x16xf32> to vector<4x16xbf16>
    %159 = arith.truncf %156 : vector<4x16xf32> to vector<4x16xbf16>
    %cst_62 = arith.constant dense<0.000000e+00> : vector<4x4xf32>
    %160 = tpu.matmul %158, %159, %cst_62 {dimension_numbers = #tpu.dot_dimension_numbers<[1], [1], [0], [0], [0, 0, 1, 0], [], []>} : vector<4x16xbf16>, vector<4x16xbf16>, vector<4x4xf32> -> vector<4x4xf32>
    %cst_63 = arith.constant 2.500000e-01 : f32
    %161 = vector.broadcast %cst_63 : f32 to vector<4x4xf32>
    %162 = arith.mulf %160, %161 : vector<4x4xf32>
    %cst_64 = arith.constant -1.000000e+30 : f32
    %163 = vector.broadcast %cst_64 : f32 to vector<4x4xf32>
    %164 = arith.select %62, %162, %163 : vector<4x4xi1>, vector<4x4xf32>
    %cst_65 = arith.constant dense<0xFF800000> : vector<4xf32>
    %165 = vector.multi_reduction <maximumf>, %164, %cst_65 [1] : vector<4x4xf32> to vector<4xf32>
    %166 = vector.shape_cast %165 : vector<4xf32> to vector<4x1xf32>
    %167 = vector.broadcast %166 : vector<4x1xf32> to vector<4x4xf32>
    %168 = arith.subf %164, %167 : vector<4x4xf32>
    %169 = math.exp %168 : vector<4x4xf32>
    %cst_66 = arith.constant dense<0.000000e+00> : vector<4xf32>
    %170 = vector.multi_reduction <add>, %169, %cst_66 [1] : vector<4x4xf32> to vector<4xf32>
    %171 = vector.shape_cast %170 : vector<4xf32> to vector<4x1xf32>
    %172 = vector.broadcast %171 : vector<4x1xf32> to vector<4x4xf32>
    %173 = arith.divf %169, %172 : vector<4x4xf32>
    %174 = arith.truncf %173 : vector<4x4xf32> to vector<4x4xbf16>
    %175 = arith.truncf %157 : vector<4x16xf32> to vector<4x16xbf16>
    %cst_67 = arith.constant dense<0.000000e+00> : vector<4x16xf32>
    %176 = tpu.matmul %174, %175, %cst_67 {dimension_numbers = #tpu.dot_dimension_numbers<[1], [0], [0], [1], [0, 0, 1, 1], [], []>} : vector<4x4xbf16>, vector<4x16xbf16>, vector<4x16xf32> -> vector<4x16xf32>
    %177 = vector.extract_strided_slice %66 {offsets = [48, 0], sizes = [16, 128], strides = [1, 1]} : vector<128x128xbf16> to vector<16x128xbf16>
    %178 = arith.truncf %176 : vector<4x16xf32> to vector<4x16xbf16>
    %cst_68 = arith.constant dense<0.000000e+00> : vector<4x128xf32>
    %179 = tpu.matmul %178, %177, %cst_68 {dimension_numbers = #tpu.dot_dimension_numbers<[1], [0], [0], [1], [0, 0, 1, 1], [], []>} : vector<4x16xbf16>, vector<16x128xbf16>, vector<4x128xf32> -> vector<4x128xf32>
    %180 = arith.addf %154, %179 : vector<4x128xf32>
    %181 = vector.extract_strided_slice %73 {offsets = [0, 64], sizes = [4, 16], strides = [1, 1]} : vector<4x128xf32> to vector<4x16xf32>
    %182 = vector.extract_strided_slice %74 {offsets = [0, 64], sizes = [4, 16], strides = [1, 1]} : vector<4x128xf32> to vector<4x16xf32>
    %183 = vector.extract_strided_slice %75 {offsets = [0, 64], sizes = [4, 16], strides = [1, 1]} : vector<4x128xf32> to vector<4x16xf32>
    %184 = arith.truncf %181 : vector<4x16xf32> to vector<4x16xbf16>
    %185 = arith.truncf %182 : vector<4x16xf32> to vector<4x16xbf16>
    %cst_69 = arith.constant dense<0.000000e+00> : vector<4x4xf32>
    %186 = tpu.matmul %184, %185, %cst_69 {dimension_numbers = #tpu.dot_dimension_numbers<[1], [1], [0], [0], [0, 0, 1, 0], [], []>} : vector<4x16xbf16>, vector<4x16xbf16>, vector<4x4xf32> -> vector<4x4xf32>
    %cst_70 = arith.constant 2.500000e-01 : f32
    %187 = vector.broadcast %cst_70 : f32 to vector<4x4xf32>
    %188 = arith.mulf %186, %187 : vector<4x4xf32>
    %cst_71 = arith.constant -1.000000e+30 : f32
    %189 = vector.broadcast %cst_71 : f32 to vector<4x4xf32>
    %190 = arith.select %62, %188, %189 : vector<4x4xi1>, vector<4x4xf32>
    %cst_72 = arith.constant dense<0xFF800000> : vector<4xf32>
    %191 = vector.multi_reduction <maximumf>, %190, %cst_72 [1] : vector<4x4xf32> to vector<4xf32>
    %192 = vector.shape_cast %191 : vector<4xf32> to vector<4x1xf32>
    %193 = vector.broadcast %192 : vector<4x1xf32> to vector<4x4xf32>
    %194 = arith.subf %190, %193 : vector<4x4xf32>
    %195 = math.exp %194 : vector<4x4xf32>
    %cst_73 = arith.constant dense<0.000000e+00> : vector<4xf32>
    %196 = vector.multi_reduction <add>, %195, %cst_73 [1] : vector<4x4xf32> to vector<4xf32>
    %197 = vector.shape_cast %196 : vector<4xf32> to vector<4x1xf32>
    %198 = vector.broadcast %197 : vector<4x1xf32> to vector<4x4xf32>
    %199 = arith.divf %195, %198 : vector<4x4xf32>
    %200 = arith.truncf %199 : vector<4x4xf32> to vector<4x4xbf16>
    %201 = arith.truncf %183 : vector<4x16xf32> to vector<4x16xbf16>
    %cst_74 = arith.constant dense<0.000000e+00> : vector<4x16xf32>
    %202 = tpu.matmul %200, %201, %cst_74 {dimension_numbers = #tpu.dot_dimension_numbers<[1], [0], [0], [1], [0, 0, 1, 1], [], []>} : vector<4x4xbf16>, vector<4x16xbf16>, vector<4x16xf32> -> vector<4x16xf32>
    %203 = vector.extract_strided_slice %66 {offsets = [64, 0], sizes = [16, 128], strides = [1, 1]} : vector<128x128xbf16> to vector<16x128xbf16>
    %204 = arith.truncf %202 : vector<4x16xf32> to vector<4x16xbf16>
    %cst_75 = arith.constant dense<0.000000e+00> : vector<4x128xf32>
    %205 = tpu.matmul %204, %203, %cst_75 {dimension_numbers = #tpu.dot_dimension_numbers<[1], [0], [0], [1], [0, 0, 1, 1], [], []>} : vector<4x16xbf16>, vector<16x128xbf16>, vector<4x128xf32> -> vector<4x128xf32>
    %206 = arith.addf %180, %205 : vector<4x128xf32>
    %207 = vector.extract_strided_slice %73 {offsets = [0, 80], sizes = [4, 16], strides = [1, 1]} : vector<4x128xf32> to vector<4x16xf32>
    %208 = vector.extract_strided_slice %74 {offsets = [0, 80], sizes = [4, 16], strides = [1, 1]} : vector<4x128xf32> to vector<4x16xf32>
    %209 = vector.extract_strided_slice %75 {offsets = [0, 80], sizes = [4, 16], strides = [1, 1]} : vector<4x128xf32> to vector<4x16xf32>
    %210 = arith.truncf %207 : vector<4x16xf32> to vector<4x16xbf16>
    %211 = arith.truncf %208 : vector<4x16xf32> to vector<4x16xbf16>
    %cst_76 = arith.constant dense<0.000000e+00> : vector<4x4xf32>
    %212 = tpu.matmul %210, %211, %cst_76 {dimension_numbers = #tpu.dot_dimension_numbers<[1], [1], [0], [0], [0, 0, 1, 0], [], []>} : vector<4x16xbf16>, vector<4x16xbf16>, vector<4x4xf32> -> vector<4x4xf32>
    %cst_77 = arith.constant 2.500000e-01 : f32
    %213 = vector.broadcast %cst_77 : f32 to vector<4x4xf32>
    %214 = arith.mulf %212, %213 : vector<4x4xf32>
    %cst_78 = arith.constant -1.000000e+30 : f32
    %215 = vector.broadcast %cst_78 : f32 to vector<4x4xf32>
    %216 = arith.select %62, %214, %215 : vector<4x4xi1>, vector<4x4xf32>
    %cst_79 = arith.constant dense<0xFF800000> : vector<4xf32>
    %217 = vector.multi_reduction <maximumf>, %216, %cst_79 [1] : vector<4x4xf32> to vector<4xf32>
    %218 = vector.shape_cast %217 : vector<4xf32> to vector<4x1xf32>
    %219 = vector.broadcast %218 : vector<4x1xf32> to vector<4x4xf32>
    %220 = arith.subf %216, %219 : vector<4x4xf32>
    %221 = math.exp %220 : vector<4x4xf32>
    %cst_80 = arith.constant dense<0.000000e+00> : vector<4xf32>
    %222 = vector.multi_reduction <add>, %221, %cst_80 [1] : vector<4x4xf32> to vector<4xf32>
    %223 = vector.shape_cast %222 : vector<4xf32> to vector<4x1xf32>
    %224 = vector.broadcast %223 : vector<4x1xf32> to vector<4x4xf32>
    %225 = arith.divf %221, %224 : vector<4x4xf32>
    %226 = arith.truncf %225 : vector<4x4xf32> to vector<4x4xbf16>
    %227 = arith.truncf %209 : vector<4x16xf32> to vector<4x16xbf16>
    %cst_81 = arith.constant dense<0.000000e+00> : vector<4x16xf32>
    %228 = tpu.matmul %226, %227, %cst_81 {dimension_numbers = #tpu.dot_dimension_numbers<[1], [0], [0], [1], [0, 0, 1, 1], [], []>} : vector<4x4xbf16>, vector<4x16xbf16>, vector<4x16xf32> -> vector<4x16xf32>
    %229 = vector.extract_strided_slice %66 {offsets = [80, 0], sizes = [16, 128], strides = [1, 1]} : vector<128x128xbf16> to vector<16x128xbf16>
    %230 = arith.truncf %228 : vector<4x16xf32> to vector<4x16xbf16>
    %cst_82 = arith.constant dense<0.000000e+00> : vector<4x128xf32>
    %231 = tpu.matmul %230, %229, %cst_82 {dimension_numbers = #tpu.dot_dimension_numbers<[1], [0], [0], [1], [0, 0, 1, 1], [], []>} : vector<4x16xbf16>, vector<16x128xbf16>, vector<4x128xf32> -> vector<4x128xf32>
    %232 = arith.addf %206, %231 : vector<4x128xf32>
    %233 = vector.extract_strided_slice %73 {offsets = [0, 96], sizes = [4, 16], strides = [1, 1]} : vector<4x128xf32> to vector<4x16xf32>
    %234 = vector.extract_strided_slice %74 {offsets = [0, 96], sizes = [4, 16], strides = [1, 1]} : vector<4x128xf32> to vector<4x16xf32>
    %235 = vector.extract_strided_slice %75 {offsets = [0, 96], sizes = [4, 16], strides = [1, 1]} : vector<4x128xf32> to vector<4x16xf32>
    %236 = arith.truncf %233 : vector<4x16xf32> to vector<4x16xbf16>
    %237 = arith.truncf %234 : vector<4x16xf32> to vector<4x16xbf16>
    %cst_83 = arith.constant dense<0.000000e+00> : vector<4x4xf32>
    %238 = tpu.matmul %236, %237, %cst_83 {dimension_numbers = #tpu.dot_dimension_numbers<[1], [1], [0], [0], [0, 0, 1, 0], [], []>} : vector<4x16xbf16>, vector<4x16xbf16>, vector<4x4xf32> -> vector<4x4xf32>
    %cst_84 = arith.constant 2.500000e-01 : f32
    %239 = vector.broadcast %cst_84 : f32 to vector<4x4xf32>
    %240 = arith.mulf %238, %239 : vector<4x4xf32>
    %cst_85 = arith.constant -1.000000e+30 : f32
    %241 = vector.broadcast %cst_85 : f32 to vector<4x4xf32>
    %242 = arith.select %62, %240, %241 : vector<4x4xi1>, vector<4x4xf32>
    %cst_86 = arith.constant dense<0xFF800000> : vector<4xf32>
    %243 = vector.multi_reduction <maximumf>, %242, %cst_86 [1] : vector<4x4xf32> to vector<4xf32>
    %244 = vector.shape_cast %243 : vector<4xf32> to vector<4x1xf32>
    %245 = vector.broadcast %244 : vector<4x1xf32> to vector<4x4xf32>
    %246 = arith.subf %242, %245 : vector<4x4xf32>
    %247 = math.exp %246 : vector<4x4xf32>
    %cst_87 = arith.constant dense<0.000000e+00> : vector<4xf32>
    %248 = vector.multi_reduction <add>, %247, %cst_87 [1] : vector<4x4xf32> to vector<4xf32>
    %249 = vector.shape_cast %248 : vector<4xf32> to vector<4x1xf32>
    %250 = vector.broadcast %249 : vector<4x1xf32> to vector<4x4xf32>
    %251 = arith.divf %247, %250 : vector<4x4xf32>
    %252 = arith.truncf %251 : vector<4x4xf32> to vector<4x4xbf16>
    %253 = arith.truncf %235 : vector<4x16xf32> to vector<4x16xbf16>
    %cst_88 = arith.constant dense<0.000000e+00> : vector<4x16xf32>
    %254 = tpu.matmul %252, %253, %cst_88 {dimension_numbers = #tpu.dot_dimension_numbers<[1], [0], [0], [1], [0, 0, 1, 1], [], []>} : vector<4x4xbf16>, vector<4x16xbf16>, vector<4x16xf32> -> vector<4x16xf32>
    %255 = vector.extract_strided_slice %66 {offsets = [96, 0], sizes = [16, 128], strides = [1, 1]} : vector<128x128xbf16> to vector<16x128xbf16>
    %256 = arith.truncf %254 : vector<4x16xf32> to vector<4x16xbf16>
    %cst_89 = arith.constant dense<0.000000e+00> : vector<4x128xf32>
    %257 = tpu.matmul %256, %255, %cst_89 {dimension_numbers = #tpu.dot_dimension_numbers<[1], [0], [0], [1], [0, 0, 1, 1], [], []>} : vector<4x16xbf16>, vector<16x128xbf16>, vector<4x128xf32> -> vector<4x128xf32>
    %258 = arith.addf %232, %257 : vector<4x128xf32>
    %259 = vector.extract_strided_slice %73 {offsets = [0, 112], sizes = [4, 16], strides = [1, 1]} : vector<4x128xf32> to vector<4x16xf32>
    %260 = vector.extract_strided_slice %74 {offsets = [0, 112], sizes = [4, 16], strides = [1, 1]} : vector<4x128xf32> to vector<4x16xf32>
    %261 = vector.extract_strided_slice %75 {offsets = [0, 112], sizes = [4, 16], strides = [1, 1]} : vector<4x128xf32> to vector<4x16xf32>
    %262 = arith.truncf %259 : vector<4x16xf32> to vector<4x16xbf16>
    %263 = arith.truncf %260 : vector<4x16xf32> to vector<4x16xbf16>
    %cst_90 = arith.constant dense<0.000000e+00> : vector<4x4xf32>
    %264 = tpu.matmul %262, %263, %cst_90 {dimension_numbers = #tpu.dot_dimension_numbers<[1], [1], [0], [0], [0, 0, 1, 0], [], []>} : vector<4x16xbf16>, vector<4x16xbf16>, vector<4x4xf32> -> vector<4x4xf32>
    %cst_91 = arith.constant 2.500000e-01 : f32
    %265 = vector.broadcast %cst_91 : f32 to vector<4x4xf32>
    %266 = arith.mulf %264, %265 : vector<4x4xf32>
    %cst_92 = arith.constant -1.000000e+30 : f32
    %267 = vector.broadcast %cst_92 : f32 to vector<4x4xf32>
    %268 = arith.select %62, %266, %267 : vector<4x4xi1>, vector<4x4xf32>
    %cst_93 = arith.constant dense<0xFF800000> : vector<4xf32>
    %269 = vector.multi_reduction <maximumf>, %268, %cst_93 [1] : vector<4x4xf32> to vector<4xf32>
    %270 = vector.shape_cast %269 : vector<4xf32> to vector<4x1xf32>
    %271 = vector.broadcast %270 : vector<4x1xf32> to vector<4x4xf32>
    %272 = arith.subf %268, %271 : vector<4x4xf32>
    %273 = math.exp %272 : vector<4x4xf32>
    %cst_94 = arith.constant dense<0.000000e+00> : vector<4xf32>
    %274 = vector.multi_reduction <add>, %273, %cst_94 [1] : vector<4x4xf32> to vector<4xf32>
    %275 = vector.shape_cast %274 : vector<4xf32> to vector<4x1xf32>
    %276 = vector.broadcast %275 : vector<4x1xf32> to vector<4x4xf32>
    %277 = arith.divf %273, %276 : vector<4x4xf32>
    %278 = arith.truncf %277 : vector<4x4xf32> to vector<4x4xbf16>
    %279 = arith.truncf %261 : vector<4x16xf32> to vector<4x16xbf16>
    %cst_95 = arith.constant dense<0.000000e+00> : vector<4x16xf32>
    %280 = tpu.matmul %278, %279, %cst_95 {dimension_numbers = #tpu.dot_dimension_numbers<[1], [0], [0], [1], [0, 0, 1, 1], [], []>} : vector<4x4xbf16>, vector<4x16xbf16>, vector<4x16xf32> -> vector<4x16xf32>
    %281 = vector.extract_strided_slice %66 {offsets = [112, 0], sizes = [16, 128], strides = [1, 1]} : vector<128x128xbf16> to vector<16x128xbf16>
    %282 = arith.truncf %280 : vector<4x16xf32> to vector<4x16xbf16>
    %cst_96 = arith.constant dense<0.000000e+00> : vector<4x128xf32>
    %283 = tpu.matmul %282, %281, %cst_96 {dimension_numbers = #tpu.dot_dimension_numbers<[1], [0], [0], [1], [0, 0, 1, 1], [], []>} : vector<4x16xbf16>, vector<16x128xbf16>, vector<4x128xf32> -> vector<4x128xf32>
    %284 = arith.addf %258, %283 : vector<4x128xf32>
    %c0_97 = arith.constant 0 : index
    %c0_98 = arith.constant 0 : index
    %c0_99 = arith.constant 0 : index
    %285 = vector.load %arg13[%c0_97, %c0_98, %c0_99] : memref<2x1x128xf32, #tpu.memory_space<vmem>>, vector<1x1x128xf32>
    %286 = vector.shape_cast %285 : vector<1x1x128xf32> to vector<1x128xf32>
    %287 = vector.broadcast %286 : vector<1x128xf32> to vector<4x128xf32>
    %288 = arith.addf %284, %287 : vector<4x128xf32>
    %289 = arith.addf %27, %288 : vector<4x128xf32>
    %c0_100 = arith.constant 0 : index
    %c0_101 = arith.constant 0 : index
    %c0_102 = arith.constant 0 : index
    %290 = vector.load %arg18[%c0_100, %c0_101, %c0_102] : memref<2x1x128xf32, #tpu.memory_space<vmem>>, vector<1x1x128xf32>
    %291 = vector.shape_cast %290 : vector<1x1x128xf32> to vector<1x128xf32>
    %c0_103 = arith.constant 0 : index
    %c0_104 = arith.constant 0 : index
    %c0_105 = arith.constant 0 : index
    %292 = vector.load %arg19[%c0_103, %c0_104, %c0_105] : memref<2x1x128xf32, #tpu.memory_space<vmem>>, vector<1x1x128xf32>
    %293 = vector.shape_cast %292 : vector<1x1x128xf32> to vector<1x128xf32>
    %cst_106 = arith.constant dense<0.000000e+00> : vector<4xf32>
    %294 = vector.multi_reduction <add>, %289, %cst_106 [1] : vector<4x128xf32> to vector<4xf32>
    %295 = vector.shape_cast %294 : vector<4xf32> to vector<4x1xf32>
    %cst_107 = arith.constant 1.280000e+02 : f32
    %296 = vector.broadcast %cst_107 : f32 to vector<4x1xf32>
    %297 = arith.divf %295, %296 : vector<4x1xf32>
    %298 = vector.broadcast %297 : vector<4x1xf32> to vector<4x128xf32>
    %299 = arith.subf %289, %298 : vector<4x128xf32>
    %300 = arith.mulf %299, %299 : vector<4x128xf32>
    %cst_108 = arith.constant dense<0.000000e+00> : vector<4xf32>
    %301 = vector.multi_reduction <add>, %300, %cst_108 [1] : vector<4x128xf32> to vector<4xf32>
    %302 = vector.shape_cast %301 : vector<4xf32> to vector<4x1xf32>
    %cst_109 = arith.constant 1.280000e+02 : f32
    %303 = vector.broadcast %cst_109 : f32 to vector<4x1xf32>
    %304 = arith.divf %302, %303 : vector<4x1xf32>
    %cst_110 = arith.constant 9.99999974E-6 : f32
    %305 = vector.broadcast %cst_110 : f32 to vector<4x1xf32>
    %306 = arith.addf %304, %305 : vector<4x1xf32>
    %307 = math.rsqrt %306 : vector<4x1xf32>
    %308 = vector.broadcast %307 : vector<4x1xf32> to vector<4x128xf32>
    %309 = arith.mulf %299, %308 : vector<4x128xf32>
    %310 = vector.broadcast %291 : vector<1x128xf32> to vector<4x128xf32>
    %311 = arith.mulf %309, %310 : vector<4x128xf32>
    %312 = vector.broadcast %293 : vector<1x128xf32> to vector<4x128xf32>
    %313 = arith.addf %311, %312 : vector<4x128xf32>
    %c0_111 = arith.constant 0 : index
    %c0_112 = arith.constant 0 : index
    %c0_113 = arith.constant 0 : index
    %314 = vector.load %arg14[%c0_111, %c0_112, %c0_113] : memref<2x128x256xbf16, #tpu.memory_space<vmem>>, vector<1x128x256xbf16>
    %315 = vector.shape_cast %314 : vector<1x128x256xbf16> to vector<128x256xbf16>
    %316 = arith.truncf %313 : vector<4x128xf32> to vector<4x128xbf16>
    %cst_114 = arith.constant dense<0.000000e+00> : vector<4x256xf32>
    %317 = tpu.matmul %316, %315, %cst_114 {dimension_numbers = #tpu.dot_dimension_numbers<[1], [0], [0], [1], [0, 0, 1, 1], [], []>} : vector<4x128xbf16>, vector<128x256xbf16>, vector<4x256xf32> -> vector<4x256xf32>
    %c0_115 = arith.constant 0 : index
    %c0_116 = arith.constant 0 : index
    %c0_117 = arith.constant 0 : index
    %318 = vector.load %arg15[%c0_115, %c0_116, %c0_117] : memref<2x1x256xf32, #tpu.memory_space<vmem>>, vector<1x1x256xf32>
    %319 = vector.shape_cast %318 : vector<1x1x256xf32> to vector<1x256xf32>
    %320 = vector.broadcast %319 : vector<1x256xf32> to vector<4x256xf32>
    %321 = arith.addf %317, %320 : vector<4x256xf32>
    %cst_118 = arith.constant 5.000000e-01 : f32
    %322 = vector.broadcast %cst_118 : f32 to vector<4x256xf32>
    %323 = arith.mulf %322, %321 : vector<4x256xf32>
    %324 = arith.mulf %321, %321 : vector<4x256xf32>
    %325 = arith.mulf %324, %321 : vector<4x256xf32>
    %cst_119 = arith.constant 4.471500e-02 : f32
    %326 = vector.broadcast %cst_119 : f32 to vector<4x256xf32>
    %327 = arith.mulf %326, %325 : vector<4x256xf32>
    %328 = arith.addf %321, %327 : vector<4x256xf32>
    %cst_120 = arith.constant 0.797884583 : f32
    %329 = vector.broadcast %cst_120 : f32 to vector<4x256xf32>
    %330 = arith.mulf %329, %328 : vector<4x256xf32>
    %331 = math.tanh %330 : vector<4x256xf32>
    %cst_121 = arith.constant 1.000000e+00 : f32
    %332 = vector.broadcast %cst_121 : f32 to vector<4x256xf32>
    %333 = arith.addf %332, %331 : vector<4x256xf32>
    %334 = arith.mulf %323, %333 : vector<4x256xf32>
    %c0_122 = arith.constant 0 : index
    %c0_123 = arith.constant 0 : index
    %c0_124 = arith.constant 0 : index
    %335 = vector.load %arg16[%c0_122, %c0_123, %c0_124] : memref<2x256x128xbf16, #tpu.memory_space<vmem>>, vector<1x256x128xbf16>
    %336 = vector.shape_cast %335 : vector<1x256x128xbf16> to vector<256x128xbf16>
    %337 = arith.truncf %334 : vector<4x256xf32> to vector<4x256xbf16>
    %cst_125 = arith.constant dense<0.000000e+00> : vector<4x128xf32>
    %338 = tpu.matmul %337, %336, %cst_125 {dimension_numbers = #tpu.dot_dimension_numbers<[1], [0], [0], [1], [0, 0, 1, 1], [], []>} : vector<4x256xbf16>, vector<256x128xbf16>, vector<4x128xf32> -> vector<4x128xf32>
    %c0_126 = arith.constant 0 : index
    %c0_127 = arith.constant 0 : index
    %c0_128 = arith.constant 0 : index
    %339 = vector.load %arg17[%c0_126, %c0_127, %c0_128] : memref<2x1x128xf32, #tpu.memory_space<vmem>>, vector<1x1x128xf32>
    %340 = vector.shape_cast %339 : vector<1x1x128xf32> to vector<1x128xf32>
    %341 = vector.broadcast %340 : vector<1x128xf32> to vector<4x128xf32>
    %342 = arith.addf %338, %341 : vector<4x128xf32>
    %343 = arith.addf %313, %342 : vector<4x128xf32>
    %c0_129 = arith.constant 0 : index
    %c0_130 = arith.constant 0 : index
    %c0_131 = arith.constant 0 : index
    %344 = vector.load %arg20[%c0_129, %c0_130, %c0_131] : memref<2x1x128xf32, #tpu.memory_space<vmem>>, vector<1x1x128xf32>
    %345 = vector.shape_cast %344 : vector<1x1x128xf32> to vector<1x128xf32>
    %c0_132 = arith.constant 0 : index
    %c0_133 = arith.constant 0 : index
    %c0_134 = arith.constant 0 : index
    %346 = vector.load %arg21[%c0_132, %c0_133, %c0_134] : memref<2x1x128xf32, #tpu.memory_space<vmem>>, vector<1x1x128xf32>
    %347 = vector.shape_cast %346 : vector<1x1x128xf32> to vector<1x128xf32>
    %cst_135 = arith.constant dense<0.000000e+00> : vector<4xf32>
    %348 = vector.multi_reduction <add>, %343, %cst_135 [1] : vector<4x128xf32> to vector<4xf32>
    %349 = vector.shape_cast %348 : vector<4xf32> to vector<4x1xf32>
    %cst_136 = arith.constant 1.280000e+02 : f32
    %350 = vector.broadcast %cst_136 : f32 to vector<4x1xf32>
    %351 = arith.divf %349, %350 : vector<4x1xf32>
    %352 = vector.broadcast %351 : vector<4x1xf32> to vector<4x128xf32>
    %353 = arith.subf %343, %352 : vector<4x128xf32>
    %354 = arith.mulf %353, %353 : vector<4x128xf32>
    %cst_137 = arith.constant dense<0.000000e+00> : vector<4xf32>
    %355 = vector.multi_reduction <add>, %354, %cst_137 [1] : vector<4x128xf32> to vector<4xf32>
    %356 = vector.shape_cast %355 : vector<4xf32> to vector<4x1xf32>
    %cst_138 = arith.constant 1.280000e+02 : f32
    %357 = vector.broadcast %cst_138 : f32 to vector<4x1xf32>
    %358 = arith.divf %356, %357 : vector<4x1xf32>
    %cst_139 = arith.constant 9.99999974E-6 : f32
    %359 = vector.broadcast %cst_139 : f32 to vector<4x1xf32>
    %360 = arith.addf %358, %359 : vector<4x1xf32>
    %361 = math.rsqrt %360 : vector<4x1xf32>
    %362 = vector.broadcast %361 : vector<4x1xf32> to vector<4x128xf32>
    %363 = arith.mulf %353, %362 : vector<4x128xf32>
    %364 = vector.broadcast %345 : vector<1x128xf32> to vector<4x128xf32>
    %365 = arith.mulf %363, %364 : vector<4x128xf32>
    %366 = vector.broadcast %347 : vector<1x128xf32> to vector<4x128xf32>
    %367 = arith.addf %365, %366 : vector<4x128xf32>
    %c1 = arith.constant 1 : index
    %c0_140 = arith.constant 0 : index
    %c0_141 = arith.constant 0 : index
    %368 = vector.load %arg10[%c1, %c0_140, %c0_141] : memref<2x128x384xbf16, #tpu.memory_space<vmem>>, vector<1x128x384xbf16>
    %369 = vector.shape_cast %368 : vector<1x128x384xbf16> to vector<128x384xbf16>
    %c1_142 = arith.constant 1 : index
    %c0_143 = arith.constant 0 : index
    %c0_144 = arith.constant 0 : index
    %370 = vector.load %arg12[%c1_142, %c0_143, %c0_144] : memref<2x128x128xbf16, #tpu.memory_space<vmem>>, vector<1x128x128xbf16>
    %371 = vector.shape_cast %370 : vector<1x128x128xbf16> to vector<128x128xbf16>
    %372 = arith.truncf %367 : vector<4x128xf32> to vector<4x128xbf16>
    %cst_145 = arith.constant dense<0.000000e+00> : vector<4x384xf32>
    %373 = tpu.matmul %372, %369, %cst_145 {dimension_numbers = #tpu.dot_dimension_numbers<[1], [0], [0], [1], [0, 0, 1, 1], [], []>} : vector<4x128xbf16>, vector<128x384xbf16>, vector<4x384xf32> -> vector<4x384xf32>
    %c1_146 = arith.constant 1 : index
    %c0_147 = arith.constant 0 : index
    %c0_148 = arith.constant 0 : index
    %374 = vector.load %arg11[%c1_146, %c0_147, %c0_148] : memref<2x1x384xf32, #tpu.memory_space<vmem>>, vector<1x1x384xf32>
    %375 = vector.shape_cast %374 : vector<1x1x384xf32> to vector<1x384xf32>
    %376 = vector.broadcast %375 : vector<1x384xf32> to vector<4x384xf32>
    %377 = arith.addf %373, %376 : vector<4x384xf32>
    %378 = vector.extract_strided_slice %377 {offsets = [0, 0], sizes = [4, 128], strides = [1, 1]} : vector<4x384xf32> to vector<4x128xf32>
    %379 = vector.extract_strided_slice %377 {offsets = [0, 128], sizes = [4, 128], strides = [1, 1]} : vector<4x384xf32> to vector<4x128xf32>
    %380 = vector.extract_strided_slice %377 {offsets = [0, 256], sizes = [4, 128], strides = [1, 1]} : vector<4x384xf32> to vector<4x128xf32>
    %cst_149 = arith.constant 0.000000e+00 : f32
    %381 = vector.broadcast %cst_149 : f32 to vector<4x128xf32>
    %382 = vector.extract_strided_slice %378 {offsets = [0, 0], sizes = [4, 16], strides = [1, 1]} : vector<4x128xf32> to vector<4x16xf32>
    %383 = vector.extract_strided_slice %379 {offsets = [0, 0], sizes = [4, 16], strides = [1, 1]} : vector<4x128xf32> to vector<4x16xf32>
    %384 = vector.extract_strided_slice %380 {offsets = [0, 0], sizes = [4, 16], strides = [1, 1]} : vector<4x128xf32> to vector<4x16xf32>
    %385 = arith.truncf %382 : vector<4x16xf32> to vector<4x16xbf16>
    %386 = arith.truncf %383 : vector<4x16xf32> to vector<4x16xbf16>
    %cst_150 = arith.constant dense<0.000000e+00> : vector<4x4xf32>
    %387 = tpu.matmul %385, %386, %cst_150 {dimension_numbers = #tpu.dot_dimension_numbers<[1], [1], [0], [0], [0, 0, 1, 0], [], []>} : vector<4x16xbf16>, vector<4x16xbf16>, vector<4x4xf32> -> vector<4x4xf32>
    %cst_151 = arith.constant 2.500000e-01 : f32
    %388 = vector.broadcast %cst_151 : f32 to vector<4x4xf32>
    %389 = arith.mulf %387, %388 : vector<4x4xf32>
    %cst_152 = arith.constant -1.000000e+30 : f32
    %390 = vector.broadcast %cst_152 : f32 to vector<4x4xf32>
    %391 = arith.select %62, %389, %390 : vector<4x4xi1>, vector<4x4xf32>
    %cst_153 = arith.constant dense<0xFF800000> : vector<4xf32>
    %392 = vector.multi_reduction <maximumf>, %391, %cst_153 [1] : vector<4x4xf32> to vector<4xf32>
    %393 = vector.shape_cast %392 : vector<4xf32> to vector<4x1xf32>
    %394 = vector.broadcast %393 : vector<4x1xf32> to vector<4x4xf32>
    %395 = arith.subf %391, %394 : vector<4x4xf32>
    %396 = math.exp %395 : vector<4x4xf32>
    %cst_154 = arith.constant dense<0.000000e+00> : vector<4xf32>
    %397 = vector.multi_reduction <add>, %396, %cst_154 [1] : vector<4x4xf32> to vector<4xf32>
    %398 = vector.shape_cast %397 : vector<4xf32> to vector<4x1xf32>
    %399 = vector.broadcast %398 : vector<4x1xf32> to vector<4x4xf32>
    %400 = arith.divf %396, %399 : vector<4x4xf32>
    %401 = arith.truncf %400 : vector<4x4xf32> to vector<4x4xbf16>
    %402 = arith.truncf %384 : vector<4x16xf32> to vector<4x16xbf16>
    %cst_155 = arith.constant dense<0.000000e+00> : vector<4x16xf32>
    %403 = tpu.matmul %401, %402, %cst_155 {dimension_numbers = #tpu.dot_dimension_numbers<[1], [0], [0], [1], [0, 0, 1, 1], [], []>} : vector<4x4xbf16>, vector<4x16xbf16>, vector<4x16xf32> -> vector<4x16xf32>
    %404 = vector.extract_strided_slice %371 {offsets = [0, 0], sizes = [16, 128], strides = [1, 1]} : vector<128x128xbf16> to vector<16x128xbf16>
    %405 = arith.truncf %403 : vector<4x16xf32> to vector<4x16xbf16>
    %cst_156 = arith.constant dense<0.000000e+00> : vector<4x128xf32>
    %406 = tpu.matmul %405, %404, %cst_156 {dimension_numbers = #tpu.dot_dimension_numbers<[1], [0], [0], [1], [0, 0, 1, 1], [], []>} : vector<4x16xbf16>, vector<16x128xbf16>, vector<4x128xf32> -> vector<4x128xf32>
    %407 = arith.addf %381, %406 : vector<4x128xf32>
    %408 = vector.extract_strided_slice %378 {offsets = [0, 16], sizes = [4, 16], strides = [1, 1]} : vector<4x128xf32> to vector<4x16xf32>
    %409 = vector.extract_strided_slice %379 {offsets = [0, 16], sizes = [4, 16], strides = [1, 1]} : vector<4x128xf32> to vector<4x16xf32>
    %410 = vector.extract_strided_slice %380 {offsets = [0, 16], sizes = [4, 16], strides = [1, 1]} : vector<4x128xf32> to vector<4x16xf32>
    %411 = arith.truncf %408 : vector<4x16xf32> to vector<4x16xbf16>
    %412 = arith.truncf %409 : vector<4x16xf32> to vector<4x16xbf16>
    %cst_157 = arith.constant dense<0.000000e+00> : vector<4x4xf32>
    %413 = tpu.matmul %411, %412, %cst_157 {dimension_numbers = #tpu.dot_dimension_numbers<[1], [1], [0], [0], [0, 0, 1, 0], [], []>} : vector<4x16xbf16>, vector<4x16xbf16>, vector<4x4xf32> -> vector<4x4xf32>
    %cst_158 = arith.constant 2.500000e-01 : f32
    %414 = vector.broadcast %cst_158 : f32 to vector<4x4xf32>
    %415 = arith.mulf %413, %414 : vector<4x4xf32>
    %cst_159 = arith.constant -1.000000e+30 : f32
    %416 = vector.broadcast %cst_159 : f32 to vector<4x4xf32>
    %417 = arith.select %62, %415, %416 : vector<4x4xi1>, vector<4x4xf32>
    %cst_160 = arith.constant dense<0xFF800000> : vector<4xf32>
    %418 = vector.multi_reduction <maximumf>, %417, %cst_160 [1] : vector<4x4xf32> to vector<4xf32>
    %419 = vector.shape_cast %418 : vector<4xf32> to vector<4x1xf32>
    %420 = vector.broadcast %419 : vector<4x1xf32> to vector<4x4xf32>
    %421 = arith.subf %417, %420 : vector<4x4xf32>
    %422 = math.exp %421 : vector<4x4xf32>
    %cst_161 = arith.constant dense<0.000000e+00> : vector<4xf32>
    %423 = vector.multi_reduction <add>, %422, %cst_161 [1] : vector<4x4xf32> to vector<4xf32>
    %424 = vector.shape_cast %423 : vector<4xf32> to vector<4x1xf32>
    %425 = vector.broadcast %424 : vector<4x1xf32> to vector<4x4xf32>
    %426 = arith.divf %422, %425 : vector<4x4xf32>
    %427 = arith.truncf %426 : vector<4x4xf32> to vector<4x4xbf16>
    %428 = arith.truncf %410 : vector<4x16xf32> to vector<4x16xbf16>
    %cst_162 = arith.constant dense<0.000000e+00> : vector<4x16xf32>
    %429 = tpu.matmul %427, %428, %cst_162 {dimension_numbers = #tpu.dot_dimension_numbers<[1], [0], [0], [1], [0, 0, 1, 1], [], []>} : vector<4x4xbf16>, vector<4x16xbf16>, vector<4x16xf32> -> vector<4x16xf32>
    %430 = vector.extract_strided_slice %371 {offsets = [16, 0], sizes = [16, 128], strides = [1, 1]} : vector<128x128xbf16> to vector<16x128xbf16>
    %431 = arith.truncf %429 : vector<4x16xf32> to vector<4x16xbf16>
    %cst_163 = arith.constant dense<0.000000e+00> : vector<4x128xf32>
    %432 = tpu.matmul %431, %430, %cst_163 {dimension_numbers = #tpu.dot_dimension_numbers<[1], [0], [0], [1], [0, 0, 1, 1], [], []>} : vector<4x16xbf16>, vector<16x128xbf16>, vector<4x128xf32> -> vector<4x128xf32>
    %433 = arith.addf %407, %432 : vector<4x128xf32>
    %434 = vector.extract_strided_slice %378 {offsets = [0, 32], sizes = [4, 16], strides = [1, 1]} : vector<4x128xf32> to vector<4x16xf32>
    %435 = vector.extract_strided_slice %379 {offsets = [0, 32], sizes = [4, 16], strides = [1, 1]} : vector<4x128xf32> to vector<4x16xf32>
    %436 = vector.extract_strided_slice %380 {offsets = [0, 32], sizes = [4, 16], strides = [1, 1]} : vector<4x128xf32> to vector<4x16xf32>
    %437 = arith.truncf %434 : vector<4x16xf32> to vector<4x16xbf16>
    %438 = arith.truncf %435 : vector<4x16xf32> to vector<4x16xbf16>
    %cst_164 = arith.constant dense<0.000000e+00> : vector<4x4xf32>
    %439 = tpu.matmul %437, %438, %cst_164 {dimension_numbers = #tpu.dot_dimension_numbers<[1], [1], [0], [0], [0, 0, 1, 0], [], []>} : vector<4x16xbf16>, vector<4x16xbf16>, vector<4x4xf32> -> vector<4x4xf32>
    %cst_165 = arith.constant 2.500000e-01 : f32
    %440 = vector.broadcast %cst_165 : f32 to vector<4x4xf32>
    %441 = arith.mulf %439, %440 : vector<4x4xf32>
    %cst_166 = arith.constant -1.000000e+30 : f32
    %442 = vector.broadcast %cst_166 : f32 to vector<4x4xf32>
    %443 = arith.select %62, %441, %442 : vector<4x4xi1>, vector<4x4xf32>
    %cst_167 = arith.constant dense<0xFF800000> : vector<4xf32>
    %444 = vector.multi_reduction <maximumf>, %443, %cst_167 [1] : vector<4x4xf32> to vector<4xf32>
    %445 = vector.shape_cast %444 : vector<4xf32> to vector<4x1xf32>
    %446 = vector.broadcast %445 : vector<4x1xf32> to vector<4x4xf32>
    %447 = arith.subf %443, %446 : vector<4x4xf32>
    %448 = math.exp %447 : vector<4x4xf32>
    %cst_168 = arith.constant dense<0.000000e+00> : vector<4xf32>
    %449 = vector.multi_reduction <add>, %448, %cst_168 [1] : vector<4x4xf32> to vector<4xf32>
    %450 = vector.shape_cast %449 : vector<4xf32> to vector<4x1xf32>
    %451 = vector.broadcast %450 : vector<4x1xf32> to vector<4x4xf32>
    %452 = arith.divf %448, %451 : vector<4x4xf32>
    %453 = arith.truncf %452 : vector<4x4xf32> to vector<4x4xbf16>
    %454 = arith.truncf %436 : vector<4x16xf32> to vector<4x16xbf16>
    %cst_169 = arith.constant dense<0.000000e+00> : vector<4x16xf32>
    %455 = tpu.matmul %453, %454, %cst_169 {dimension_numbers = #tpu.dot_dimension_numbers<[1], [0], [0], [1], [0, 0, 1, 1], [], []>} : vector<4x4xbf16>, vector<4x16xbf16>, vector<4x16xf32> -> vector<4x16xf32>
    %456 = vector.extract_strided_slice %371 {offsets = [32, 0], sizes = [16, 128], strides = [1, 1]} : vector<128x128xbf16> to vector<16x128xbf16>
    %457 = arith.truncf %455 : vector<4x16xf32> to vector<4x16xbf16>
    %cst_170 = arith.constant dense<0.000000e+00> : vector<4x128xf32>
    %458 = tpu.matmul %457, %456, %cst_170 {dimension_numbers = #tpu.dot_dimension_numbers<[1], [0], [0], [1], [0, 0, 1, 1], [], []>} : vector<4x16xbf16>, vector<16x128xbf16>, vector<4x128xf32> -> vector<4x128xf32>
    %459 = arith.addf %433, %458 : vector<4x128xf32>
    %460 = vector.extract_strided_slice %378 {offsets = [0, 48], sizes = [4, 16], strides = [1, 1]} : vector<4x128xf32> to vector<4x16xf32>
    %461 = vector.extract_strided_slice %379 {offsets = [0, 48], sizes = [4, 16], strides = [1, 1]} : vector<4x128xf32> to vector<4x16xf32>
    %462 = vector.extract_strided_slice %380 {offsets = [0, 48], sizes = [4, 16], strides = [1, 1]} : vector<4x128xf32> to vector<4x16xf32>
    %463 = arith.truncf %460 : vector<4x16xf32> to vector<4x16xbf16>
    %464 = arith.truncf %461 : vector<4x16xf32> to vector<4x16xbf16>
    %cst_171 = arith.constant dense<0.000000e+00> : vector<4x4xf32>
    %465 = tpu.matmul %463, %464, %cst_171 {dimension_numbers = #tpu.dot_dimension_numbers<[1], [1], [0], [0], [0, 0, 1, 0], [], []>} : vector<4x16xbf16>, vector<4x16xbf16>, vector<4x4xf32> -> vector<4x4xf32>
    %cst_172 = arith.constant 2.500000e-01 : f32
    %466 = vector.broadcast %cst_172 : f32 to vector<4x4xf32>
    %467 = arith.mulf %465, %466 : vector<4x4xf32>
    %cst_173 = arith.constant -1.000000e+30 : f32
    %468 = vector.broadcast %cst_173 : f32 to vector<4x4xf32>
    %469 = arith.select %62, %467, %468 : vector<4x4xi1>, vector<4x4xf32>
    %cst_174 = arith.constant dense<0xFF800000> : vector<4xf32>
    %470 = vector.multi_reduction <maximumf>, %469, %cst_174 [1] : vector<4x4xf32> to vector<4xf32>
    %471 = vector.shape_cast %470 : vector<4xf32> to vector<4x1xf32>
    %472 = vector.broadcast %471 : vector<4x1xf32> to vector<4x4xf32>
    %473 = arith.subf %469, %472 : vector<4x4xf32>
    %474 = math.exp %473 : vector<4x4xf32>
    %cst_175 = arith.constant dense<0.000000e+00> : vector<4xf32>
    %475 = vector.multi_reduction <add>, %474, %cst_175 [1] : vector<4x4xf32> to vector<4xf32>
    %476 = vector.shape_cast %475 : vector<4xf32> to vector<4x1xf32>
    %477 = vector.broadcast %476 : vector<4x1xf32> to vector<4x4xf32>
    %478 = arith.divf %474, %477 : vector<4x4xf32>
    %479 = arith.truncf %478 : vector<4x4xf32> to vector<4x4xbf16>
    %480 = arith.truncf %462 : vector<4x16xf32> to vector<4x16xbf16>
    %cst_176 = arith.constant dense<0.000000e+00> : vector<4x16xf32>
    %481 = tpu.matmul %479, %480, %cst_176 {dimension_numbers = #tpu.dot_dimension_numbers<[1], [0], [0], [1], [0, 0, 1, 1], [], []>} : vector<4x4xbf16>, vector<4x16xbf16>, vector<4x16xf32> -> vector<4x16xf32>
    %482 = vector.extract_strided_slice %371 {offsets = [48, 0], sizes = [16, 128], strides = [1, 1]} : vector<128x128xbf16> to vector<16x128xbf16>
    %483 = arith.truncf %481 : vector<4x16xf32> to vector<4x16xbf16>
    %cst_177 = arith.constant dense<0.000000e+00> : vector<4x128xf32>
    %484 = tpu.matmul %483, %482, %cst_177 {dimension_numbers = #tpu.dot_dimension_numbers<[1], [0], [0], [1], [0, 0, 1, 1], [], []>} : vector<4x16xbf16>, vector<16x128xbf16>, vector<4x128xf32> -> vector<4x128xf32>
    %485 = arith.addf %459, %484 : vector<4x128xf32>
    %486 = vector.extract_strided_slice %378 {offsets = [0, 64], sizes = [4, 16], strides = [1, 1]} : vector<4x128xf32> to vector<4x16xf32>
    %487 = vector.extract_strided_slice %379 {offsets = [0, 64], sizes = [4, 16], strides = [1, 1]} : vector<4x128xf32> to vector<4x16xf32>
    %488 = vector.extract_strided_slice %380 {offsets = [0, 64], sizes = [4, 16], strides = [1, 1]} : vector<4x128xf32> to vector<4x16xf32>
    %489 = arith.truncf %486 : vector<4x16xf32> to vector<4x16xbf16>
    %490 = arith.truncf %487 : vector<4x16xf32> to vector<4x16xbf16>
    %cst_178 = arith.constant dense<0.000000e+00> : vector<4x4xf32>
    %491 = tpu.matmul %489, %490, %cst_178 {dimension_numbers = #tpu.dot_dimension_numbers<[1], [1], [0], [0], [0, 0, 1, 0], [], []>} : vector<4x16xbf16>, vector<4x16xbf16>, vector<4x4xf32> -> vector<4x4xf32>
    %cst_179 = arith.constant 2.500000e-01 : f32
    %492 = vector.broadcast %cst_179 : f32 to vector<4x4xf32>
    %493 = arith.mulf %491, %492 : vector<4x4xf32>
    %cst_180 = arith.constant -1.000000e+30 : f32
    %494 = vector.broadcast %cst_180 : f32 to vector<4x4xf32>
    %495 = arith.select %62, %493, %494 : vector<4x4xi1>, vector<4x4xf32>
    %cst_181 = arith.constant dense<0xFF800000> : vector<4xf32>
    %496 = vector.multi_reduction <maximumf>, %495, %cst_181 [1] : vector<4x4xf32> to vector<4xf32>
    %497 = vector.shape_cast %496 : vector<4xf32> to vector<4x1xf32>
    %498 = vector.broadcast %497 : vector<4x1xf32> to vector<4x4xf32>
    %499 = arith.subf %495, %498 : vector<4x4xf32>
    %500 = math.exp %499 : vector<4x4xf32>
    %cst_182 = arith.constant dense<0.000000e+00> : vector<4xf32>
    %501 = vector.multi_reduction <add>, %500, %cst_182 [1] : vector<4x4xf32> to vector<4xf32>
    %502 = vector.shape_cast %501 : vector<4xf32> to vector<4x1xf32>
    %503 = vector.broadcast %502 : vector<4x1xf32> to vector<4x4xf32>
    %504 = arith.divf %500, %503 : vector<4x4xf32>
    %505 = arith.truncf %504 : vector<4x4xf32> to vector<4x4xbf16>
    %506 = arith.truncf %488 : vector<4x16xf32> to vector<4x16xbf16>
    %cst_183 = arith.constant dense<0.000000e+00> : vector<4x16xf32>
    %507 = tpu.matmul %505, %506, %cst_183 {dimension_numbers = #tpu.dot_dimension_numbers<[1], [0], [0], [1], [0, 0, 1, 1], [], []>} : vector<4x4xbf16>, vector<4x16xbf16>, vector<4x16xf32> -> vector<4x16xf32>
    %508 = vector.extract_strided_slice %371 {offsets = [64, 0], sizes = [16, 128], strides = [1, 1]} : vector<128x128xbf16> to vector<16x128xbf16>
    %509 = arith.truncf %507 : vector<4x16xf32> to vector<4x16xbf16>
    %cst_184 = arith.constant dense<0.000000e+00> : vector<4x128xf32>
    %510 = tpu.matmul %509, %508, %cst_184 {dimension_numbers = #tpu.dot_dimension_numbers<[1], [0], [0], [1], [0, 0, 1, 1], [], []>} : vector<4x16xbf16>, vector<16x128xbf16>, vector<4x128xf32> -> vector<4x128xf32>
    %511 = arith.addf %485, %510 : vector<4x128xf32>
    %512 = vector.extract_strided_slice %378 {offsets = [0, 80], sizes = [4, 16], strides = [1, 1]} : vector<4x128xf32> to vector<4x16xf32>
    %513 = vector.extract_strided_slice %379 {offsets = [0, 80], sizes = [4, 16], strides = [1, 1]} : vector<4x128xf32> to vector<4x16xf32>
    %514 = vector.extract_strided_slice %380 {offsets = [0, 80], sizes = [4, 16], strides = [1, 1]} : vector<4x128xf32> to vector<4x16xf32>
    %515 = arith.truncf %512 : vector<4x16xf32> to vector<4x16xbf16>
    %516 = arith.truncf %513 : vector<4x16xf32> to vector<4x16xbf16>
    %cst_185 = arith.constant dense<0.000000e+00> : vector<4x4xf32>
    %517 = tpu.matmul %515, %516, %cst_185 {dimension_numbers = #tpu.dot_dimension_numbers<[1], [1], [0], [0], [0, 0, 1, 0], [], []>} : vector<4x16xbf16>, vector<4x16xbf16>, vector<4x4xf32> -> vector<4x4xf32>
    %cst_186 = arith.constant 2.500000e-01 : f32
    %518 = vector.broadcast %cst_186 : f32 to vector<4x4xf32>
    %519 = arith.mulf %517, %518 : vector<4x4xf32>
    %cst_187 = arith.constant -1.000000e+30 : f32
    %520 = vector.broadcast %cst_187 : f32 to vector<4x4xf32>
    %521 = arith.select %62, %519, %520 : vector<4x4xi1>, vector<4x4xf32>
    %cst_188 = arith.constant dense<0xFF800000> : vector<4xf32>
    %522 = vector.multi_reduction <maximumf>, %521, %cst_188 [1] : vector<4x4xf32> to vector<4xf32>
    %523 = vector.shape_cast %522 : vector<4xf32> to vector<4x1xf32>
    %524 = vector.broadcast %523 : vector<4x1xf32> to vector<4x4xf32>
    %525 = arith.subf %521, %524 : vector<4x4xf32>
    %526 = math.exp %525 : vector<4x4xf32>
    %cst_189 = arith.constant dense<0.000000e+00> : vector<4xf32>
    %527 = vector.multi_reduction <add>, %526, %cst_189 [1] : vector<4x4xf32> to vector<4xf32>
    %528 = vector.shape_cast %527 : vector<4xf32> to vector<4x1xf32>
    %529 = vector.broadcast %528 : vector<4x1xf32> to vector<4x4xf32>
    %530 = arith.divf %526, %529 : vector<4x4xf32>
    %531 = arith.truncf %530 : vector<4x4xf32> to vector<4x4xbf16>
    %532 = arith.truncf %514 : vector<4x16xf32> to vector<4x16xbf16>
    %cst_190 = arith.constant dense<0.000000e+00> : vector<4x16xf32>
    %533 = tpu.matmul %531, %532, %cst_190 {dimension_numbers = #tpu.dot_dimension_numbers<[1], [0], [0], [1], [0, 0, 1, 1], [], []>} : vector<4x4xbf16>, vector<4x16xbf16>, vector<4x16xf32> -> vector<4x16xf32>
    %534 = vector.extract_strided_slice %371 {offsets = [80, 0], sizes = [16, 128], strides = [1, 1]} : vector<128x128xbf16> to vector<16x128xbf16>
    %535 = arith.truncf %533 : vector<4x16xf32> to vector<4x16xbf16>
    %cst_191 = arith.constant dense<0.000000e+00> : vector<4x128xf32>
    %536 = tpu.matmul %535, %534, %cst_191 {dimension_numbers = #tpu.dot_dimension_numbers<[1], [0], [0], [1], [0, 0, 1, 1], [], []>} : vector<4x16xbf16>, vector<16x128xbf16>, vector<4x128xf32> -> vector<4x128xf32>
    %537 = arith.addf %511, %536 : vector<4x128xf32>
    %538 = vector.extract_strided_slice %378 {offsets = [0, 96], sizes = [4, 16], strides = [1, 1]} : vector<4x128xf32> to vector<4x16xf32>
    %539 = vector.extract_strided_slice %379 {offsets = [0, 96], sizes = [4, 16], strides = [1, 1]} : vector<4x128xf32> to vector<4x16xf32>
    %540 = vector.extract_strided_slice %380 {offsets = [0, 96], sizes = [4, 16], strides = [1, 1]} : vector<4x128xf32> to vector<4x16xf32>
    %541 = arith.truncf %538 : vector<4x16xf32> to vector<4x16xbf16>
    %542 = arith.truncf %539 : vector<4x16xf32> to vector<4x16xbf16>
    %cst_192 = arith.constant dense<0.000000e+00> : vector<4x4xf32>
    %543 = tpu.matmul %541, %542, %cst_192 {dimension_numbers = #tpu.dot_dimension_numbers<[1], [1], [0], [0], [0, 0, 1, 0], [], []>} : vector<4x16xbf16>, vector<4x16xbf16>, vector<4x4xf32> -> vector<4x4xf32>
    %cst_193 = arith.constant 2.500000e-01 : f32
    %544 = vector.broadcast %cst_193 : f32 to vector<4x4xf32>
    %545 = arith.mulf %543, %544 : vector<4x4xf32>
    %cst_194 = arith.constant -1.000000e+30 : f32
    %546 = vector.broadcast %cst_194 : f32 to vector<4x4xf32>
    %547 = arith.select %62, %545, %546 : vector<4x4xi1>, vector<4x4xf32>
    %cst_195 = arith.constant dense<0xFF800000> : vector<4xf32>
    %548 = vector.multi_reduction <maximumf>, %547, %cst_195 [1] : vector<4x4xf32> to vector<4xf32>
    %549 = vector.shape_cast %548 : vector<4xf32> to vector<4x1xf32>
    %550 = vector.broadcast %549 : vector<4x1xf32> to vector<4x4xf32>
    %551 = arith.subf %547, %550 : vector<4x4xf32>
    %552 = math.exp %551 : vector<4x4xf32>
    %cst_196 = arith.constant dense<0.000000e+00> : vector<4xf32>
    %553 = vector.multi_reduction <add>, %552, %cst_196 [1] : vector<4x4xf32> to vector<4xf32>
    %554 = vector.shape_cast %553 : vector<4xf32> to vector<4x1xf32>
    %555 = vector.broadcast %554 : vector<4x1xf32> to vector<4x4xf32>
    %556 = arith.divf %552, %555 : vector<4x4xf32>
    %557 = arith.truncf %556 : vector<4x4xf32> to vector<4x4xbf16>
    %558 = arith.truncf %540 : vector<4x16xf32> to vector<4x16xbf16>
    %cst_197 = arith.constant dense<0.000000e+00> : vector<4x16xf32>
    %559 = tpu.matmul %557, %558, %cst_197 {dimension_numbers = #tpu.dot_dimension_numbers<[1], [0], [0], [1], [0, 0, 1, 1], [], []>} : vector<4x4xbf16>, vector<4x16xbf16>, vector<4x16xf32> -> vector<4x16xf32>
    %560 = vector.extract_strided_slice %371 {offsets = [96, 0], sizes = [16, 128], strides = [1, 1]} : vector<128x128xbf16> to vector<16x128xbf16>
    %561 = arith.truncf %559 : vector<4x16xf32> to vector<4x16xbf16>
    %cst_198 = arith.constant dense<0.000000e+00> : vector<4x128xf32>
    %562 = tpu.matmul %561, %560, %cst_198 {dimension_numbers = #tpu.dot_dimension_numbers<[1], [0], [0], [1], [0, 0, 1, 1], [], []>} : vector<4x16xbf16>, vector<16x128xbf16>, vector<4x128xf32> -> vector<4x128xf32>
    %563 = arith.addf %537, %562 : vector<4x128xf32>
    %564 = vector.extract_strided_slice %378 {offsets = [0, 112], sizes = [4, 16], strides = [1, 1]} : vector<4x128xf32> to vector<4x16xf32>
    %565 = vector.extract_strided_slice %379 {offsets = [0, 112], sizes = [4, 16], strides = [1, 1]} : vector<4x128xf32> to vector<4x16xf32>
    %566 = vector.extract_strided_slice %380 {offsets = [0, 112], sizes = [4, 16], strides = [1, 1]} : vector<4x128xf32> to vector<4x16xf32>
    %567 = arith.truncf %564 : vector<4x16xf32> to vector<4x16xbf16>
    %568 = arith.truncf %565 : vector<4x16xf32> to vector<4x16xbf16>
    %cst_199 = arith.constant dense<0.000000e+00> : vector<4x4xf32>
    %569 = tpu.matmul %567, %568, %cst_199 {dimension_numbers = #tpu.dot_dimension_numbers<[1], [1], [0], [0], [0, 0, 1, 0], [], []>} : vector<4x16xbf16>, vector<4x16xbf16>, vector<4x4xf32> -> vector<4x4xf32>
    %cst_200 = arith.constant 2.500000e-01 : f32
    %570 = vector.broadcast %cst_200 : f32 to vector<4x4xf32>
    %571 = arith.mulf %569, %570 : vector<4x4xf32>
    %cst_201 = arith.constant -1.000000e+30 : f32
    %572 = vector.broadcast %cst_201 : f32 to vector<4x4xf32>
    %573 = arith.select %62, %571, %572 : vector<4x4xi1>, vector<4x4xf32>
    %cst_202 = arith.constant dense<0xFF800000> : vector<4xf32>
    %574 = vector.multi_reduction <maximumf>, %573, %cst_202 [1] : vector<4x4xf32> to vector<4xf32>
    %575 = vector.shape_cast %574 : vector<4xf32> to vector<4x1xf32>
    %576 = vector.broadcast %575 : vector<4x1xf32> to vector<4x4xf32>
    %577 = arith.subf %573, %576 : vector<4x4xf32>
    %578 = math.exp %577 : vector<4x4xf32>
    %cst_203 = arith.constant dense<0.000000e+00> : vector<4xf32>
    %579 = vector.multi_reduction <add>, %578, %cst_203 [1] : vector<4x4xf32> to vector<4xf32>
    %580 = vector.shape_cast %579 : vector<4xf32> to vector<4x1xf32>
    %581 = vector.broadcast %580 : vector<4x1xf32> to vector<4x4xf32>
    %582 = arith.divf %578, %581 : vector<4x4xf32>
    %583 = arith.truncf %582 : vector<4x4xf32> to vector<4x4xbf16>
    %584 = arith.truncf %566 : vector<4x16xf32> to vector<4x16xbf16>
    %cst_204 = arith.constant dense<0.000000e+00> : vector<4x16xf32>
    %585 = tpu.matmul %583, %584, %cst_204 {dimension_numbers = #tpu.dot_dimension_numbers<[1], [0], [0], [1], [0, 0, 1, 1], [], []>} : vector<4x4xbf16>, vector<4x16xbf16>, vector<4x16xf32> -> vector<4x16xf32>
    %586 = vector.extract_strided_slice %371 {offsets = [112, 0], sizes = [16, 128], strides = [1, 1]} : vector<128x128xbf16> to vector<16x128xbf16>
    %587 = arith.truncf %585 : vector<4x16xf32> to vector<4x16xbf16>
    %cst_205 = arith.constant dense<0.000000e+00> : vector<4x128xf32>
    %588 = tpu.matmul %587, %586, %cst_205 {dimension_numbers = #tpu.dot_dimension_numbers<[1], [0], [0], [1], [0, 0, 1, 1], [], []>} : vector<4x16xbf16>, vector<16x128xbf16>, vector<4x128xf32> -> vector<4x128xf32>
    %589 = arith.addf %563, %588 : vector<4x128xf32>
    %c1_206 = arith.constant 1 : index
    %c0_207 = arith.constant 0 : index
    %c0_208 = arith.constant 0 : index
    %590 = vector.load %arg13[%c1_206, %c0_207, %c0_208] : memref<2x1x128xf32, #tpu.memory_space<vmem>>, vector<1x1x128xf32>
    %591 = vector.shape_cast %590 : vector<1x1x128xf32> to vector<1x128xf32>
    %592 = vector.broadcast %591 : vector<1x128xf32> to vector<4x128xf32>
    %593 = arith.addf %589, %592 : vector<4x128xf32>
    %594 = arith.addf %367, %593 : vector<4x128xf32>
    %c1_209 = arith.constant 1 : index
    %c0_210 = arith.constant 0 : index
    %c0_211 = arith.constant 0 : index
    %595 = vector.load %arg18[%c1_209, %c0_210, %c0_211] : memref<2x1x128xf32, #tpu.memory_space<vmem>>, vector<1x1x128xf32>
    %596 = vector.shape_cast %595 : vector<1x1x128xf32> to vector<1x128xf32>
    %c1_212 = arith.constant 1 : index
    %c0_213 = arith.constant 0 : index
    %c0_214 = arith.constant 0 : index
    %597 = vector.load %arg19[%c1_212, %c0_213, %c0_214] : memref<2x1x128xf32, #tpu.memory_space<vmem>>, vector<1x1x128xf32>
    %598 = vector.shape_cast %597 : vector<1x1x128xf32> to vector<1x128xf32>
    %cst_215 = arith.constant dense<0.000000e+00> : vector<4xf32>
    %599 = vector.multi_reduction <add>, %594, %cst_215 [1] : vector<4x128xf32> to vector<4xf32>
    %600 = vector.shape_cast %599 : vector<4xf32> to vector<4x1xf32>
    %cst_216 = arith.constant 1.280000e+02 : f32
    %601 = vector.broadcast %cst_216 : f32 to vector<4x1xf32>
    %602 = arith.divf %600, %601 : vector<4x1xf32>
    %603 = vector.broadcast %602 : vector<4x1xf32> to vector<4x128xf32>
    %604 = arith.subf %594, %603 : vector<4x128xf32>
    %605 = arith.mulf %604, %604 : vector<4x128xf32>
    %cst_217 = arith.constant dense<0.000000e+00> : vector<4xf32>
    %606 = vector.multi_reduction <add>, %605, %cst_217 [1] : vector<4x128xf32> to vector<4xf32>
    %607 = vector.shape_cast %606 : vector<4xf32> to vector<4x1xf32>
    %cst_218 = arith.constant 1.280000e+02 : f32
    %608 = vector.broadcast %cst_218 : f32 to vector<4x1xf32>
    %609 = arith.divf %607, %608 : vector<4x1xf32>
    %cst_219 = arith.constant 9.99999974E-6 : f32
    %610 = vector.broadcast %cst_219 : f32 to vector<4x1xf32>
    %611 = arith.addf %609, %610 : vector<4x1xf32>
    %612 = math.rsqrt %611 : vector<4x1xf32>
    %613 = vector.broadcast %612 : vector<4x1xf32> to vector<4x128xf32>
    %614 = arith.mulf %604, %613 : vector<4x128xf32>
    %615 = vector.broadcast %596 : vector<1x128xf32> to vector<4x128xf32>
    %616 = arith.mulf %614, %615 : vector<4x128xf32>
    %617 = vector.broadcast %598 : vector<1x128xf32> to vector<4x128xf32>
    %618 = arith.addf %616, %617 : vector<4x128xf32>
    %c1_220 = arith.constant 1 : index
    %c0_221 = arith.constant 0 : index
    %c0_222 = arith.constant 0 : index
    %619 = vector.load %arg14[%c1_220, %c0_221, %c0_222] : memref<2x128x256xbf16, #tpu.memory_space<vmem>>, vector<1x128x256xbf16>
    %620 = vector.shape_cast %619 : vector<1x128x256xbf16> to vector<128x256xbf16>
    %621 = arith.truncf %618 : vector<4x128xf32> to vector<4x128xbf16>
    %cst_223 = arith.constant dense<0.000000e+00> : vector<4x256xf32>
    %622 = tpu.matmul %621, %620, %cst_223 {dimension_numbers = #tpu.dot_dimension_numbers<[1], [0], [0], [1], [0, 0, 1, 1], [], []>} : vector<4x128xbf16>, vector<128x256xbf16>, vector<4x256xf32> -> vector<4x256xf32>
    %c1_224 = arith.constant 1 : index
    %c0_225 = arith.constant 0 : index
    %c0_226 = arith.constant 0 : index
    %623 = vector.load %arg15[%c1_224, %c0_225, %c0_226] : memref<2x1x256xf32, #tpu.memory_space<vmem>>, vector<1x1x256xf32>
    %624 = vector.shape_cast %623 : vector<1x1x256xf32> to vector<1x256xf32>
    %625 = vector.broadcast %624 : vector<1x256xf32> to vector<4x256xf32>
    %626 = arith.addf %622, %625 : vector<4x256xf32>
    %cst_227 = arith.constant 5.000000e-01 : f32
    %627 = vector.broadcast %cst_227 : f32 to vector<4x256xf32>
    %628 = arith.mulf %627, %626 : vector<4x256xf32>
    %629 = arith.mulf %626, %626 : vector<4x256xf32>
    %630 = arith.mulf %629, %626 : vector<4x256xf32>
    %cst_228 = arith.constant 4.471500e-02 : f32
    %631 = vector.broadcast %cst_228 : f32 to vector<4x256xf32>
    %632 = arith.mulf %631, %630 : vector<4x256xf32>
    %633 = arith.addf %626, %632 : vector<4x256xf32>
    %cst_229 = arith.constant 0.797884583 : f32
    %634 = vector.broadcast %cst_229 : f32 to vector<4x256xf32>
    %635 = arith.mulf %634, %633 : vector<4x256xf32>
    %636 = math.tanh %635 : vector<4x256xf32>
    %cst_230 = arith.constant 1.000000e+00 : f32
    %637 = vector.broadcast %cst_230 : f32 to vector<4x256xf32>
    %638 = arith.addf %637, %636 : vector<4x256xf32>
    %639 = arith.mulf %628, %638 : vector<4x256xf32>
    %c1_231 = arith.constant 1 : index
    %c0_232 = arith.constant 0 : index
    %c0_233 = arith.constant 0 : index
    %640 = vector.load %arg16[%c1_231, %c0_232, %c0_233] : memref<2x256x128xbf16, #tpu.memory_space<vmem>>, vector<1x256x128xbf16>
    %641 = vector.shape_cast %640 : vector<1x256x128xbf16> to vector<256x128xbf16>
    %642 = arith.truncf %639 : vector<4x256xf32> to vector<4x256xbf16>
    %cst_234 = arith.constant dense<0.000000e+00> : vector<4x128xf32>
    %643 = tpu.matmul %642, %641, %cst_234 {dimension_numbers = #tpu.dot_dimension_numbers<[1], [0], [0], [1], [0, 0, 1, 1], [], []>} : vector<4x256xbf16>, vector<256x128xbf16>, vector<4x128xf32> -> vector<4x128xf32>
    %c1_235 = arith.constant 1 : index
    %c0_236 = arith.constant 0 : index
    %c0_237 = arith.constant 0 : index
    %644 = vector.load %arg17[%c1_235, %c0_236, %c0_237] : memref<2x1x128xf32, #tpu.memory_space<vmem>>, vector<1x1x128xf32>
    %645 = vector.shape_cast %644 : vector<1x1x128xf32> to vector<1x128xf32>
    %646 = vector.broadcast %645 : vector<1x128xf32> to vector<4x128xf32>
    %647 = arith.addf %643, %646 : vector<4x128xf32>
    %648 = arith.addf %618, %647 : vector<4x128xf32>
    %c1_238 = arith.constant 1 : index
    %c0_239 = arith.constant 0 : index
    %c0_240 = arith.constant 0 : index
    %649 = vector.load %arg20[%c1_238, %c0_239, %c0_240] : memref<2x1x128xf32, #tpu.memory_space<vmem>>, vector<1x1x128xf32>
    %650 = vector.shape_cast %649 : vector<1x1x128xf32> to vector<1x128xf32>
    %c1_241 = arith.constant 1 : index
    %c0_242 = arith.constant 0 : index
    %c0_243 = arith.constant 0 : index
    %651 = vector.load %arg21[%c1_241, %c0_242, %c0_243] : memref<2x1x128xf32, #tpu.memory_space<vmem>>, vector<1x1x128xf32>
    %652 = vector.shape_cast %651 : vector<1x1x128xf32> to vector<1x128xf32>
    %cst_244 = arith.constant dense<0.000000e+00> : vector<4xf32>
    %653 = vector.multi_reduction <add>, %648, %cst_244 [1] : vector<4x128xf32> to vector<4xf32>
    %654 = vector.shape_cast %653 : vector<4xf32> to vector<4x1xf32>
    %cst_245 = arith.constant 1.280000e+02 : f32
    %655 = vector.broadcast %cst_245 : f32 to vector<4x1xf32>
    %656 = arith.divf %654, %655 : vector<4x1xf32>
    %657 = vector.broadcast %656 : vector<4x1xf32> to vector<4x128xf32>
    %658 = arith.subf %648, %657 : vector<4x128xf32>
    %659 = arith.mulf %658, %658 : vector<4x128xf32>
    %cst_246 = arith.constant dense<0.000000e+00> : vector<4xf32>
    %660 = vector.multi_reduction <add>, %659, %cst_246 [1] : vector<4x128xf32> to vector<4xf32>
    %661 = vector.shape_cast %660 : vector<4xf32> to vector<4x1xf32>
    %cst_247 = arith.constant 1.280000e+02 : f32
    %662 = vector.broadcast %cst_247 : f32 to vector<4x1xf32>
    %663 = arith.divf %661, %662 : vector<4x1xf32>
    %cst_248 = arith.constant 9.99999974E-6 : f32
    %664 = vector.broadcast %cst_248 : f32 to vector<4x1xf32>
    %665 = arith.addf %663, %664 : vector<4x1xf32>
    %666 = math.rsqrt %665 : vector<4x1xf32>
    %667 = vector.broadcast %666 : vector<4x1xf32> to vector<4x128xf32>
    %668 = arith.mulf %658, %667 : vector<4x128xf32>
    %669 = vector.broadcast %650 : vector<1x128xf32> to vector<4x128xf32>
    %670 = arith.mulf %668, %669 : vector<4x128xf32>
    %671 = vector.broadcast %652 : vector<1x128xf32> to vector<4x128xf32>
    %672 = arith.addf %670, %671 : vector<4x128xf32>
    %673 = vector.extract_strided_slice %672 {offsets = [0, 0], sizes = [2, 128], strides = [1, 1]} : vector<4x128xf32> to vector<2x128xf32>
    %c0_249 = arith.constant 0 : index
    %c0_250 = arith.constant 0 : index
    %674 = vector.load %arg22[%c0_249, %c0_250] : memref<128x128xbf16, #tpu.memory_space<vmem>>, vector<128x128xbf16>
    %675 = arith.truncf %673 : vector<2x128xf32> to vector<2x128xbf16>
    %cst_251 = arith.constant dense<0.000000e+00> : vector<2x128xf32>
    %676 = tpu.matmul %675, %674, %cst_251 {dimension_numbers = #tpu.dot_dimension_numbers<[1], [0], [0], [1], [0, 0, 1, 1], [], []>} : vector<2x128xbf16>, vector<128x128xbf16>, vector<2x128xf32> -> vector<2x128xf32>
    %c0_252 = arith.constant 0 : index
    %c0_253 = arith.constant 0 : index
    %677 = vector.load %arg23[%c0_252, %c0_253] : memref<1x128xf32, #tpu.memory_space<vmem>>, vector<1x128xf32>
    %678 = vector.broadcast %677 : vector<1x128xf32> to vector<2x128xf32>
    %679 = arith.addf %676, %678 : vector<2x128xf32>
    %c0_254 = arith.constant 0 : index
    %c0_255 = arith.constant 0 : index
    %680 = vector.load %arg24[%c0_254, %c0_255] : memref<2x128xf32, #tpu.memory_space<vmem>>, vector<2x128xf32>
    tpu.vector_store %arg24[%c0_254, %c0_255], %679 {strides = array<i32>} : memref<2x128xf32, #tpu.memory_space<vmem>>, vector<2x128xf32>,
    return
  }
  func.func @transform_0(%arg0: i32) -> (i32, i32) {
    %c0_i32 = arith.constant 0 : i32
    %c0_i32_0 = arith.constant 0 : i32
    return %arg0, %c0_i32 : i32, i32
  }
  func.func @transform_1(%arg0: i32) -> (i32, i32) {
    %c0_i32 = arith.constant 0 : i32
    %c0_i32_0 = arith.constant 0 : i32
    %c0_i32_1 = arith.constant 0 : i32
    return %c0_i32, %c0_i32_0 : i32, i32
  }
  func.func @transform_2(%arg0: i32) -> (i32, i32) {
    %c0_i32 = arith.constant 0 : i32
    %c0_i32_0 = arith.constant 0 : i32
    %c0_i32_1 = arith.constant 0 : i32
    return %c0_i32, %c0_i32_0 : i32, i32
  }
  func.func @transform_3(%arg0: i32) -> (i32, i32) {
    %c0_i32 = arith.constant 0 : i32
    %c0_i32_0 = arith.constant 0 : i32
    %c0_i32_1 = arith.constant 0 : i32
    return %c0_i32, %c0_i32_0 : i32, i32
  }
  func.func @transform_4(%arg0: i32) -> (i32, i32) {
    %c0_i32 = arith.constant 0 : i32
    %c0_i32_0 = arith.constant 0 : i32
    %c0_i32_1 = arith.constant 0 : i32
    return %c0_i32, %c0_i32_0 : i32, i32
  }
  func.func @transform_5(%arg0: i32) -> (i32, i32) {
    %c0_i32 = arith.constant 0 : i32
    %c0_i32_0 = arith.constant 0 : i32
    %c0_i32_1 = arith.constant 0 : i32
    return %c0_i32, %c0_i32_0 : i32, i32
  }
  func.func @transform_6(%arg0: i32) -> (i32, i32) {
    %c0_i32 = arith.constant 0 : i32
    %c0_i32_0 = arith.constant 0 : i32
    %c0_i32_1 = arith.constant 0 : i32
    return %c0_i32, %c0_i32_0 : i32, i32
  }
  func.func @transform_7(%arg0: i32) -> (i32, i32) {
    %c0_i32 = arith.constant 0 : i32
    %c0_i32_0 = arith.constant 0 : i32
    %c0_i32_1 = arith.constant 0 : i32
    return %c0_i32, %c0_i32_0 : i32, i32
  }
  func.func @transform_8(%arg0: i32) -> (i32, i32) {
    %c0_i32 = arith.constant 0 : i32
    %c0_i32_0 = arith.constant 0 : i32
    %c0_i32_1 = arith.constant 0 : i32
    return %c0_i32, %c0_i32_0 : i32, i32
  }
  func.func @transform_9(%arg0: i32) -> (i32, i32, i32) {
    %c0_i32 = arith.constant 0 : i32
    %c0_i32_0 = arith.constant 0 : i32
    %c0_i32_1 = arith.constant 0 : i32
    %c0_i32_2 = arith.constant 0 : i32
    return %c0_i32, %c0_i32_0, %c0_i32_1 : i32, i32, i32
  }
  func.func @transform_10(%arg0: i32) -> (i32, i32, i32) {
    %c0_i32 = arith.constant 0 : i32
    %c0_i32_0 = arith.constant 0 : i32
    %c0_i32_1 = arith.constant 0 : i32
    %c0_i32_2 = arith.constant 0 : i32
    return %c0_i32, %c0_i32_0, %c0_i32_1 : i32, i32, i32
  }
  func.func @transform_11(%arg0: i32) -> (i32, i32, i32) {
    %c0_i32 = arith.constant 0 : i32
    %c0_i32_0 = arith.constant 0 : i32
    %c0_i32_1 = arith.constant 0 : i32
    %c0_i32_2 = arith.constant 0 : i32
    return %c0_i32, %c0_i32_0, %c0_i32_1 : i32, i32, i32
  }
  func.func @transform_12(%arg0: i32) -> (i32, i32, i32) {
    %c0_i32 = arith.constant 0 : i32
    %c0_i32_0 = arith.constant 0 : i32
    %c0_i32_1 = arith.constant 0 : i32
    %c0_i32_2 = arith.constant 0 : i32
    return %c0_i32, %c0_i32_0, %c0_i32_1 : i32, i32, i32
  }
  func.func @transform_13(%arg0: i32) -> (i32, i32, i32) {
    %c0_i32 = arith.constant 0 : i32
    %c0_i32_0 = arith.constant 0 : i32
    %c0_i32_1 = arith.constant 0 : i32
    %c0_i32_2 = arith.constant 0 : i32
    return %c0_i32, %c0_i32_0, %c0_i32_1 : i32, i32, i32
  }
  func.func @transform_14(%arg0: i32) -> (i32, i32, i32) {
    %c0_i32 = arith.constant 0 : i32
    %c0_i32_0 = arith.constant 0 : i32
    %c0_i32_1 = arith.constant 0 : i32
    %c0_i32_2 = arith.constant 0 : i32
    return %c0_i32, %c0_i32_0, %c0_i32_1 : i32, i32, i32
  }
  func.func @transform_15(%arg0: i32) -> (i32, i32, i32) {
    %c0_i32 = arith.constant 0 : i32
    %c0_i32_0 = arith.constant 0 : i32
    %c0_i32_1 = arith.constant 0 : i32
    %c0_i32_2 = arith.constant 0 : i32
    return %c0_i32, %c0_i32_0, %c0_i32_1 : i32, i32, i32
  }
  func.func @transform_16(%arg0: i32) -> (i32, i32, i32) {
    %c0_i32 = arith.constant 0 : i32
    %c0_i32_0 = arith.constant 0 : i32
    %c0_i32_1 = arith.constant 0 : i32
    %c0_i32_2 = arith.constant 0 : i32
    return %c0_i32, %c0_i32_0, %c0_i32_1 : i32, i32, i32
  }
  func.func @transform_17(%arg0: i32) -> (i32, i32, i32) {
    %c0_i32 = arith.constant 0 : i32
    %c0_i32_0 = arith.constant 0 : i32
    %c0_i32_1 = arith.constant 0 : i32
    %c0_i32_2 = arith.constant 0 : i32
    return %c0_i32, %c0_i32_0, %c0_i32_1 : i32, i32, i32
  }
  func.func @transform_18(%arg0: i32) -> (i32, i32, i32) {
    %c0_i32 = arith.constant 0 : i32
    %c0_i32_0 = arith.constant 0 : i32
    %c0_i32_1 = arith.constant 0 : i32
    %c0_i32_2 = arith.constant 0 : i32
    return %c0_i32, %c0_i32_0, %c0_i32_1 : i32, i32, i32
  }
  func.func @transform_19(%arg0: i32) -> (i32, i32, i32) {
    %c0_i32 = arith.constant 0 : i32
    %c0_i32_0 = arith.constant 0 : i32
    %c0_i32_1 = arith.constant 0 : i32
    %c0_i32_2 = arith.constant 0 : i32
    return %c0_i32, %c0_i32_0, %c0_i32_1 : i32, i32, i32
  }
  func.func @transform_20(%arg0: i32) -> (i32, i32, i32) {
    %c0_i32 = arith.constant 0 : i32
    %c0_i32_0 = arith.constant 0 : i32
    %c0_i32_1 = arith.constant 0 : i32
    %c0_i32_2 = arith.constant 0 : i32
    return %c0_i32, %c0_i32_0, %c0_i32_1 : i32, i32, i32
  }
  func.func @transform_21(%arg0: i32) -> (i32, i32) {
    %c0_i32 = arith.constant 0 : i32
    %c0_i32_0 = arith.constant 0 : i32
    %c0_i32_1 = arith.constant 0 : i32
    return %c0_i32, %c0_i32_0 : i32, i32
  }
  func.func @transform_22(%arg0: i32) -> (i32, i32) {
    %c0_i32 = arith.constant 0 : i32
    %c0_i32_0 = arith.constant 0 : i32
    %c0_i32_1 = arith.constant 0 : i32
    return %c0_i32, %c0_i32_0 : i32, i32
  }
  func.func @transform_23(%arg0: i32) -> (i32, i32) {
    %c0_i32 = arith.constant 0 : i32
    %c0_i32_0 = arith.constant 0 : i32
    return %arg0, %c0_i32 : i32, i32
  }
}

</mosaic_0001>

<llo_original>
// kernel: meta_transformer_forward.1
$region0: #{meta_transformer_forward.1}
  #allocation0 [shape = 'u32[]', space=smem, size = 0x4, offset = 0x4, fixed_abs, tag = 'smem constant byte address 0x4 - core index']
  #allocation1 [shape = 'u32[72,128]{1,0:T(1,128)}', space=vmem, size = 0x9000, scoped, tag = 'internal scratch']
  %s0 = inlined_call_operand.vmem [shape: f32[2,1024], index: 0, kind: input, shape index: {}]
  %s1 = inlined_call_operand.vmem [shape: bf16[1024,64], index: 1, kind: input, shape index: {}]
  %s2 = inlined_call_operand.hbm [shape: f32[1,64], index: 2, kind: input, shape index: {}]
  %s3 = inlined_call_operand.hbm [shape: bf16[64,128], index: 3, kind: input, shape index: {}]
  %s4 = inlined_call_operand.hbm [shape: f32[1,128], index: 4, kind: input, shape index: {}]
  %s5 = inlined_call_operand.hbm [shape: bf16[64,128], index: 5, kind: input, shape index: {}]
  %s6 = inlined_call_operand.hbm [shape: f32[1,128], index: 6, kind: input, shape index: {}]
  %s7 = inlined_call_operand.hbm [shape: bf16[128,128], index: 7, kind: input, shape index: {}]
  %s8 = inlined_call_operand.hbm [shape: f32[1,128], index: 8, kind: input, shape index: {}]
  %s9 = inlined_call_operand.vmem [shape: bf16[2,128,384], index: 9, kind: input, shape index: {}]
  %s10 = inlined_call_operand.vmem [shape: f32[2,1,384], index: 10, kind: input, shape index: {}]
  %s11 = inlined_call_operand.hbm [shape: bf16[2,128,128], index: 11, kind: input, shape index: {}]
  %s12 = inlined_call_operand.vmem [shape: f32[2,1,128], index: 12, kind: input, shape index: {}]
  %s13 = inlined_call_operand.vmem [shape: bf16[2,128,256], index: 13, kind: input, shape index: {}]
  %s14 = inlined_call_operand.vmem [shape: f32[2,1,256], index: 14, kind: input, shape index: {}]
  %s15 = inlined_call_operand.vmem [shape: bf16[2,256,128], index: 15, kind: input, shape index: {}]
  %s16 = inlined_call_operand.vmem [shape: f32[2,1,128], index: 16, kind: input, shape index: {}]
  %s17 = inlined_call_operand.vmem [shape: f32[2,1,128], index: 17, kind: input, shape index: {}]
  %s18 = inlined_call_operand.vmem [shape: f32[2,1,128], index: 18, kind: input, shape index: {}]
  %s19 = inlined_call_operand.vmem [shape: f32[2,1,128], index: 19, kind: input, shape index: {}]
  %s20 = inlined_call_operand.vmem [shape: f32[2,1,128], index: 20, kind: input, shape index: {}]
  %s21 = inlined_call_operand.hbm [shape: bf16[128,128], index: 21, kind: input, shape index: {}]
  %s22 = inlined_call_operand.vmem [shape: f32[1,128], index: 22, kind: input, shape index: {}]
  %s23 = inlined_call_operand.hbm [shape: f32[2,128], index: 23, kind: output, shape index: {}]
  %s24 = sld [smem:[#allocation0]]
  $region138: #{meta_transformer_forward.1} parent=0
    _
  %s26 = ssub.s32 1, %s24
  %s27 = scalar_select 0, %s26, %s24
  $region1: #{meta_transformer_forward.1} parent=0
    #allocation2 [shape = 'u8[512]{0}', space=vmem, size = 0x400, scoped, tag = 'input window, operand 2, single buffered']
    #allocation3 [shape = 's32[1]{0}', space=sflag, size = 0x4, scoped, tag = 'scoped memory for meta_transformer_forward.1']
    #allocation4 [shape = 's32[1]{0}', space=sflag, size = 0x4, scoped, tag = 'scoped memory for meta_transformer_forward.1']
    #allocation5 [shape = 'u8[16384]{0}', space=vmem, size = 0x4000, scoped, tag = 'input window, operand 3, single buffered']
    #allocation6 [shape = 's32[1]{0}', space=sflag, size = 0x4, scoped, tag = 'scoped memory for meta_transformer_forward.1']
    #allocation7 [shape = 'u8[512]{0}', space=vmem, size = 0x400, scoped, tag = 'input window, operand 4, single buffered']
    #allocation8 [shape = 'u8[16384]{0}', space=vmem, size = 0x4000, scoped, tag = 'input window, operand 5, single buffered']
    #allocation9 [shape = 's32[1]{0}', space=sflag, size = 0x4, scoped, tag = 'scoped memory for meta_transformer_forward.1']
    #allocation10 [shape = 'u8[512]{0}', space=vmem, size = 0x400, scoped, tag = 'input window, operand 6, single buffered']
    #allocation11 [shape = 'u8[32768]{0}', space=vmem, size = 0x8000, scoped, tag = 'input window, operand 7, single buffered']
    #allocation12 [shape = 's32[1]{0}', space=sflag, size = 0x4, scoped, tag = 'scoped memory for meta_transformer_forward.1']
    #allocation13 [shape = 'u8[512]{0}', space=vmem, size = 0x400, scoped, tag = 'input window, operand 8, single buffered']
    #allocation14 [shape = 'u8[65536]{0}', space=vmem, size = 0x10000, scoped, tag = 'input window, operand 11, single buffered']
    #allocation15 [shape = 's32[1]{0}', space=sflag, size = 0x4, scoped, tag = 'scoped memory for meta_transformer_forward.1']
    #allocation16 [shape = 'u8[32768]{0}', space=vmem, size = 0x8000, scoped, tag = 'input window, operand 21, single buffered']
    #allocation17 [shape = 'u8[1024]{0}', space=vmem, size = 0x400, scoped, tag = 'output window, operand 0, single buffered']
    %28 = vsyncpa [#allocation3], 0
    %29 = vsyncpa [#allocation6], 0
    %30 = vsyncpa [#allocation9], 0
    %31 = vsyncpa [#allocation12], 0
    %32 = vsyncpa [#allocation15], 0
    %33 = vsyncpa [#allocation4], 0
    // Predicated region
    $region2: #{meta_transformer_forward.1} parent=1 // pred_check
      _
    $region3: #{meta_transformer_forward.1} parent=1 // pred_check_branch
      %35 = sbr.rel (0) target = $region5
    $region4: #{meta_transformer_forward.1} parent=1 // pred_region
      _
    $region5: #{meta_transformer_forward.1} parent=1 // pred_fallthru
      _
    // Predicated region
    $region6: #{meta_transformer_forward.1} parent=1 // pred_check
      _
    $region7: #{meta_transformer_forward.1} parent=1 // pred_check_branch
      %37 = sbr.rel (0) target = $region9
    $region8: #{meta_transformer_forward.1} parent=1 // pred_region
      _
    $region9: #{meta_transformer_forward.1} parent=1 // pred_fallthru
      _
    // Predicated region
    $region10: #{meta_transformer_forward.1} parent=1 // pred_check
      _
    $region11: #{meta_transformer_forward.1} parent=1 // pred_check_branch
      %39 = sbr.rel (0) target = $region13
    $region12: #{meta_transformer_forward.1} parent=1 // pred_region
      %41 = vsyncadd [#allocation3], 0
      %s43 = sshll.u32 %s2, 4
      %s44 = int_to_ptr.hbm [resolvable:$true] %s43
      %s45 = sshll.u32 [#allocation2], 4
      %s46 = int_to_ptr.vmem [resolvable:$true] %s45
      %48 = dma.hbm_to_vmem [thread:$0]  %s44, 16, %s46, [#allocation3]
    $region13: #{meta_transformer_forward.1} parent=1 // pred_fallthru
      _
    // Predicated region
    $region14: #{meta_transformer_forward.1} parent=1 // pred_check
      _
    $region15: #{meta_transformer_forward.1} parent=1 // pred_check_branch
      %50 = sbr.rel (0) target = $region17
    $region16: #{meta_transformer_forward.1} parent=1 // pred_region
      %52 = vsyncadd [#allocation6], 0
      %s53 = sshll.u32 %s3, 4
      %s54 = int_to_ptr.hbm [resolvable:$true] %s53
      %s55 = sshll.u32 [#allocation5], 4
      %s56 = int_to_ptr.vmem [resolvable:$true] %s55
      %61 = dma.hbm_to_vmem [thread:$0]  %s54, 512, %s56, [#allocation6], 64, 64, 4
    $region17: #{meta_transformer_forward.1} parent=1 // pred_fallthru
      _
    // Predicated region
    $region18: #{meta_transformer_forward.1} parent=1 // pred_check
      _
    $region19: #{meta_transformer_forward.1} parent=1 // pred_check_branch
      %63 = sbr.rel (0) target = $region21
    $region20: #{meta_transformer_forward.1} parent=1 // pred_region
      %65 = vsyncadd [#allocation6], 0
      %s67 = sshll.u32 %s4, 4
      %s68 = int_to_ptr.hbm [resolvable:$true] %s67
      %s69 = sshll.u32 [#allocation7], 4
      %s70 = int_to_ptr.vmem [resolvable:$true] %s69
      %72 = dma.hbm_to_vmem [thread:$0]  %s68, 16, %s70, [#allocation6]
    $region21: #{meta_transformer_forward.1} parent=1 // pred_fallthru
      _
    // Predicated region
    $region22: #{meta_transformer_forward.1} parent=1 // pred_check
      _
    $region23: #{meta_transformer_forward.1} parent=1 // pred_check_branch
      %74 = sbr.rel (0) target = $region25
    $region24: #{meta_transformer_forward.1} parent=1 // pred_region
      %76 = vsyncadd [#allocation9], 0
      %s77 = sshll.u32 %s5, 4
      %s78 = int_to_ptr.hbm [resolvable:$true] %s77
      %s79 = sshll.u32 [#allocation8], 4
      %s80 = int_to_ptr.vmem [resolvable:$true] %s79
      %85 = dma.hbm_to_vmem [thread:$0]  %s78, 512, %s80, [#allocation9], 64, 64, 4
    $region25: #{meta_transformer_forward.1} parent=1 // pred_fallthru
      _
    // Predicated region
    $region26: #{meta_transformer_forward.1} parent=1 // pred_check
      _
    $region27: #{meta_transformer_forward.1} parent=1 // pred_check_branch
      %87 = sbr.rel (0) target = $region29
    $region28: #{meta_transformer_forward.1} parent=1 // pred_region
      %89 = vsyncadd [#allocation9], 0
      %s91 = sshll.u32 %s6, 4
      %s92 = int_to_ptr.hbm [resolvable:$true] %s91
      %s93 = sshll.u32 [#allocation10], 4
      %s94 = int_to_ptr.vmem [resolvable:$true] %s93
      %96 = dma.hbm_to_vmem [thread:$0]  %s92, 16, %s94, [#allocation9]
    $region29: #{meta_transformer_forward.1} parent=1 // pred_fallthru
      _
    // Predicated region
    $region30: #{meta_transformer_forward.1} parent=1 // pred_check
      _
    $region31: #{meta_transformer_forward.1} parent=1 // pred_check_branch
      %98 = sbr.rel (0) target = $region33
    $region32: #{meta_transformer_forward.1} parent=1 // pred_region
      %100 = vsyncadd [#allocation12], 0
      %s101 = sshll.u32 %s7, 4
      %s102 = int_to_ptr.hbm [resolvable:$true] %s101
      %s103 = sshll.u32 [#allocation11], 4
      %s104 = int_to_ptr.vmem [resolvable:$true] %s103
      %109 = dma.hbm_to_vmem [thread:$0]  %s102, 1024, %s104, [#allocation12], 64, 64, 4
    $region33: #{meta_transformer_forward.1} parent=1 // pred_fallthru
      _
    // Predicated region
    $region34: #{meta_transformer_forward.1} parent=1 // pred_check
      _
    $region35: #{meta_transformer_forward.1} parent=1 // pred_check_branch
      %111 = sbr.rel (0) target = $region37
    $region36: #{meta_transformer_forward.1} parent=1 // pred_region
      %113 = vsyncadd [#allocation12], 0
      %s115 = sshll.u32 %s8, 4
      %s116 = int_to_ptr.hbm [resolvable:$true] %s115
      %s117 = sshll.u32 [#allocation13], 4
      %s118 = int_to_ptr.vmem [resolvable:$true] %s117
      %120 = dma.hbm_to_vmem [thread:$0]  %s116, 16, %s118, [#allocation12]
    $region37: #{meta_transformer_forward.1} parent=1 // pred_fallthru
      _
    // Predicated region
    $region38: #{meta_transformer_forward.1} parent=1 // pred_check
      _
    $region39: #{meta_transformer_forward.1} parent=1 // pred_check_branch
      %122 = sbr.rel (0) target = $region41
    $region40: #{meta_transformer_forward.1} parent=1 // pred_region
      _
    $region41: #{meta_transformer_forward.1} parent=1 // pred_fallthru
      _
    // Predicated region
    $region42: #{meta_transformer_forward.1} parent=1 // pred_check
      _
    $region43: #{meta_transformer_forward.1} parent=1 // pred_check_branch
      %124 = sbr.rel (0) target = $region45
    $region44: #{meta_transformer_forward.1} parent=1 // pred_region
      _
    $region45: #{meta_transformer_forward.1} parent=1 // pred_fallthru
      _
    // Predicated region
    $region46: #{meta_transformer_forward.1} parent=1 // pred_check
      _
    $region47: #{meta_transformer_forward.1} parent=1 // pred_check_branch
      %126 = sbr.rel (0) target = $region49
    $region48: #{meta_transformer_forward.1} parent=1 // pred_region
      %128 = vsyncadd [#allocation15], 0
      %s129 = sshll.u32 %s11, 4
      %s130 = int_to_ptr.hbm [resolvable:$true] %s129
      %s131 = sshll.u32 [#allocation14], 4
      %s132 = int_to_ptr.vmem [resolvable:$true] %s131
      %137 = dma.hbm_to_vmem [thread:$0]  %s130, 2048, %s132, [#allocation15], 64, 64, 4
    $region49: #{meta_transformer_forward.1} parent=1 // pred_fallthru
      _
    // Predicated region
    $region50: #{meta_transformer_forward.1} parent=1 // pred_check
      _
    $region51: #{meta_transformer_forward.1} parent=1 // pred_check_branch
      %139 = sbr.rel (0) target = $region53
    $region52: #{meta_transformer_forward.1} parent=1 // pred_region
      _
    $region53: #{meta_transformer_forward.1} parent=1 // pred_fallthru
      _
    // Predicated region
    $region54: #{meta_transformer_forward.1} parent=1 // pred_check
      _
    $region55: #{meta_transformer_forward.1} parent=1 // pred_check_branch
      %141 = sbr.rel (0) target = $region57
    $region56: #{meta_transformer_forward.1} parent=1 // pred_region
      _
    $region57: #{meta_transformer_forward.1} parent=1 // pred_fallthru
      _
    // Predicated region
    $region58: #{meta_transformer_forward.1} parent=1 // pred_check
      _
    $region59: #{meta_transformer_forward.1} parent=1 // pred_check_branch
      %143 = sbr.rel (0) target = $region61
    $region60: #{meta_transformer_forward.1} parent=1 // pred_region
      _
    $region61: #{meta_transformer_forward.1} parent=1 // pred_fallthru
      _
    // Predicated region
    $region62: #{meta_transformer_forward.1} parent=1 // pred_check
      _
    $region63: #{meta_transformer_forward.1} parent=1 // pred_check_branch
      %145 = sbr.rel (0) target = $region65
    $region64: #{meta_transformer_forward.1} parent=1 // pred_region
      _
    $region65: #{meta_transformer_forward.1} parent=1 // pred_fallthru
      _
    // Predicated region
    $region66: #{meta_transformer_forward.1} parent=1 // pred_check
      _
    $region67: #{meta_transformer_forward.1} parent=1 // pred_check_branch
      %147 = sbr.rel (0) target = $region69
    $region68: #{meta_transformer_forward.1} parent=1 // pred_region
      _
    $region69: #{meta_transformer_forward.1} parent=1 // pred_fallthru
      _
    // Predicated region
    $region70: #{meta_transformer_forward.1} parent=1 // pred_check
      _
    $region71: #{meta_transformer_forward.1} parent=1 // pred_check_branch
      %149 = sbr.rel (0) target = $region73
    $region72: #{meta_transformer_forward.1} parent=1 // pred_region
      _
    $region73: #{meta_transformer_forward.1} parent=1 // pred_fallthru
      _
    // Predicated region
    $region74: #{meta_transformer_forward.1} parent=1 // pred_check
      _
    $region75: #{meta_transformer_forward.1} parent=1 // pred_check_branch
      %151 = sbr.rel (0) target = $region77
    $region76: #{meta_transformer_forward.1} parent=1 // pred_region
      _
    $region77: #{meta_transformer_forward.1} parent=1 // pred_fallthru
      _
    // Predicated region
    $region78: #{meta_transformer_forward.1} parent=1 // pred_check
      _
    $region79: #{meta_transformer_forward.1} parent=1 // pred_check_branch
      %153 = sbr.rel (0) target = $region81
    $region80: #{meta_transformer_forward.1} parent=1 // pred_region
      _
    $region81: #{meta_transformer_forward.1} parent=1 // pred_fallthru
      _
    // Predicated region
    $region82: #{meta_transformer_forward.1} parent=1 // pred_check
      _
    $region83: #{meta_transformer_forward.1} parent=1 // pred_check_branch
      %155 = sbr.rel (0) target = $region85
    $region84: #{meta_transformer_forward.1} parent=1 // pred_region
      _
    $region85: #{meta_transformer_forward.1} parent=1 // pred_fallthru
      _
    // Predicated region
    $region86: #{meta_transformer_forward.1} parent=1 // pred_check
      _
    $region87: #{meta_transformer_forward.1} parent=1 // pred_check_branch
      %157 = sbr.rel (0) target = $region89
    $region88: #{meta_transformer_forward.1} parent=1 // pred_region
      %159 = vsyncadd [#allocation15], 0
      %s160 = sshll.u32 %s21, 4
      %s161 = int_to_ptr.hbm [resolvable:$true] %s160
      %s162 = sshll.u32 [#allocation16], 4
      %s163 = int_to_ptr.vmem [resolvable:$true] %s162
      %168 = dma.hbm_to_vmem [thread:$0]  %s161, 1024, %s163, [#allocation15], 64, 64, 4
    $region89: #{meta_transformer_forward.1} parent=1 // pred_fallthru
      _
    // Predicated region
    $region90: #{meta_transformer_forward.1} parent=1 // pred_check
      _
    $region91: #{meta_transformer_forward.1} parent=1 // pred_check_branch
      %170 = sbr.rel (0) target = $region93
    $region92: #{meta_transformer_forward.1} parent=1 // pred_region
      _
    $region93: #{meta_transformer_forward.1} parent=1 // pred_fallthru
      _
    // Predicated region
    $region94: #{meta_transformer_forward.1} parent=1 // pred_check
      _
    $region95: #{meta_transformer_forward.1} parent=1 // pred_check_branch
      %172 = sbr.rel (0) target = $region97
    $region96: #{meta_transformer_forward.1} parent=1 // pred_region
      %174 = dma.done [#allocation3], 16
    $region97: #{meta_transformer_forward.1} parent=1 // pred_fallthru
      _
    // Predicated region
    $region98: #{meta_transformer_forward.1} parent=1 // pred_check
      _
    $region99: #{meta_transformer_forward.1} parent=1 // pred_check_branch
      %176 = sbr.rel (0) target = $region101
    $region100: #{meta_transformer_forward.1} parent=1 // pred_region
      %178 = dma.done [#allocation6], 512
    $region101: #{meta_transformer_forward.1} parent=1 // pred_fallthru
      _
    // Predicated region
    $region102: #{meta_transformer_forward.1} parent=1 // pred_check
      _
    $region103: #{meta_transformer_forward.1} parent=1 // pred_check_branch
      %180 = sbr.rel (0) target = $region105
    $region104: #{meta_transformer_forward.1} parent=1 // pred_region
      %182 = dma.done [#allocation6], 16
    $region105: #{meta_transformer_forward.1} parent=1 // pred_fallthru
      _
    // Predicated region
    $region106: #{meta_transformer_forward.1} parent=1 // pred_check
      _
    $region107: #{meta_transformer_forward.1} parent=1 // pred_check_branch
      %184 = sbr.rel (0) target = $region109
    $region108: #{meta_transformer_forward.1} parent=1 // pred_region
      %186 = dma.done [#allocation9], 512
    $region109: #{meta_transformer_forward.1} parent=1 // pred_fallthru
      _
    // Predicated region
    $region110: #{meta_transformer_forward.1} parent=1 // pred_check
      _
    $region111: #{meta_transformer_forward.1} parent=1 // pred_check_branch
      %188 = sbr.rel (0) target = $region113
    $region112: #{meta_transformer_forward.1} parent=1 // pred_region
      %190 = dma.done [#allocation9], 16
    $region113: #{meta_transformer_forward.1} parent=1 // pred_fallthru
      _
    // Predicated region
    $region114: #{meta_transformer_forward.1} parent=1 // pred_check
      _
    $region115: #{meta_transformer_forward.1} parent=1 // pred_check_branch
      %192 = sbr.rel (0) target = $region117
    $region116: #{meta_transformer_forward.1} parent=1 // pred_region
      %194 = dma.done [#allocation12], 1024
    $region117: #{meta_transformer_forward.1} parent=1 // pred_fallthru
      _
    // Predicated region
    $region118: #{meta_transformer_forward.1} parent=1 // pred_check
      _
    $region119: #{meta_transformer_forward.1} parent=1 // pred_check_branch
      %196 = sbr.rel (0) target = $region121
    $region120: #{meta_transformer_forward.1} parent=1 // pred_region
      %198 = dma.done [#allocation12], 16
    $region121: #{meta_transformer_forward.1} parent=1 // pred_fallthru
      _
    // Predicated region
    $region122: #{meta_transformer_forward.1} parent=1 // pred_check
      _
    $region123: #{meta_transformer_forward.1} parent=1 // pred_check_branch
      %200 = sbr.rel (0) target = $region125
    $region124: #{meta_transformer_forward.1} parent=1 // pred_region
      %202 = dma.done [#allocation15], 2048
    $region125: #{meta_transformer_forward.1} parent=1 // pred_fallthru
      _
    // Predicated region
    $region126: #{meta_transformer_forward.1} parent=1 // pred_check
      _
    $region127: #{meta_transformer_forward.1} parent=1 // pred_check_branch
      %204 = sbr.rel (0) target = $region129
    $region128: #{meta_transformer_forward.1} parent=1 // pred_region
      %206 = dma.done [#allocation15], 1024
    $region129: #{meta_transformer_forward.1} parent=1 // pred_fallthru
      _
    %v208 = vld [vmem:[%s0] sm:$0xff]
    %v209 = vld [vmem:[%s0 + $0x8] sm:$0xff]
    %v210 = vld [vmem:[%s1] sm:$0xf]
    %v211 = vld [vmem:[%s1 + $0x4] sm:$0xf]
    %v212 = vld [vmem:[%s1 + $0x8] sm:$0xf]
    %v213 = vld [vmem:[%s1 + $0xc] sm:$0xf]
    %v214 = vld [vmem:[%s1 + $0x10] sm:$0xf]
    %v215 = vld [vmem:[%s1 + $0x14] sm:$0xf]
    %v216 = vld [vmem:[%s1 + $0x18] sm:$0xf]
    %v217 = vld [vmem:[%s1 + $0x1c] sm:$0xf]
    %v218 = vld [vmem:[%s1 + $0x20] sm:$0xf]
    %v219 = vld [vmem:[%s1 + $0x24] sm:$0xf]
    %v220 = vld [vmem:[%s1 + $0x28] sm:$0xf]
    %v221 = vld [vmem:[%s1 + $0x2c] sm:$0xf]
    %v222 = vld [vmem:[%s1 + $0x30] sm:$0xf]
    %v223 = vld [vmem:[%s1 + $0x34] sm:$0xf]
    %v224 = vld [vmem:[%s1 + $0x38] sm:$0xf]
    %v225 = vld [vmem:[%s1 + $0x3c] sm:$0xf]
    %v226 = vld [vmem:[%s1 + $0x40] sm:$0xf]
    %v227 = vld [vmem:[%s1 + $0x44] sm:$0xf]
    %v228 = vld [vmem:[%s1 + $0x48] sm:$0xf]
    %v229 = vld [vmem:[%s1 + $0x4c] sm:$0xf]
    %v230 = vld [vmem:[%s1 + $0x50] sm:$0xf]
    %v231 = vld [vmem:[%s1 + $0x54] sm:$0xf]
    %v232 = vld [vmem:[%s1 + $0x58] sm:$0xf]
    %v233 = vld [vmem:[%s1 + $0x5c] sm:$0xf]
    %v234 = vld [vmem:[%s1 + $0x60] sm:$0xf]
    %v235 = vld [vmem:[%s1 + $0x64] sm:$0xf]
    %v236 = vld [vmem:[%s1 + $0x68] sm:$0xf]
    %v237 = vld [vmem:[%s1 + $0x6c] sm:$0xf]
    %v238 = vld [vmem:[%s1 + $0x70] sm:$0xf]
    %v239 = vld [vmem:[%s1 + $0x74] sm:$0xf]
    %v240 = vld [vmem:[%s1 + $0x78] sm:$0xf]
    %v241 = vld [vmem:[%s1 + $0x7c] sm:$0xf]
    %v242 = vld [vmem:[%s1 + $0x80] sm:$0xf]
    %v243 = vld [vmem:[%s1 + $0x84] sm:$0xf]
    %v244 = vld [vmem:[%s1 + $0x88] sm:$0xf]
    %v245 = vld [vmem:[%s1 + $0x8c] sm:$0xf]
    %v246 = vld [vmem:[%s1 + $0x90] sm:$0xf]
    %v247 = vld [vmem:[%s1 + $0x94] sm:$0xf]
    %v248 = vld [vmem:[%s1 + $0x98] sm:$0xf]
    %v249 = vld [vmem:[%s1 + $0x9c] sm:$0xf]
    %v250 = vld [vmem:[%s1 + $0xa0] sm:$0xf]
    %v251 = vld [vmem:[%s1 + $0xa4] sm:$0xf]
    %v252 = vld [vmem:[%s1 + $0xa8] sm:$0xf]
    %v253 = vld [vmem:[%s1 + $0xac] sm:$0xf]
    %v254 = vld [vmem:[%s1 + $0xb0] sm:$0xf]
    %v255 = vld [vmem:[%s1 + $0xb4] sm:$0xf]
    %v256 = vld [vmem:[%s1 + $0xb8] sm:$0xf]
    %v257 = vld [vmem:[%s1 + $0xbc] sm:$0xf]
    %v258 = vld [vmem:[%s1 + $0xc0] sm:$0xf]
    %v259 = vld [vmem:[%s1 + $0xc4] sm:$0xf]
    %v260 = vld [vmem:[%s1 + $0xc8] sm:$0xf]
    %v261 = vld [vmem:[%s1 + $0xcc] sm:$0xf]
    %v262 = vld [vmem:[%s1 + $0xd0] sm:$0xf]
    %v263 = vld [vmem:[%s1 + $0xd4] sm:$0xf]
    %v264 = vld [vmem:[%s1 + $0xd8] sm:$0xf]
    %v265 = vld [vmem:[%s1 + $0xdc] sm:$0xf]
    %v266 = vld [vmem:[%s1 + $0xe0] sm:$0xf]
    %v267 = vld [vmem:[%s1 + $0xe4] sm:$0xf]
    %v268 = vld [vmem:[%s1 + $0xe8] sm:$0xf]
    %v269 = vld [vmem:[%s1 + $0xec] sm:$0xf]
    %v270 = vld [vmem:[%s1 + $0xf0] sm:$0xf]
    %v271 = vld [vmem:[%s1 + $0xf4] sm:$0xf]
    %v272 = vld [vmem:[%s1 + $0xf8] sm:$0xf]
    %v273 = vld [vmem:[%s1 + $0xfc] sm:$0xf]
    %v274 = vld [vmem:[%s1 + $0x100] sm:$0xf]
    %v275 = vld [vmem:[%s1 + $0x104] sm:$0xf]
    %v276 = vld [vmem:[%s1 + $0x108] sm:$0xf]
    %v277 = vld [vmem:[%s1 + $0x10c] sm:$0xf]
    %v278 = vld [vmem:[%s1 + $0x110] sm:$0xf]
    %v279 = vld [vmem:[%s1 + $0x114] sm:$0xf]
    %v280 = vld [vmem:[%s1 + $0x118] sm:$0xf]
    %v281 = vld [vmem:[%s1 + $0x11c] sm:$0xf]
    %v282 = vld [vmem:[%s1 + $0x120] sm:$0xf]
    %v283 = vld [vmem:[%s1 + $0x124] sm:$0xf]
    %v284 = vld [vmem:[%s1 + $0x128] sm:$0xf]
    %v285 = vld [vmem:[%s1 + $0x12c] sm:$0xf]
    %v286 = vld [vmem:[%s1 + $0x130] sm:$0xf]
    %v287 = vld [vmem:[%s1 + $0x134] sm:$0xf]
    %v288 = vld [vmem:[%s1 + $0x138] sm:$0xf]
    %v289 = vld [vmem:[%s1 + $0x13c] sm:$0xf]
    %v290 = vld [vmem:[%s1 + $0x140] sm:$0xf]
    %v291 = vld [vmem:[%s1 + $0x144] sm:$0xf]
    %v292 = vld [vmem:[%s1 + $0x148] sm:$0xf]
    %v293 = vld [vmem:[%s1 + $0x14c] sm:$0xf]
    %v294 = vld [vmem:[%s1 + $0x150] sm:$0xf]
    %v295 = vld [vmem:[%s1 + $0x154] sm:$0xf]
    %v296 = vld [vmem:[%s1 + $0x158] sm:$0xf]
    %v297 = vld [vmem:[%s1 + $0x15c] sm:$0xf]
    %v298 = vld [vmem:[%s1 + $0x160] sm:$0xf]
    %v299 = vld [vmem:[%s1 + $0x164] sm:$0xf]
    %v300 = vld [vmem:[%s1 + $0x168] sm:$0xf]
    %v301 = vld [vmem:[%s1 + $0x16c] sm:$0xf]
    %v302 = vld [vmem:[%s1 + $0x170] sm:$0xf]
    %v303 = vld [vmem:[%s1 + $0x174] sm:$0xf]
    %v304 = vld [vmem:[%s1 + $0x178] sm:$0xf]
    %v305 = vld [vmem:[%s1 + $0x17c] sm:$0xf]
    %v306 = vld [vmem:[%s1 + $0x180] sm:$0xf]
    %v307 = vld [vmem:[%s1 + $0x184] sm:$0xf]
    %v308 = vld [vmem:[%s1 + $0x188] sm:$0xf]
    %v309 = vld [vmem:[%s1 + $0x18c] sm:$0xf]
    %v310 = vld [vmem:[%s1 + $0x190] sm:$0xf]
    %v311 = vld [vmem:[%s1 + $0x194] sm:$0xf]
    %v312 = vld [vmem:[%s1 + $0x198] sm:$0xf]
    %v313 = vld [vmem:[%s1 + $0x19c] sm:$0xf]
    %v314 = vld [vmem:[%s1 + $0x1a0] sm:$0xf]
    %v315 = vld [vmem:[%s1 + $0x1a4] sm:$0xf]
    %v316 = vld [vmem:[%s1 + $0x1a8] sm:$0xf]
    %v317 = vld [vmem:[%s1 + $0x1ac] sm:$0xf]
    %v318 = vld [vmem:[%s1 + $0x1b0] sm:$0xf]
    %v319 = vld [vmem:[%s1 + $0x1b4] sm:$0xf]
    %v320 = vld [vmem:[%s1 + $0x1b8] sm:$0xf]
    %v321 = vld [vmem:[%s1 + $0x1bc] sm:$0xf]
    %v322 = vld [vmem:[%s1 + $0x1c0] sm:$0xf]
    %v323 = vld [vmem:[%s1 + $0x1c4] sm:$0xf]
    %v324 = vld [vmem:[%s1 + $0x1c8] sm:$0xf]
    %v325 = vld [vmem:[%s1 + $0x1cc] sm:$0xf]
    %v326 = vld [vmem:[%s1 + $0x1d0] sm:$0xf]
    %v327 = vld [vmem:[%s1 + $0x1d4] sm:$0xf]
    %v328 = vld [vmem:[%s1 + $0x1d8] sm:$0xf]
    %v329 = vld [vmem:[%s1 + $0x1dc] sm:$0xf]
    %v330 = vld [vmem:[%s1 + $0x1e0] sm:$0xf]
    %v331 = vld [vmem:[%s1 + $0x1e4] sm:$0xf]
    %v332 = vld [vmem:[%s1 + $0x1e8] sm:$0xf]
    %v333 = vld [vmem:[%s1 + $0x1ec] sm:$0xf]
    %v334 = vld [vmem:[%s1 + $0x1f0] sm:$0xf]
    %v335 = vld [vmem:[%s1 + $0x1f4] sm:$0xf]
    %v336 = vld [vmem:[%s1 + $0x1f8] sm:$0xf]
    %v337 = vld [vmem:[%s1 + $0x1fc] sm:$0xf]
    %340 = vst [vmem:[#allocation1] ss:$4 sm:$0xff] %v208
    %s341 = scalar_lea.vmem [#allocation1], 32
    %342 = vst [vmem:[%s341] ss:$4 sm:$0xff] %v209
    %v343 = vld.sshfl [vmem:[#allocation1] sm:$0xff pattern:$0x73625140]
    %v344 = vld.sshfl [vmem:[#allocation1 + $0x8] sm:$0xff pattern:$0x73625140]
    %v345 = vld.sshfl [vmem:[#allocation1 + $0x10] sm:$0xff pattern:$0x73625140]
    %v346 = vld.sshfl [vmem:[#allocation1 + $0x18] sm:$0xff pattern:$0x73625140]
    %v347 = vld.sshfl [vmem:[#allocation1 + $0x20] sm:$0xff pattern:$0x73625140]
    %v348 = vld.sshfl [vmem:[#allocation1 + $0x28] sm:$0xff pattern:$0x73625140]
    %v349 = vld.sshfl [vmem:[#allocation1 + $0x30] sm:$0xff pattern:$0x73625140]
    %v350 = vld.sshfl [vmem:[#allocation1 + $0x38] sm:$0xff pattern:$0x73625140]
    %v359 = vpack.c.bf16 %v343, %v343
    %v360 = vpack.c.bf16 %v344, %v344
    %v361 = vpack.c.bf16 %v345, %v345
    %v362 = vpack.c.bf16 %v346, %v346
    %v363 = vpack.c.bf16 %v347, %v347
    %v364 = vpack.c.bf16 %v348, %v348
    %v365 = vpack.c.bf16 %v349, %v349
    %v366 = vpack.c.bf16 %v350, %v350
    %v367 = vld [vmem:[#allocation2] sm:$0x1]
    %v369 = vperm.slane %v367, 0
    %v499 = vunpack.c.l.b16 %v210
    %v500 = vunpack.c.l.b16 %v211
    %v501 = vunpack.c.l.b16 %v212
    %v502 = vunpack.c.l.b16 %v213
    %v503 = vunpack.c.l.b16 %v214
    %v504 = vunpack.c.l.b16 %v215
    %v505 = vunpack.c.l.b16 %v216
    %v506 = vunpack.c.l.b16 %v217
    %v507 = vunpack.c.l.b16 %v218
    %v508 = vunpack.c.l.b16 %v219
    %v509 = vunpack.c.l.b16 %v220
    %v510 = vunpack.c.l.b16 %v221
    %v511 = vunpack.c.l.b16 %v222
    %v512 = vunpack.c.l.b16 %v223
    %v513 = vunpack.c.l.b16 %v224
    %v514 = vunpack.c.l.b16 %v225
    %v515 = vunpack.c.l.b16 %v226
    %v516 = vunpack.c.l.b16 %v227
    %v517 = vunpack.c.l.b16 %v228
    %v518 = vunpack.c.l.b16 %v229
    %v519 = vunpack.c.l.b16 %v230
    %v520 = vunpack.c.l.b16 %v231
    %v521 = vunpack.c.l.b16 %v232
    %v522 = vunpack.c.l.b16 %v233
    %v523 = vunpack.c.l.b16 %v234
    %v524 = vunpack.c.l.b16 %v235
    %v525 = vunpack.c.l.b16 %v236
    %v526 = vunpack.c.l.b16 %v237
    %v527 = vunpack.c.l.b16 %v238
    %v528 = vunpack.c.l.b16 %v239
    %v529 = vunpack.c.l.b16 %v240
    %v530 = vunpack.c.l.b16 %v241
    %v531 = vunpack.c.l.b16 %v242
    %v532 = vunpack.c.l.b16 %v243
    %v533 = vunpack.c.l.b16 %v244
    %v534 = vunpack.c.l.b16 %v245
    %v535 = vunpack.c.l.b16 %v246
    %v536 = vunpack.c.l.b16 %v247
    %v537 = vunpack.c.l.b16 %v248
    %v538 = vunpack.c.l.b16 %v249
    %v539 = vunpack.c.l.b16 %v250
    %v540 = vunpack.c.l.b16 %v251
    %v541 = vunpack.c.l.b16 %v252
    %v542 = vunpack.c.l.b16 %v253
    %v543 = vunpack.c.l.b16 %v254
    %v544 = vunpack.c.l.b16 %v255
    %v545 = vunpack.c.l.b16 %v256
    %v546 = vunpack.c.l.b16 %v257
    %v547 = vunpack.c.l.b16 %v258
    %v548 = vunpack.c.l.b16 %v259
    %v549 = vunpack.c.l.b16 %v260
    %v550 = vunpack.c.l.b16 %v261
    %v551 = vunpack.c.l.b16 %v262
    %v552 = vunpack.c.l.b16 %v263
    %v553 = vunpack.c.l.b16 %v264
    %v554 = vunpack.c.l.b16 %v265
    %v555 = vunpack.c.l.b16 %v266
    %v556 = vunpack.c.l.b16 %v267
    %v557 = vunpack.c.l.b16 %v268
    %v558 = vunpack.c.l.b16 %v269
    %v559 = vunpack.c.l.b16 %v270
    %v560 = vunpack.c.l.b16 %v271
    %v561 = vunpack.c.l.b16 %v272
    %v562 = vunpack.c.l.b16 %v273
    %v563 = vunpack.c.l.b16 %v274
    %v564 = vunpack.c.l.b16 %v275
    %v565 = vunpack.c.l.b16 %v276
    %v566 = vunpack.c.l.b16 %v277
    %v567 = vunpack.c.l.b16 %v278
    %v568 = vunpack.c.l.b16 %v279
    %v569 = vunpack.c.l.b16 %v280
    %v570 = vunpack.c.l.b16 %v281
    %v571 = vunpack.c.l.b16 %v282
    %v572 = vunpack.c.l.b16 %v283
    %v573 = vunpack.c.l.b16 %v284
    %v574 = vunpack.c.l.b16 %v285
    %v575 = vunpack.c.l.b16 %v286
    %v576 = vunpack.c.l.b16 %v287
    %v577 = vunpack.c.l.b16 %v288
    %v578 = vunpack.c.l.b16 %v289
    %v579 = vunpack.c.l.b16 %v290
    %v580 = vunpack.c.l.b16 %v291
    %v581 = vunpack.c.l.b16 %v292
    %v582 = vunpack.c.l.b16 %v293
    %v583 = vunpack.c.l.b16 %v294
    %v584 = vunpack.c.l.b16 %v295
    %v585 = vunpack.c.l.b16 %v296
    %v586 = vunpack.c.l.b16 %v297
    %v587 = vunpack.c.l.b16 %v298
    %v588 = vunpack.c.l.b16 %v299
    %v589 = vunpack.c.l.b16 %v300
    %v590 = vunpack.c.l.b16 %v301
    %v591 = vunpack.c.l.b16 %v302
    %v592 = vunpack.c.l.b16 %v303
    %v593 = vunpack.c.l.b16 %v304
    %v594 = vunpack.c.l.b16 %v305
    %v595 = vunpack.c.l.b16 %v306
    %v596 = vunpack.c.l.b16 %v307
    %v597 = vunpack.c.l.b16 %v308
    %v598 = vunpack.c.l.b16 %v309
    %v599 = vunpack.c.l.b16 %v310
    %v600 = vunpack.c.l.b16 %v311
    %v601 = vunpack.c.l.b16 %v312
    %v602 = vunpack.c.l.b16 %v313
    %v603 = vunpack.c.l.b16 %v314
    %v604 = vunpack.c.l.b16 %v315
    %v605 = vunpack.c.l.b16 %v316
    %v606 = vunpack.c.l.b16 %v317
    %v607 = vunpack.c.l.b16 %v318
    %v608 = vunpack.c.l.b16 %v319
    %v609 = vunpack.c.l.b16 %v320
    %v610 = vunpack.c.l.b16 %v321
    %v611 = vunpack.c.l.b16 %v322
    %v612 = vunpack.c.l.b16 %v323
    %v613 = vunpack.c.l.b16 %v324
    %v614 = vunpack.c.l.b16 %v325
    %v615 = vunpack.c.l.b16 %v326
    %v616 = vunpack.c.l.b16 %v327
    %v617 = vunpack.c.l.b16 %v328
    %v618 = vunpack.c.l.b16 %v329
    %v619 = vunpack.c.l.b16 %v330
    %v620 = vunpack.c.l.b16 %v331
    %v621 = vunpack.c.l.b16 %v332
    %v622 = vunpack.c.l.b16 %v333
    %v623 = vunpack.c.l.b16 %v334
    %v624 = vunpack.c.l.b16 %v335
    %v625 = vunpack.c.l.b16 %v336
    %v626 = vunpack.c.l.b16 %v337
    %v627 = vpack.c.b16 %v500, %v499
    %v628 = vpack.c.b16 %v502, %v501
    %v629 = vpack.c.b16 %v504, %v503
    %v630 = vpack.c.b16 %v506, %v505
    %v631 = vpack.c.b16 %v508, %v507
    %v632 = vpack.c.b16 %v510, %v509
    %v633 = vpack.c.b16 %v512, %v511
    %v634 = vpack.c.b16 %v514, %v513
    %v635 = vpack.c.b16 %v516, %v515
    %v636 = vpack.c.b16 %v518, %v517
    %v637 = vpack.c.b16 %v520, %v519
    %v638 = vpack.c.b16 %v522, %v521
    %v639 = vpack.c.b16 %v524, %v523
    %v640 = vpack.c.b16 %v526, %v525
    %v641 = vpack.c.b16 %v528, %v527
    %v642 = vpack.c.b16 %v530, %v529
    %v643 = vpack.c.b16 %v532, %v531
    %v644 = vpack.c.b16 %v534, %v533
    %v645 = vpack.c.b16 %v536, %v535
    %v646 = vpack.c.b16 %v538, %v537
    %v647 = vpack.c.b16 %v540, %v539
    %v648 = vpack.c.b16 %v542, %v541
    %v649 = vpack.c.b16 %v544, %v543
    %v650 = vpack.c.b16 %v546, %v545
    %v651 = vpack.c.b16 %v548, %v547
    %v652 = vpack.c.b16 %v550, %v549
    %v653 = vpack.c.b16 %v552, %v551
    %v654 = vpack.c.b16 %v554, %v553
    %v655 = vpack.c.b16 %v556, %v555
    %v656 = vpack.c.b16 %v558, %v557
    %v657 = vpack.c.b16 %v560, %v559
    %v658 = vpack.c.b16 %v562, %v561
    %v659 = vpack.c.b16 %v564, %v563
    %v660 = vpack.c.b16 %v566, %v565
    %v661 = vpack.c.b16 %v568, %v567
    %v662 = vpack.c.b16 %v570, %v569
    %v663 = vpack.c.b16 %v572, %v571
    %v664 = vpack.c.b16 %v574, %v573
    %v665 = vpack.c.b16 %v576, %v575
    %v666 = vpack.c.b16 %v578, %v577
    %v667 = vpack.c.b16 %v580, %v579
    %v668 = vpack.c.b16 %v582, %v581
    %v669 = vpack.c.b16 %v584, %v583
    %v670 = vpack.c.b16 %v586, %v585
    %v671 = vpack.c.b16 %v588, %v587
    %v672 = vpack.c.b16 %v590, %v589
    %v673 = vpack.c.b16 %v592, %v591
    %v674 = vpack.c.b16 %v594, %v593
    %v675 = vpack.c.b16 %v596, %v595
    %v676 = vpack.c.b16 %v598, %v597
    %v677 = vpack.c.b16 %v600, %v599
    %v678 = vpack.c.b16 %v602, %v601
    %v679 = vpack.c.b16 %v604, %v603
    %v680 = vpack.c.b16 %v606, %v605
    %v681 = vpack.c.b16 %v608, %v607
    %v682 = vpack.c.b16 %v610, %v609
    %v683 = vpack.c.b16 %v612, %v611
    %v684 = vpack.c.b16 %v614, %v613
    %v685 = vpack.c.b16 %v616, %v615
    %v686 = vpack.c.b16 %v618, %v617
    %v687 = vpack.c.b16 %v620, %v619
    %v688 = vpack.c.b16 %v622, %v621
    %v689 = vpack.c.b16 %v624, %v623
    %v690 = vpack.c.b16 %v626, %v625
    %755 = vmatpush.bf16.msra.mxu0 %v634
    %756 = vmatpush.bf16.msra.mxu0 %v633
    %757 = vmatpush.bf16.msra.mxu0 %v632
    %758 = vmatpush.bf16.msra.mxu0 %v631
    %759 = vmatpush.bf16.msra.mxu0 %v630
    %760 = vmatpush.bf16.msra.mxu0 %v629
    %761 = vmatpush.bf16.msra.mxu0 %v628
    %762 = vmatpush.bf16.msra.mxu0 %v627
    %763 = vmatmul.bf16.gmra.mxu0 %v359
    %v764 = vpop.f32.mrf.mxu0
    %v765 = vadd.f32 %v369, %v764
    %v766 = vpop.f32.mrf.mxu0
    %767 = vdwg.mxu0
    %768 = vmatpush.bf16.msra.mxu0 %v642
    %769 = vmatpush.bf16.msra.mxu0 %v641
    %770 = vmatpush.bf16.msra.mxu0 %v640
    %771 = vmatpush.bf16.msra.mxu0 %v639
    %772 = vmatpush.bf16.msra.mxu0 %v638
    %773 = vmatpush.bf16.msra.mxu0 %v637
    %774 = vmatpush.bf16.msra.mxu0 %v636
    %775 = vmatpush.bf16.msra.mxu0 %v635
    %776 = vmatmul.bf16.gmra.mxu0 %v360
    %v777 = vpop.f32.mrf.mxu0
    %v778 = vadd.f32 %v765, %v777
    %v779 = vpop.f32.mrf.mxu0
    %780 = vdwg.mxu0
    %781 = vmatpush.bf16.msra.mxu0 %v650
    %782 = vmatpush.bf16.msra.mxu0 %v649
    %783 = vmatpush.bf16.msra.mxu0 %v648
    %784 = vmatpush.bf16.msra.mxu0 %v647
    %785 = vmatpush.bf16.msra.mxu0 %v646
    %786 = vmatpush.bf16.msra.mxu0 %v645
    %787 = vmatpush.bf16.msra.mxu0 %v644
    %788 = vmatpush.bf16.msra.mxu0 %v643
    %789 = vmatmul.bf16.gmra.mxu0 %v361
    %v790 = vpop.f32.mrf.mxu0
    %v791 = vadd.f32 %v778, %v790
    %v792 = vpop.f32.mrf.mxu0
    %793 = vdwg.mxu0
    %794 = vmatpush.bf16.msra.mxu0 %v658
    %795 = vmatpush.bf16.msra.mxu0 %v657
    %796 = vmatpush.bf16.msra.mxu0 %v656
    %797 = vmatpush.bf16.msra.mxu0 %v655
    %798 = vmatpush.bf16.msra.mxu0 %v654
    %799 = vmatpush.bf16.msra.mxu0 %v653
    %800 = vmatpush.bf16.msra.mxu0 %v652
    %801 = vmatpush.bf16.msra.mxu0 %v651
    %802 = vmatmul.bf16.gmra.mxu0 %v362
    %v803 = vpop.f32.mrf.mxu0
    %v804 = vadd.f32 %v791, %v803
    %v805 = vpop.f32.mrf.mxu0
    %806 = vdwg.mxu0
    %807 = vmatpush.bf16.msra.mxu0 %v666
    %808 = vmatpush.bf16.msra.mxu0 %v665
    %809 = vmatpush.bf16.msra.mxu0 %v664
    %810 = vmatpush.bf16.msra.mxu0 %v663
    %811 = vmatpush.bf16.msra.mxu0 %v662
    %812 = vmatpush.bf16.msra.mxu0 %v661
    %813 = vmatpush.bf16.msra.mxu0 %v660
    %814 = vmatpush.bf16.msra.mxu0 %v659
    %815 = vmatmul.bf16.gmra.mxu0 %v363
    %v816 = vpop.f32.mrf.mxu0
    %v817 = vadd.f32 %v804, %v816
    %v818 = vpop.f32.mrf.mxu0
    %819 = vdwg.mxu0
    %820 = vmatpush.bf16.msra.mxu0 %v674
    %821 = vmatpush.bf16.msra.mxu0 %v673
    %822 = vmatpush.bf16.msra.mxu0 %v672
    %823 = vmatpush.bf16.msra.mxu0 %v671
    %824 = vmatpush.bf16.msra.mxu0 %v670
    %825 = vmatpush.bf16.msra.mxu0 %v669
    %826 = vmatpush.bf16.msra.mxu0 %v668
    %827 = vmatpush.bf16.msra.mxu0 %v667
    %828 = vmatmul.bf16.gmra.mxu0 %v364
    %v829 = vpop.f32.mrf.mxu0
    %v830 = vadd.f32 %v817, %v829
    %v831 = vpop.f32.mrf.mxu0
    %832 = vdwg.mxu0
    %833 = vmatpush.bf16.msra.mxu0 %v682
    %834 = vmatpush.bf16.msra.mxu0 %v681
    %835 = vmatpush.bf16.msra.mxu0 %v680
    %836 = vmatpush.bf16.msra.mxu0 %v679
    %837 = vmatpush.bf16.msra.mxu0 %v678
    %838 = vmatpush.bf16.msra.mxu0 %v677
    %839 = vmatpush.bf16.msra.mxu0 %v676
    %840 = vmatpush.bf16.msra.mxu0 %v675
    %841 = vmatmul.bf16.gmra.mxu0 %v365
    %v842 = vpop.f32.mrf.mxu0
    %v843 = vadd.f32 %v830, %v842
    %v844 = vpop.f32.mrf.mxu0
    %845 = vdwg.mxu0
    %846 = vmatpush.bf16.msra.mxu0 %v690
    %847 = vmatpush.bf16.msra.mxu0 %v689
    %848 = vmatpush.bf16.msra.mxu0 %v688
    %849 = vmatpush.bf16.msra.mxu0 %v687
    %850 = vmatpush.bf16.msra.mxu0 %v686
    %851 = vmatpush.bf16.msra.mxu0 %v685
    %852 = vmatpush.bf16.msra.mxu0 %v684
    %853 = vmatpush.bf16.msra.mxu0 %v683
    %854 = vmatmul.bf16.gmra.mxu0 %v366
    %v855 = vpop.f32.mrf.mxu0
    %v856 = vadd.f32 %v843, %v855
    %v857 = vpop.f32.mrf.mxu0
    %858 = vdwg.mxu0
    %v859 = vmax.f32 %v856, 0.0
    %v860 = vld [vmem:[#allocation5] sm:$0xf]
    %v861 = vld [vmem:[#allocation5 + $0x4] sm:$0xf]
    %v862 = vld [vmem:[#allocation5 + $0x8] sm:$0xf]
    %v863 = vld [vmem:[#allocation5 + $0xc] sm:$0xf]
    %v864 = vld [vmem:[#allocation5 + $0x10] sm:$0xf]
    %v865 = vld [vmem:[#allocation5 + $0x14] sm:$0xf]
    %v866 = vld [vmem:[#allocation5 + $0x18] sm:$0xf]
    %v867 = vld [vmem:[#allocation5 + $0x1c] sm:$0xf]
    %v868 = vpack.c.bf16 %v859, %v859
    %v869 = vld [vmem:[#allocation7] sm:$0x1]
    %v871 = vperm.slane %v869, 0
    %v881 = vunpack.c.l.b16 %v860
    %v882 = vunpack.c.l.b16 %v861
    %v883 = vunpack.c.l.b16 %v862
    %v884 = vunpack.c.l.b16 %v863
    %v885 = vunpack.c.l.b16 %v864
    %v886 = vunpack.c.l.b16 %v865
    %v887 = vunpack.c.l.b16 %v866
    %v888 = vunpack.c.l.b16 %v867
    %v889 = vpack.c.b16 %v882, %v881
    %v890 = vpack.c.b16 %v884, %v883
    %v891 = vpack.c.b16 %v886, %v885
    %v892 = vpack.c.b16 %v888, %v887
    %vm897 = vcmask 523264
    %v899 = vsel %vm897, %v868, 0
    %901 = vmatpush.bf16.msra.mxu0 0
    %902 = vmatpush.bf16.msra.mxu0 0
    %903 = vmatpush.bf16.msra.mxu0 0
    %904 = vmatpush.bf16.msra.mxu0 0
    %905 = vmatpush.bf16.msra.mxu0 %v892
    %906 = vmatpush.bf16.msra.mxu0 %v891
    %907 = vmatpush.bf16.msra.mxu0 %v890
    %908 = vmatpush.bf16.msra.mxu0 %v889
    %909 = vmatmul.bf16.gmra.mxu0 %v899
    %v910 = vpop.f32.mrf.mxu0
    %v911 = vadd.f32 %v871, %v910
    %v912 = vpop.f32.mrf.mxu0
    %913 = vdwg.mxu0
    %v914 = vld [vmem:[#allocation11] sm:$0xf]
    %v915 = vld [vmem:[#allocation11 + $0x4] sm:$0xf]
    %v916 = vld [vmem:[#allocation11 + $0x8] sm:$0xf]
    %v917 = vld [vmem:[#allocation11 + $0xc] sm:$0xf]
    %v918 = vld [vmem:[#allocation11 + $0x10] sm:$0xf]
    %v919 = vld [vmem:[#allocation11 + $0x14] sm:$0xf]
    %v920 = vld [vmem:[#allocation11 + $0x18] sm:$0xf]
    %v921 = vld [vmem:[#allocation11 + $0x1c] sm:$0xf]
    %v922 = vld [vmem:[#allocation11 + $0x20] sm:$0xf]
    %v923 = vld [vmem:[#allocation11 + $0x24] sm:$0xf]
    %v924 = vld [vmem:[#allocation11 + $0x28] sm:$0xf]
    %v925 = vld [vmem:[#allocation11 + $0x2c] sm:$0xf]
    %v926 = vld [vmem:[#allocation11 + $0x30] sm:$0xf]
    %v927 = vld [vmem:[#allocation11 + $0x34] sm:$0xf]
    %v928 = vld [vmem:[#allocation11 + $0x38] sm:$0xf]
    %v929 = vld [vmem:[#allocation11 + $0x3c] sm:$0xf]
    %v930 = vpack.c.bf16 %v911, %v911
    %v931 = vld [vmem:[#allocation13] sm:$0x1]
    %v933 = vperm.slane %v931, 0
    %v951 = vunpack.c.l.b16 %v914
    %v952 = vunpack.c.l.b16 %v915
    %v953 = vunpack.c.l.b16 %v916
    %v954 = vunpack.c.l.b16 %v917
    %v955 = vunpack.c.l.b16 %v918
    %v956 = vunpack.c.l.b16 %v919
    %v957 = vunpack.c.l.b16 %v920
    %v958 = vunpack.c.l.b16 %v921
    %v959 = vunpack.c.l.b16 %v922
    %v960 = vunpack.c.l.b16 %v923
    %v961 = vunpack.c.l.b16 %v924
    %v962 = vunpack.c.l.b16 %v925
    %v963 = vunpack.c.l.b16 %v926
    %v964 = vunpack.c.l.b16 %v927
    %v965 = vunpack.c.l.b16 %v928
    %v966 = vunpack.c.l.b16 %v929
    %v967 = vpack.c.b16 %v952, %v951
    %v968 = vpack.c.b16 %v954, %v953
    %v969 = vpack.c.b16 %v956, %v955
    %v970 = vpack.c.b16 %v958, %v957
    %v971 = vpack.c.b16 %v960, %v959
    %v972 = vpack.c.b16 %v962, %v961
    %v973 = vpack.c.b16 %v964, %v963
    %v974 = vpack.c.b16 %v966, %v965
    %983 = vmatpush.bf16.msra.mxu0 %v974
    %984 = vmatpush.bf16.msra.mxu0 %v973
    %985 = vmatpush.bf16.msra.mxu0 %v972
    %986 = vmatpush.bf16.msra.mxu0 %v971
    %987 = vmatpush.bf16.msra.mxu0 %v970
    %988 = vmatpush.bf16.msra.mxu0 %v969
    %989 = vmatpush.bf16.msra.mxu0 %v968
    %990 = vmatpush.bf16.msra.mxu0 %v967
    %991 = vmatmul.bf16.gmra.mxu0 %v930
    %v992 = vpop.f32.mrf.mxu0
    %v993 = vadd.f32 %v933, %v992
    %v994 = vpop.f32.mrf.mxu0
    %995 = vdwg.mxu0
    %v996 = vld [vmem:[#allocation8] sm:$0xf]
    %v997 = vld [vmem:[#allocation8 + $0x4] sm:$0xf]
    %v998 = vld [vmem:[#allocation8 + $0x8] sm:$0xf]
    %v999 = vld [vmem:[#allocation8 + $0xc] sm:$0xf]
    %v1000 = vld [vmem:[#allocation8 + $0x10] sm:$0xf]
    %v1001 = vld [vmem:[#allocation8 + $0x14] sm:$0xf]
    %v1002 = vld [vmem:[#allocation8 + $0x18] sm:$0xf]
    %v1003 = vld [vmem:[#allocation8 + $0x1c] sm:$0xf]
    %v1004 = vpack.c.bf16 %v856, %v856
    %v1005 = vld [vmem:[#allocation10] sm:$0x1]
    %v1007 = vperm.slane %v1005, 0
    %v1017 = vunpack.c.l.b16 %v996
    %v1018 = vunpack.c.l.b16 %v997
    %v1019 = vunpack.c.l.b16 %v998
    %v1020 = vunpack.c.l.b16 %v999
    %v1021 = vunpack.c.l.b16 %v1000
    %v1022 = vunpack.c.l.b16 %v1001
    %v1023 = vunpack.c.l.b16 %v1002
    %v1024 = vunpack.c.l.b16 %v1003
    %v1025 = vpack.c.b16 %v1018, %v1017
    %v1026 = vpack.c.b16 %v1020, %v1019
    %v1027 = vpack.c.b16 %v1022, %v1021
    %v1028 = vpack.c.b16 %v1024, %v1023
    %v1034 = vsel %vm897, %v1004, 0
    %1036 = vmatpush.bf16.msra.mxu0 0
    %1037 = vmatpush.bf16.msra.mxu0 0
    %1038 = vmatpush.bf16.msra.mxu0 0
    %1039 = vmatpush.bf16.msra.mxu0 0
    %1040 = vmatpush.bf16.msra.mxu0 %v1028
    %1041 = vmatpush.bf16.msra.mxu0 %v1027
    %1042 = vmatpush.bf16.msra.mxu0 %v1026
    %1043 = vmatpush.bf16.msra.mxu0 %v1025
    %1044 = vmatmul.bf16.gmra.mxu0 %v1034
    %v1045 = vpop.f32.mrf.mxu0
    %v1046 = vadd.f32 %v1007, %v1045
    %v1047 = vpop.f32.mrf.mxu0
    %1048 = vdwg.mxu0
    %v1050 = vrot.slane %v1046, 6
    %vm1052 = vcmask 1041408
    %v1053 = vsel %vm1052, %v993, %v1050
    %v1054 = vlaneseq
    %v1055 = vshrl.u32 %v1054, 7
    %v1056 = vlaneseq
    %v1057 = vand.u32 %v1056, 127
    %vm1058 = vcmp.lt.s32.totalorder %v1055, 0
    %v1059 = vsub.s32 0, %v1055
    %v1060 = vsel %vm1058, %v1059, %v1055
    %v1061 = vshrl.u32 %v1060, 1
    %v1062 = vand.u32 %v1060, 1
    %v1063 = vsub.s32 0, %v1062
    %v1064 = vsel %vm1058, %v1063, %v1062
    %vm1065 = vcmp.ne.s32.totalorder %v1064, 0
    %vm1066 = vcmp.lt.s32.totalorder %v1064, 0
    %vm1067 = vmand %vm1066, %vm1065
    %v1068 = vadd.s32 %v1064, 2
    %v1069 = vsel %vm1067, %v1068, %v1064
    %vm1070 = vcmp.lt.s32.totalorder %v1057, 0
    %v1071 = vsub.s32 0, %v1057
    %v1072 = vsel %vm1070, %v1071, %v1057
    %v1073 = vshrl.u32 %v1072, 1
    %v1074 = vand.u32 %v1072, 1
    %v1075 = vsub.s32 0, %v1074
    %v1076 = vsel %vm1070, %v1075, %v1074
    %vm1077 = vcmp.ne.s32.totalorder %v1076, 0
    %vm1078 = vcmp.lt.s32.totalorder %v1076, 0
    %vm1079 = vmand %vm1078, %vm1077
    %v1080 = vadd.s32 %v1076, 2
    %v1081 = vsel %vm1079, %v1080, %v1076
    %vm1082 = vcmp.eq.s32.totalorder %v1069, %v1081
    %v1083 = vld [vmem:[%s9] sm:$0xff]
    %v1084 = vld [vmem:[%s9 + $0x8] sm:$0xf]
    %v1085 = vld [vmem:[%s9 + $0xc] sm:$0xff]
    %v1086 = vld [vmem:[%s9 + $0x14] sm:$0xf]
    %v1087 = vld [vmem:[%s9 + $0x18] sm:$0xff]
    %v1088 = vld [vmem:[%s9 + $0x20] sm:$0xf]
    %v1089 = vld [vmem:[%s9 + $0x24] sm:$0xff]
    %v1090 = vld [vmem:[%s9 + $0x2c] sm:$0xf]
    %v1091 = vld [vmem:[%s9 + $0x30] sm:$0xff]
    %v1092 = vld [vmem:[%s9 + $0x38] sm:$0xf]
    %v1093 = vld [vmem:[%s9 + $0x3c] sm:$0xff]
    %v1094 = vld [vmem:[%s9 + $0x44] sm:$0xf]
    %v1095 = vld [vmem:[%s9 + $0x48] sm:$0xff]
    %v1096 = vld [vmem:[%s9 + $0x50] sm:$0xf]
    %v1097 = vld [vmem:[%s9 + $0x54] sm:$0xff]
    %v1098 = vld [vmem:[%s9 + $0x5c] sm:$0xf]
    %v1099 = vld [vmem:[%s9 + $0x60] sm:$0xff]
    %v1100 = vld [vmem:[%s9 + $0x68] sm:$0xf]
    %v1101 = vld [vmem:[%s9 + $0x6c] sm:$0xff]
    %v1102 = vld [vmem:[%s9 + $0x74] sm:$0xf]
    %v1103 = vld [vmem:[%s9 + $0x78] sm:$0xff]
    %v1104 = vld [vmem:[%s9 + $0x80] sm:$0xf]
    %v1105 = vld [vmem:[%s9 + $0x84] sm:$0xff]
    %v1106 = vld [vmem:[%s9 + $0x8c] sm:$0xf]
    %v1107 = vld [vmem:[%s9 + $0x90] sm:$0xff]
    %v1108 = vld [vmem:[%s9 + $0x98] sm:$0xf]
    %v1109 = vld [vmem:[%s9 + $0x9c] sm:$0xff]
    %v1110 = vld [vmem:[%s9 + $0xa4] sm:$0xf]
    %v1111 = vld [vmem:[%s9 + $0xa8] sm:$0xff]
    %v1112 = vld [vmem:[%s9 + $0xb0] sm:$0xf]
    %v1113 = vld [vmem:[%s9 + $0xb4] sm:$0xff]
    %v1114 = vld [vmem:[%s9 + $0xbc] sm:$0xf]
    %v1115 = vld [vmem:[#allocation14] sm:$0xf]
    %v1116 = vld [vmem:[#allocation14 + $0x4] sm:$0xf]
    %v1117 = vld [vmem:[#allocation14 + $0x8] sm:$0xf]
    %v1118 = vld [vmem:[#allocation14 + $0xc] sm:$0xf]
    %v1119 = vld [vmem:[#allocation14 + $0x10] sm:$0xf]
    %v1120 = vld [vmem:[#allocation14 + $0x14] sm:$0xf]
    %v1121 = vld [vmem:[#allocation14 + $0x18] sm:$0xf]
    %v1122 = vld [vmem:[#allocation14 + $0x1c] sm:$0xf]
    %v1123 = vld [vmem:[#allocation14 + $0x20] sm:$0xf]
    %v1124 = vld [vmem:[#allocation14 + $0x24] sm:$0xf]
    %v1125 = vld [vmem:[#allocation14 + $0x28] sm:$0xf]
    %v1126 = vld [vmem:[#allocation14 + $0x2c] sm:$0xf]
    %v1127 = vld [vmem:[#allocation14 + $0x30] sm:$0xf]
    %v1128 = vld [vmem:[#allocation14 + $0x34] sm:$0xf]
    %v1129 = vld [vmem:[#allocation14 + $0x38] sm:$0xf]
    %v1130 = vld [vmem:[#allocation14 + $0x3c] sm:$0xf]
    %v1131 = vpack.c.bf16 %v1053, %v1053
    %v1132 = vld [vmem:[%s10] sm:$0x7]
    %v1134 = vperm.slane %v1132, 0
    %v1135 = vperm.slane %v1132, 1
    %v1136 = vperm.slane %v1132, 2
    %v1172 = vunpack.c.l.b16 %v1083
    %v1173 = vunpack.c.h.b16 %v1083
    %v1174 = vunpack.c.l.b16 %v1084
    %v1175 = vunpack.c.l.b16 %v1085
    %v1176 = vunpack.c.h.b16 %v1085
    %v1177 = vunpack.c.l.b16 %v1086
    %v1178 = vunpack.c.l.b16 %v1087
    %v1179 = vunpack.c.h.b16 %v1087
    %v1180 = vunpack.c.l.b16 %v1088
    %v1181 = vunpack.c.l.b16 %v1089
    %v1182 = vunpack.c.h.b16 %v1089
    %v1183 = vunpack.c.l.b16 %v1090
    %v1184 = vunpack.c.l.b16 %v1091
    %v1185 = vunpack.c.h.b16 %v1091
    %v1186 = vunpack.c.l.b16 %v1092
    %v1187 = vunpack.c.l.b16 %v1093
    %v1188 = vunpack.c.h.b16 %v1093
    %v1189 = vunpack.c.l.b16 %v1094
    %v1190 = vunpack.c.l.b16 %v1095
    %v1191 = vunpack.c.h.b16 %v1095
    %v1192 = vunpack.c.l.b16 %v1096
    %v1193 = vunpack.c.l.b16 %v1097
    %v1194 = vunpack.c.h.b16 %v1097
    %v1195 = vunpack.c.l.b16 %v1098
    %v1196 = vunpack.c.l.b16 %v1099
    %v1197 = vunpack.c.h.b16 %v1099
    %v1198 = vunpack.c.l.b16 %v1100
    %v1199 = vunpack.c.l.b16 %v1101
    %v1200 = vunpack.c.h.b16 %v1101
    %v1201 = vunpack.c.l.b16 %v1102
    %v1202 = vunpack.c.l.b16 %v1103
    %v1203 = vunpack.c.h.b16 %v1103
    %v1204 = vunpack.c.l.b16 %v1104
    %v1205 = vunpack.c.l.b16 %v1105
    %v1206 = vunpack.c.h.b16 %v1105
    %v1207 = vunpack.c.l.b16 %v1106
    %v1208 = vunpack.c.l.b16 %v1107
    %v1209 = vunpack.c.h.b16 %v1107
    %v1210 = vunpack.c.l.b16 %v1108
    %v1211 = vunpack.c.l.b16 %v1109
    %v1212 = vunpack.c.h.b16 %v1109
    %v1213 = vunpack.c.l.b16 %v1110
    %v1214 = vunpack.c.l.b16 %v1111
    %v1215 = vunpack.c.h.b16 %v1111
    %v1216 = vunpack.c.l.b16 %v1112
    %v1217 = vunpack.c.l.b16 %v1113
    %v1218 = vunpack.c.h.b16 %v1113
    %v1219 = vunpack.c.l.b16 %v1114
    %v1220 = vpack.c.b16 %v1175, %v1172
    %v1221 = vpack.c.b16 %v1176, %v1173
    %v1222 = vpack.c.b16 %v1177, %v1174
    %v1223 = vpack.c.b16 %v1181, %v1178
    %v1224 = vpack.c.b16 %v1182, %v1179
    %v1225 = vpack.c.b16 %v1183, %v1180
    %v1226 = vpack.c.b16 %v1187, %v1184
    %v1227 = vpack.c.b16 %v1188, %v1185
    %v1228 = vpack.c.b16 %v1189, %v1186
    %v1229 = vpack.c.b16 %v1193, %v1190
    %v1230 = vpack.c.b16 %v1194, %v1191
    %v1231 = vpack.c.b16 %v1195, %v1192
    %v1232 = vpack.c.b16 %v1199, %v1196
    %v1233 = vpack.c.b16 %v1200, %v1197
    %v1234 = vpack.c.b16 %v1201, %v1198
    %v1235 = vpack.c.b16 %v1205, %v1202
    %v1236 = vpack.c.b16 %v1206, %v1203
    %v1237 = vpack.c.b16 %v1207, %v1204
    %v1238 = vpack.c.b16 %v1211, %v1208
    %v1239 = vpack.c.b16 %v1212, %v1209
    %v1240 = vpack.c.b16 %v1213, %v1210
    %v1241 = vpack.c.b16 %v1217, %v1214
    %v1242 = vpack.c.b16 %v1218, %v1215
    %v1243 = vpack.c.b16 %v1219, %v1216
    %1268 = vmatpush.bf16.msra.mxu0 %v1241
    %1269 = vmatpush.bf16.msra.mxu0 %v1238
    %1270 = vmatpush.bf16.msra.mxu0 %v1235
    %1271 = vmatpush.bf16.msra.mxu0 %v1232
    %1272 = vmatpush.bf16.msra.mxu0 %v1229
    %1273 = vmatpush.bf16.msra.mxu0 %v1226
    %1274 = vmatpush.bf16.msra.mxu0 %v1223
    %1275 = vmatpush.bf16.msra.mxu0 %v1220
    %1276 = vmatmul.bf16.gmra.mxu0 %v1131
    %v1277 = vpop.f32.mrf.mxu0
    %v1278 = vadd.f32 %v1134, %v1277
    %v1279 = vpop.f32.mrf.mxu0
    %1280 = vdwg.mxu0
    %1281 = vmatpush.bf16.msra.mxu0 %v1242
    %1282 = vmatpush.bf16.msra.mxu0 %v1239
    %1283 = vmatpush.bf16.msra.mxu0 %v1236
    %1284 = vmatpush.bf16.msra.mxu0 %v1233
    %1285 = vmatpush.bf16.msra.mxu0 %v1230
    %1286 = vmatpush.bf16.msra.mxu0 %v1227
    %1287 = vmatpush.bf16.msra.mxu0 %v1224
    %1288 = vmatpush.bf16.msra.mxu0 %v1221
    %1289 = vmatmul.bf16.gmra.mxu0 %v1131
    %v1290 = vpop.f32.mrf.mxu0
    %v1291 = vadd.f32 %v1135, %v1290
    %v1292 = vpop.f32.mrf.mxu0
    %1293 = vdwg.mxu0
    %1294 = vmatpush.bf16.msra.mxu0 %v1243
    %1295 = vmatpush.bf16.msra.mxu0 %v1240
    %1296 = vmatpush.bf16.msra.mxu0 %v1237
    %1297 = vmatpush.bf16.msra.mxu0 %v1234
    %1298 = vmatpush.bf16.msra.mxu0 %v1231
    %1299 = vmatpush.bf16.msra.mxu0 %v1228
    %1300 = vmatpush.bf16.msra.mxu0 %v1225
    %1301 = vmatpush.bf16.msra.mxu0 %v1222
    %1302 = vmatmul.bf16.gmra.mxu0 %v1131
    %v1303 = vpop.f32.mrf.mxu0
    %v1304 = vadd.f32 %v1136, %v1303
    %v1305 = vpop.f32.mrf.mxu0
    %1306 = vdwg.mxu0
    %v1307 = vpack.c.bf16 %v1278, %v1278
    %v1308 = vpack.c.bf16 %v1291, %v1291
    %vm1309 = vcmask 130048
    %v1311 = vsel %vm1309, %v1307, 0
    %v1314 = vsel %vm1309, %v1308, 0
    %1316 = vmatpush.bf16.xpose.msra.mxu0 0
    %1317 = vmatpush.bf16.xpose.msra.mxu0 0
    %1318 = vmatpush.bf16.xpose.msra.mxu0 0
    %1319 = vmatpush.bf16.xpose.msra.mxu0 0
    %1320 = vmatpush.bf16.xpose.msra.mxu0 0
    %1321 = vmatpush.bf16.xpose.msra.mxu0 0
    %1322 = vmatpush.bf16.xpose.msra.mxu0 0
    %1323 = vmatpush.bf16.xpose.msra.mxu0 %v1314
    %1324 = vmatmul.bf16.gmra.mxu0 %v1311
    %v1325 = vpop.f32.mrf.mxu0
    %v1326 = vadd.f32 0.0, %v1325
    %v1327 = vpop.f32.mrf.mxu0
    %1328 = vdwg.mxu0
    %v1329 = vmul.f32 %v1326, 0.25
    %v1330 = vsel %vm1082, %v1329, -1e+30
    %vm1331 = vcmask 27648
    %v1332 = vsel %vm1331, %v1330, -inf
    %1333 = vmax.xlane.f32.xlu0 %v1332
    %v1334 = vpop.xlane.xlu0 %1333
    %v1335 = vsub.f32 %v1330, %v1334
    %v1336 = vmul.f32 %v1335, 1.442695
    %v1337 = vpow.pop %v1336
    %v1338 = vsel %vm1331, %v1337, 0.0
    %1339 = vadd.xlane.f32.xlu0 %v1338
    %v1340 = vpop.xlane.xlu0 %1339
    %v1341 = vrcp.pop %v1340
    %v1342 = vmul.f32 %v1340, %v1341
    %v1343 = vsub.f32 1.0, %v1342
    %v1344 = vmul.f32 %v1341, %v1343
    %v1345 = vadd.f32 %v1341, %v1344
    %vm1346 = vweird.f32 %v1340
    %vm1347 = vweird.f32 %v1341
    %vm1348 = vmor %vm1346, %vm1347
    %v1349 = vsel %vm1348, %v1341, %v1345
    %v1350 = vand.u32 2147483647, %v1340
    %vm1351 = vcmp.eq.f32.partialorder %v1350, 8.507059e+37
    %v1352 = vand.u32 %v1340, 2147483648
    %v1353 = vor.u32 1.1754944e-38, %v1352
    %v1354 = vsel %vm1351, %v1353, %v1349
    %v1355 = vmul.f32 %v1337, %v1354
    %v1356 = vpack.c.bf16 %v1355, %v1355
    %v1357 = vpack.c.bf16 %v1304, %v1304
    %vm1358 = vcmask 31744
    %v1360 = vsel %vm1358, %v1356, 0
    %v1363 = vsel %vm1052, %v1357, 0
    %1365 = vmatpush.bf16.msra.mxu0 0
    %1366 = vmatpush.bf16.msra.mxu0 0
    %1367 = vmatpush.bf16.msra.mxu0 0
    %1368 = vmatpush.bf16.msra.mxu0 0
    %1369 = vmatpush.bf16.msra.mxu0 0
    %1370 = vmatpush.bf16.msra.mxu0 0
    %1371 = vmatpush.bf16.msra.mxu0 0
    %1372 = vmatpush.bf16.msra.mxu0 %v1363
    %1373 = vmatmul.bf16.gmra.mxu0 %v1360
    %v1374 = vpop.f32.mrf.mxu0
    %v1375 = vadd.f32 0.0, %v1374
    %v1376 = vpop.f32.mrf.mxu0
    %1377 = vdwg.mxu0
    %v1378 = vpack.c.bf16 %v1375, %v1375
    %1380 = vrot.lane.b32.xlu0 %v1307, 112
    %v1381 = vpop.permute.xlu0 %1380
    %1383 = vrot.lane.b32.xlu0 %v1308, 112
    %v1384 = vpop.permute.xlu0 %1383
    %v1386 = vsel %vm1309, %v1381, 0
    %v1389 = vsel %vm1309, %v1384, 0
    %1391 = vmatpush.bf16.xpose.msra.mxu0 0
    %1392 = vmatpush.bf16.xpose.msra.mxu0 0
    %1393 = vmatpush.bf16.xpose.msra.mxu0 0
    %1394 = vmatpush.bf16.xpose.msra.mxu0 0
    %1395 = vmatpush.bf16.xpose.msra.mxu0 0
    %1396 = vmatpush.bf16.xpose.msra.mxu0 0
    %1397 = vmatpush.bf16.xpose.msra.mxu0 0
    %1398 = vmatpush.bf16.xpose.msra.mxu0 %v1389
    %1399 = vmatmul.bf16.gmra.mxu0 %v1386
    %v1400 = vpop.f32.mrf.mxu0
    %v1401 = vadd.f32 0.0, %v1400
    %v1402 = vpop.f32.mrf.mxu0
    %1403 = vdwg.mxu0
    %v1404 = vmul.f32 %v1401, 0.25
    %v1405 = vsel %vm1082, %v1404, -1e+30
    %v1406 = vsel %vm1331, %v1405, -inf
    %1407 = vmax.xlane.f32.xlu0 %v1406
    %v1408 = vpop.xlane.xlu0 %1407
    %v1409 = vsub.f32 %v1405, %v1408
    %v1410 = vmul.f32 %v1409, 1.442695
    %v1411 = vpow.pop %v1410
    %v1412 = vsel %vm1331, %v1411, 0.0
    %1413 = vadd.xlane.f32.xlu0 %v1412
    %v1414 = vpop.xlane.xlu0 %1413
    %v1415 = vrcp.pop %v1414
    %v1416 = vmul.f32 %v1414, %v1415
    %v1417 = vsub.f32 1.0, %v1416
    %v1418 = vmul.f32 %v1415, %v1417
    %v1419 = vadd.f32 %v1415, %v1418
    %vm1420 = vweird.f32 %v1414
    %vm1421 = vweird.f32 %v1415
    %vm1422 = vmor %vm1420, %vm1421
    %v1423 = vsel %vm1422, %v1415, %v1419
    %v1424 = vand.u32 2147483647, %v1414
    %vm1425 = vcmp.eq.f32.partialorder %v1424, 8.507059e+37
    %v1426 = vand.u32 %v1414, 2147483648
    %v1427 = vor.u32 1.1754944e-38, %v1426
    %v1428 = vsel %vm1425, %v1427, %v1423
    %v1429 = vmul.f32 %v1411, %v1428
    %v1430 = vpack.c.bf16 %v1429, %v1429
    %1432 = vrot.lane.b32.xlu0 %v1357, 112
    %v1433 = vpop.permute.xlu0 %1432
    %v1435 = vsel %vm1358, %v1430, 0
    %v1438 = vsel %vm1052, %v1433, 0
    %1440 = vmatpush.bf16.msra.mxu0 0
    %1441 = vmatpush.bf16.msra.mxu0 0
    %1442 = vmatpush.bf16.msra.mxu0 0
    %1443 = vmatpush.bf16.msra.mxu0 0
    %1444 = vmatpush.bf16.msra.mxu0 0
    %1445 = vmatpush.bf16.msra.mxu0 0
    %1446 = vmatpush.bf16.msra.mxu0 0
    %1447 = vmatpush.bf16.msra.mxu0 %v1438
    %1448 = vmatmul.bf16.gmra.mxu0 %v1435
    %v1449 = vpop.f32.mrf.mxu0
    %v1450 = vadd.f32 0.0, %v1449
    %v1451 = vpop.f32.mrf.mxu0
    %1452 = vdwg.mxu0
    %v1453 = vpack.c.bf16 %v1450, %v1450
    %v1456 = vunpack.c.l.b16 %v1117
    %v1457 = vunpack.c.l.b16 %v1118
    %v1458 = vpack.c.b16 %v1457, %v1456
    %v1461 = vsel %vm1309, %v1453, 0
    %1463 = vmatpush.bf16.msra.mxu0 0
    %1464 = vmatpush.bf16.msra.mxu0 0
    %1465 = vmatpush.bf16.msra.mxu0 0
    %1466 = vmatpush.bf16.msra.mxu0 0
    %1467 = vmatpush.bf16.msra.mxu0 0
    %1468 = vmatpush.bf16.msra.mxu0 0
    %1469 = vmatpush.bf16.msra.mxu0 0
    %1470 = vmatpush.bf16.msra.mxu0 %v1458
    %1471 = vmatmul.bf16.gmra.mxu0 %v1461
    %v1472 = vpop.f32.mrf.mxu0
    %v1473 = vadd.f32 0.0, %v1472
    %v1474 = vpop.f32.mrf.mxu0
    %1475 = vdwg.mxu0
    %v1478 = vunpack.c.l.b16 %v1115
    %v1479 = vunpack.c.l.b16 %v1116
    %v1480 = vpack.c.b16 %v1479, %v1478
    %v1483 = vsel %vm1309, %v1378, 0
    %1485 = vmatpush.bf16.msra.mxu0 0
    %1486 = vmatpush.bf16.msra.mxu0 0
    %1487 = vmatpush.bf16.msra.mxu0 0
    %1488 = vmatpush.bf16.msra.mxu0 0
    %1489 = vmatpush.bf16.msra.mxu0 0
    %1490 = vmatpush.bf16.msra.mxu0 0
    %1491 = vmatpush.bf16.msra.mxu0 0
    %1492 = vmatpush.bf16.msra.mxu0 %v1480
    %1493 = vmatmul.bf16.gmra.mxu0 %v1483
    %v1494 = vpop.f32.mrf.mxu0
    %v1495 = vadd.f32 %v1473, %v1494
    %v1496 = vpop.f32.mrf.mxu0
    %1497 = vdwg.mxu0
    %1498 = vrot.lane.b32.xlu0 %v1307, 96
    %v1499 = vpop.permute.xlu0 %1498
    %1500 = vrot.lane.b32.xlu0 %v1308, 96
    %v1501 = vpop.permute.xlu0 %1500
    %v1503 = vsel %vm1309, %v1499, 0
    %v1506 = vsel %vm1309, %v1501, 0
    %1508 = vmatpush.bf16.xpose.msra.mxu0 0
    %1509 = vmatpush.bf16.xpose.msra.mxu0 0
    %1510 = vmatpush.bf16.xpose.msra.mxu0 0
    %1511 = vmatpush.bf16.xpose.msra.mxu0 0
    %1512 = vmatpush.bf16.xpose.msra.mxu0 0
    %1513 = vmatpush.bf16.xpose.msra.mxu0 0
    %1514 = vmatpush.bf16.xpose.msra.mxu0 0
    %1515 = vmatpush.bf16.xpose.msra.mxu0 %v1506
    %1516 = vmatmul.bf16.gmra.mxu0 %v1503
    %v1517 = vpop.f32.mrf.mxu0
    %v1518 = vadd.f32 0.0, %v1517
    %v1519 = vpop.f32.mrf.mxu0
    %1520 = vdwg.mxu0
    %v1521 = vmul.f32 %v1518, 0.25
    %v1522 = vsel %vm1082, %v1521, -1e+30
    %v1523 = vsel %vm1331, %v1522, -inf
    %1524 = vmax.xlane.f32.xlu0 %v1523
    %v1525 = vpop.xlane.xlu0 %1524
    %v1526 = vsub.f32 %v1522, %v1525
    %v1527 = vmul.f32 %v1526, 1.442695
    %v1528 = vpow.pop %v1527
    %v1529 = vsel %vm1331, %v1528, 0.0
    %1530 = vadd.xlane.f32.xlu0 %v1529
    %v1531 = vpop.xlane.xlu0 %1530
    %v1532 = vrcp.pop %v1531
    %v1533 = vmul.f32 %v1531, %v1532
    %v1534 = vsub.f32 1.0, %v1533
    %v1535 = vmul.f32 %v1532, %v1534
    %v1536 = vadd.f32 %v1532, %v1535
    %vm1537 = vweird.f32 %v1531
    %vm1538 = vweird.f32 %v1532
    %vm1539 = vmor %vm1537, %vm1538
    %v1540 = vsel %vm1539, %v1532, %v1536
    %v1541 = vand.u32 2147483647, %v1531
    %vm1542 = vcmp.eq.f32.partialorder %v1541, 8.507059e+37
    %v1543 = vand.u32 %v1531, 2147483648
    %v1544 = vor.u32 1.1754944e-38, %v1543
    %v1545 = vsel %vm1542, %v1544, %v1540
    %v1546 = vmul.f32 %v1528, %v1545
    %v1547 = vpack.c.bf16 %v1546, %v1546
    %1548 = vrot.lane.b32.xlu0 %v1357, 96
    %v1549 = vpop.permute.xlu0 %1548
    %v1551 = vsel %vm1358, %v1547, 0
    %v1554 = vsel %vm1052, %v1549, 0
    %1556 = vmatpush.bf16.msra.mxu0 0
    %1557 = vmatpush.bf16.msra.mxu0 0
    %1558 = vmatpush.bf16.msra.mxu0 0
    %1559 = vmatpush.bf16.msra.mxu0 0
    %1560 = vmatpush.bf16.msra.mxu0 0
    %1561 = vmatpush.bf16.msra.mxu0 0
    %1562 = vmatpush.bf16.msra.mxu0 0
    %1563 = vmatpush.bf16.msra.mxu0 %v1554
    %1564 = vmatmul.bf16.gmra.mxu0 %v1551
    %v1565 = vpop.f32.mrf.mxu0
    %v1566 = vadd.f32 0.0, %v1565
    %v1567 = vpop.f32.mrf.mxu0
    %1568 = vdwg.mxu0
    %v1569 = vpack.c.bf16 %v1566, %v1566
    %v1572 = vunpack.c.l.b16 %v1119
    %v1573 = vunpack.c.l.b16 %v1120
    %v1574 = vpack.c.b16 %v1573, %v1572
    %v1577 = vsel %vm1309, %v1569, 0
    %1579 = vmatpush.bf16.msra.mxu0 0
    %1580 = vmatpush.bf16.msra.mxu0 0
    %1581 = vmatpush.bf16.msra.mxu0 0
    %1582 = vmatpush.bf16.msra.mxu0 0
    %1583 = vmatpush.bf16.msra.mxu0 0
    %1584 = vmatpush.bf16.msra.mxu0 0
    %1585 = vmatpush.bf16.msra.mxu0 0
    %1586 = vmatpush.bf16.msra.mxu0 %v1574
    %1587 = vmatmul.bf16.gmra.mxu0 %v1577
    %v1588 = vpop.f32.mrf.mxu0
    %v1589 = vadd.f32 0.0, %v1588
    %v1590 = vpop.f32.mrf.mxu0
    %1591 = vdwg.mxu0
    %v1592 = vadd.f32 %v1495, %v1589
    %1593 = vrot.lane.b32.xlu0 %v1307, 80
    %v1594 = vpop.permute.xlu0 %1593
    %1595 = vrot.lane.b32.xlu0 %v1308, 80
    %v1596 = vpop.permute.xlu0 %1595
    %v1598 = vsel %vm1309, %v1594, 0
    %v1601 = vsel %vm1309, %v1596, 0
    %1603 = vmatpush.bf16.xpose.msra.mxu0 0
    %1604 = vmatpush.bf16.xpose.msra.mxu0 0
    %1605 = vmatpush.bf16.xpose.msra.mxu0 0
    %1606 = vmatpush.bf16.xpose.msra.mxu0 0
    %1607 = vmatpush.bf16.xpose.msra.mxu0 0
    %1608 = vmatpush.bf16.xpose.msra.mxu0 0
    %1609 = vmatpush.bf16.xpose.msra.mxu0 0
    %1610 = vmatpush.bf16.xpose.msra.mxu0 %v1601
    %1611 = vmatmul.bf16.gmra.mxu0 %v1598
    %v1612 = vpop.f32.mrf.mxu0
    %v1613 = vadd.f32 0.0, %v1612
    %v1614 = vpop.f32.mrf.mxu0
    %1615 = vdwg.mxu0
    %v1616 = vmul.f32 %v1613, 0.25
    %v1617 = vsel %vm1082, %v1616, -1e+30
    %v1618 = vsel %vm1331, %v1617, -inf
    %1619 = vmax.xlane.f32.xlu0 %v1618
    %v1620 = vpop.xlane.xlu0 %1619
    %v1621 = vsub.f32 %v1617, %v1620
    %v1622 = vmul.f32 %v1621, 1.442695
    %v1623 = vpow.pop %v1622
    %v1624 = vsel %vm1331, %v1623, 0.0
    %1625 = vadd.xlane.f32.xlu0 %v1624
    %v1626 = vpop.xlane.xlu0 %1625
    %v1627 = vrcp.pop %v1626
    %v1628 = vmul.f32 %v1626, %v1627
    %v1629 = vsub.f32 1.0, %v1628
    %v1630 = vmul.f32 %v1627, %v1629
    %v1631 = vadd.f32 %v1627, %v1630
    %vm1632 = vweird.f32 %v1626
    %vm1633 = vweird.f32 %v1627
    %vm1634 = vmor %vm1632, %vm1633
    %v1635 = vsel %vm1634, %v1627, %v1631
    %v1636 = vand.u32 2147483647, %v1626
    %vm1637 = vcmp.eq.f32.partialorder %v1636, 8.507059e+37
    %v1638 = vand.u32 %v1626, 2147483648
    %v1639 = vor.u32 1.1754944e-38, %v1638
    %v1640 = vsel %vm1637, %v1639, %v1635
    %v1641 = vmul.f32 %v1623, %v1640
    %v1642 = vpack.c.bf16 %v1641, %v1641
    %1643 = vrot.lane.b32.xlu0 %v1357, 80
    %v1644 = vpop.permute.xlu0 %1643
    %v1646 = vsel %vm1358, %v1642, 0
    %v1649 = vsel %vm1052, %v1644, 0
    %1651 = vmatpush.bf16.msra.mxu0 0
    %1652 = vmatpush.bf16.msra.mxu0 0
    %1653 = vmatpush.bf16.msra.mxu0 0
    %1654 = vmatpush.bf16.msra.mxu0 0
    %1655 = vmatpush.bf16.msra.mxu0 0
    %1656 = vmatpush.bf16.msra.mxu0 0
    %1657 = vmatpush.bf16.msra.mxu0 0
    %1658 = vmatpush.bf16.msra.mxu0 %v1649
    %1659 = vmatmul.bf16.gmra.mxu0 %v1646
    %v1660 = vpop.f32.mrf.mxu0
    %v1661 = vadd.f32 0.0, %v1660
    %v1662 = vpop.f32.mrf.mxu0
    %1663 = vdwg.mxu0
    %v1664 = vpack.c.bf16 %v1661, %v1661
    %v1667 = vunpack.c.l.b16 %v1121
    %v1668 = vunpack.c.l.b16 %v1122
    %v1669 = vpack.c.b16 %v1668, %v1667
    %v1672 = vsel %vm1309, %v1664, 0
    %1674 = vmatpush.bf16.msra.mxu0 0
    %1675 = vmatpush.bf16.msra.mxu0 0
    %1676 = vmatpush.bf16.msra.mxu0 0
    %1677 = vmatpush.bf16.msra.mxu0 0
    %1678 = vmatpush.bf16.msra.mxu0 0
    %1679 = vmatpush.bf16.msra.mxu0 0
    %1680 = vmatpush.bf16.msra.mxu0 0
    %1681 = vmatpush.bf16.msra.mxu0 %v1669
    %1682 = vmatmul.bf16.gmra.mxu0 %v1672
    %v1683 = vpop.f32.mrf.mxu0
    %v1684 = vadd.f32 0.0, %v1683
    %v1685 = vpop.f32.mrf.mxu0
    %1686 = vdwg.mxu0
    %v1687 = vadd.f32 %v1592, %v1684
    %1688 = vrot.lane.b32.xlu0 %v1307, 64
    %v1689 = vpop.permute.xlu0 %1688
    %1690 = vrot.lane.b32.xlu0 %v1308, 64
    %v1691 = vpop.permute.xlu0 %1690
    %v1693 = vsel %vm1309, %v1689, 0
    %v1696 = vsel %vm1309, %v1691, 0
    %1698 = vmatpush.bf16.xpose.msra.mxu0 0
    %1699 = vmatpush.bf16.xpose.msra.mxu0 0
    %1700 = vmatpush.bf16.xpose.msra.mxu0 0
    %1701 = vmatpush.bf16.xpose.msra.mxu0 0
    %1702 = vmatpush.bf16.xpose.msra.mxu0 0
    %1703 = vmatpush.bf16.xpose.msra.mxu0 0
    %1704 = vmatpush.bf16.xpose.msra.mxu0 0
    %1705 = vmatpush.bf16.xpose.msra.mxu0 %v1696
    %1706 = vmatmul.bf16.gmra.mxu0 %v1693
    %v1707 = vpop.f32.mrf.mxu0
    %v1708 = vadd.f32 0.0, %v1707
    %v1709 = vpop.f32.mrf.mxu0
    %1710 = vdwg.mxu0
    %v1711 = vmul.f32 %v1708, 0.25
    %v1712 = vsel %vm1082, %v1711, -1e+30
    %v1713 = vsel %vm1331, %v1712, -inf
    %1714 = vmax.xlane.f32.xlu0 %v1713
    %v1715 = vpop.xlane.xlu0 %1714
    %v1716 = vsub.f32 %v1712, %v1715
    %v1717 = vmul.f32 %v1716, 1.442695
    %v1718 = vpow.pop %v1717
    %v1719 = vsel %vm1331, %v1718, 0.0
    %1720 = vadd.xlane.f32.xlu0 %v1719
    %v1721 = vpop.xlane.xlu0 %1720
    %v1722 = vrcp.pop %v1721
    %v1723 = vmul.f32 %v1721, %v1722
    %v1724 = vsub.f32 1.0, %v1723
    %v1725 = vmul.f32 %v1722, %v1724
    %v1726 = vadd.f32 %v1722, %v1725
    %vm1727 = vweird.f32 %v1721
    %vm1728 = vweird.f32 %v1722
    %vm1729 = vmor %vm1727, %vm1728
    %v1730 = vsel %vm1729, %v1722, %v1726
    %v1731 = vand.u32 2147483647, %v1721
    %vm1732 = vcmp.eq.f32.partialorder %v1731, 8.507059e+37
    %v1733 = vand.u32 %v1721, 2147483648
    %v1734 = vor.u32 1.1754944e-38, %v1733
    %v1735 = vsel %vm1732, %v1734, %v1730
    %v1736 = vmul.f32 %v1718, %v1735
    %v1737 = vpack.c.bf16 %v1736, %v1736
    %1738 = vrot.lane.b32.xlu0 %v1357, 64
    %v1739 = vpop.permute.xlu0 %1738
    %v1741 = vsel %vm1358, %v1737, 0
    %v1744 = vsel %vm1052, %v1739, 0
    %1746 = vmatpush.bf16.msra.mxu0 0
    %1747 = vmatpush.bf16.msra.mxu0 0
    %1748 = vmatpush.bf16.msra.mxu0 0
    %1749 = vmatpush.bf16.msra.mxu0 0
    %1750 = vmatpush.bf16.msra.mxu0 0
    %1751 = vmatpush.bf16.msra.mxu0 0
    %1752 = vmatpush.bf16.msra.mxu0 0
    %1753 = vmatpush.bf16.msra.mxu0 %v1744
    %1754 = vmatmul.bf16.gmra.mxu0 %v1741
    %v1755 = vpop.f32.mrf.mxu0
    %v1756 = vadd.f32 0.0, %v1755
    %v1757 = vpop.f32.mrf.mxu0
    %1758 = vdwg.mxu0
    %v1759 = vpack.c.bf16 %v1756, %v1756
    %v1762 = vunpack.c.l.b16 %v1123
    %v1763 = vunpack.c.l.b16 %v1124
    %v1764 = vpack.c.b16 %v1763, %v1762
    %v1767 = vsel %vm1309, %v1759, 0
    %1769 = vmatpush.bf16.msra.mxu0 0
    %1770 = vmatpush.bf16.msra.mxu0 0
    %1771 = vmatpush.bf16.msra.mxu0 0
    %1772 = vmatpush.bf16.msra.mxu0 0
    %1773 = vmatpush.bf16.msra.mxu0 0
    %1774 = vmatpush.bf16.msra.mxu0 0
    %1775 = vmatpush.bf16.msra.mxu0 0
    %1776 = vmatpush.bf16.msra.mxu0 %v1764
    %1777 = vmatmul.bf16.gmra.mxu0 %v1767
    %v1778 = vpop.f32.mrf.mxu0
    %v1779 = vadd.f32 0.0, %v1778
    %v1780 = vpop.f32.mrf.mxu0
    %1781 = vdwg.mxu0
    %v1782 = vadd.f32 %v1687, %v1779
    %1783 = vrot.lane.b32.xlu0 %v1307, 48
    %v1784 = vpop.permute.xlu0 %1783
    %1785 = vrot.lane.b32.xlu0 %v1308, 48
    %v1786 = vpop.permute.xlu0 %1785
    %v1788 = vsel %vm1309, %v1784, 0
    %v1791 = vsel %vm1309, %v1786, 0
    %1793 = vmatpush.bf16.xpose.msra.mxu0 0
    %1794 = vmatpush.bf16.xpose.msra.mxu0 0
    %1795 = vmatpush.bf16.xpose.msra.mxu0 0
    %1796 = vmatpush.bf16.xpose.msra.mxu0 0
    %1797 = vmatpush.bf16.xpose.msra.mxu0 0
    %1798 = vmatpush.bf16.xpose.msra.mxu0 0
    %1799 = vmatpush.bf16.xpose.msra.mxu0 0
    %1800 = vmatpush.bf16.xpose.msra.mxu0 %v1791
    %1801 = vmatmul.bf16.gmra.mxu0 %v1788
    %v1802 = vpop.f32.mrf.mxu0
    %v1803 = vadd.f32 0.0, %v1802
    %v1804 = vpop.f32.mrf.mxu0
    %1805 = vdwg.mxu0
    %v1806 = vmul.f32 %v1803, 0.25
    %v1807 = vsel %vm1082, %v1806, -1e+30
    %v1808 = vsel %vm1331, %v1807, -inf
    %1809 = vmax.xlane.f32.xlu0 %v1808
    %v1810 = vpop.xlane.xlu0 %1809
    %v1811 = vsub.f32 %v1807, %v1810
    %v1812 = vmul.f32 %v1811, 1.442695
    %v1813 = vpow.pop %v1812
    %v1814 = vsel %vm1331, %v1813, 0.0
    %1815 = vadd.xlane.f32.xlu0 %v1814
    %v1816 = vpop.xlane.xlu0 %1815
    %v1817 = vrcp.pop %v1816
    %v1818 = vmul.f32 %v1816, %v1817
    %v1819 = vsub.f32 1.0, %v1818
    %v1820 = vmul.f32 %v1817, %v1819
    %v1821 = vadd.f32 %v1817, %v1820
    %vm1822 = vweird.f32 %v1816
    %vm1823 = vweird.f32 %v1817
    %vm1824 = vmor %vm1822, %vm1823
    %v1825 = vsel %vm1824, %v1817, %v1821
    %v1826 = vand.u32 2147483647, %v1816
    %vm1827 = vcmp.eq.f32.partialorder %v1826, 8.507059e+37
    %v1828 = vand.u32 %v1816, 2147483648
    %v1829 = vor.u32 1.1754944e-38, %v1828
    %v1830 = vsel %vm1827, %v1829, %v1825
    %v1831 = vmul.f32 %v1813, %v1830
    %v1832 = vpack.c.bf16 %v1831, %v1831
    %1833 = vrot.lane.b32.xlu0 %v1357, 48
    %v1834 = vpop.permute.xlu0 %1833
    %v1836 = vsel %vm1358, %v1832, 0
    %v1839 = vsel %vm1052, %v1834, 0
    %1841 = vmatpush.bf16.msra.mxu0 0
    %1842 = vmatpush.bf16.msra.mxu0 0
    %1843 = vmatpush.bf16.msra.mxu0 0
    %1844 = vmatpush.bf16.msra.mxu0 0
    %1845 = vmatpush.bf16.msra.mxu0 0
    %1846 = vmatpush.bf16.msra.mxu0 0
    %1847 = vmatpush.bf16.msra.mxu0 0
    %1848 = vmatpush.bf16.msra.mxu0 %v1839
    %1849 = vmatmul.bf16.gmra.mxu0 %v1836
    %v1850 = vpop.f32.mrf.mxu0
    %v1851 = vadd.f32 0.0, %v1850
    %v1852 = vpop.f32.mrf.mxu0
    %1853 = vdwg.mxu0
    %v1854 = vpack.c.bf16 %v1851, %v1851
    %v1857 = vunpack.c.l.b16 %v1125
    %v1858 = vunpack.c.l.b16 %v1126
    %v1859 = vpack.c.b16 %v1858, %v1857
    %v1862 = vsel %vm1309, %v1854, 0
    %1864 = vmatpush.bf16.msra.mxu0 0
    %1865 = vmatpush.bf16.msra.mxu0 0
    %1866 = vmatpush.bf16.msra.mxu0 0
    %1867 = vmatpush.bf16.msra.mxu0 0
    %1868 = vmatpush.bf16.msra.mxu0 0
    %1869 = vmatpush.bf16.msra.mxu0 0
    %1870 = vmatpush.bf16.msra.mxu0 0
    %1871 = vmatpush.bf16.msra.mxu0 %v1859
    %1872 = vmatmul.bf16.gmra.mxu0 %v1862
    %v1873 = vpop.f32.mrf.mxu0
    %v1874 = vadd.f32 0.0, %v1873
    %v1875 = vpop.f32.mrf.mxu0
    %1876 = vdwg.mxu0
    %v1877 = vadd.f32 %v1782, %v1874
    %1878 = vrot.lane.b32.xlu0 %v1307, 32
    %v1879 = vpop.permute.xlu0 %1878
    %1880 = vrot.lane.b32.xlu0 %v1308, 32
    %v1881 = vpop.permute.xlu0 %1880
    %v1883 = vsel %vm1309, %v1879, 0
    %v1886 = vsel %vm1309, %v1881, 0
    %1888 = vmatpush.bf16.xpose.msra.mxu0 0
    %1889 = vmatpush.bf16.xpose.msra.mxu0 0
    %1890 = vmatpush.bf16.xpose.msra.mxu0 0
    %1891 = vmatpush.bf16.xpose.msra.mxu0 0
    %1892 = vmatpush.bf16.xpose.msra.mxu0 0
    %1893 = vmatpush.bf16.xpose.msra.mxu0 0
    %1894 = vmatpush.bf16.xpose.msra.mxu0 0
    %1895 = vmatpush.bf16.xpose.msra.mxu0 %v1886
    %1896 = vmatmul.bf16.gmra.mxu0 %v1883
    %v1897 = vpop.f32.mrf.mxu0
    %v1898 = vadd.f32 0.0, %v1897
    %v1899 = vpop.f32.mrf.mxu0
    %1900 = vdwg.mxu0
    %v1901 = vmul.f32 %v1898, 0.25
    %v1902 = vsel %vm1082, %v1901, -1e+30
    %v1903 = vsel %vm1331, %v1902, -inf
    %1904 = vmax.xlane.f32.xlu0 %v1903
    %v1905 = vpop.xlane.xlu0 %1904
    %v1906 = vsub.f32 %v1902, %v1905
    %v1907 = vmul.f32 %v1906, 1.442695
    %v1908 = vpow.pop %v1907
    %v1909 = vsel %vm1331, %v1908, 0.0
    %1910 = vadd.xlane.f32.xlu0 %v1909
    %v1911 = vpop.xlane.xlu0 %1910
    %v1912 = vrcp.pop %v1911
    %v1913 = vmul.f32 %v1911, %v1912
    %v1914 = vsub.f32 1.0, %v1913
    %v1915 = vmul.f32 %v1912, %v1914
    %v1916 = vadd.f32 %v1912, %v1915
    %vm1917 = vweird.f32 %v1911
    %vm1918 = vweird.f32 %v1912
    %vm1919 = vmor %vm1917, %vm1918
    %v1920 = vsel %vm1919, %v1912, %v1916
    %v1921 = vand.u32 2147483647, %v1911
    %vm1922 = vcmp.eq.f32.partialorder %v1921, 8.507059e+37
    %v1923 = vand.u32 %v1911, 2147483648
    %v1924 = vor.u32 1.1754944e-38, %v1923
    %v1925 = vsel %vm1922, %v1924, %v1920
    %v1926 = vmul.f32 %v1908, %v1925
    %v1927 = vpack.c.bf16 %v1926, %v1926
    %1928 = vrot.lane.b32.xlu0 %v1357, 32
    %v1929 = vpop.permute.xlu0 %1928
    %v1931 = vsel %vm1358, %v1927, 0
    %v1934 = vsel %vm1052, %v1929, 0
    %1936 = vmatpush.bf16.msra.mxu0 0
    %1937 = vmatpush.bf16.msra.mxu0 0
    %1938 = vmatpush.bf16.msra.mxu0 0
    %1939 = vmatpush.bf16.msra.mxu0 0
    %1940 = vmatpush.bf16.msra.mxu0 0
    %1941 = vmatpush.bf16.msra.mxu0 0
    %1942 = vmatpush.bf16.msra.mxu0 0
    %1943 = vmatpush.bf16.msra.mxu0 %v1934
    %1944 = vmatmul.bf16.gmra.mxu0 %v1931
    %v1945 = vpop.f32.mrf.mxu0
    %v1946 = vadd.f32 0.0, %v1945
    %v1947 = vpop.f32.mrf.mxu0
    %1948 = vdwg.mxu0
    %v1949 = vpack.c.bf16 %v1946, %v1946
    %v1952 = vunpack.c.l.b16 %v1127
    %v1953 = vunpack.c.l.b16 %v1128
    %v1954 = vpack.c.b16 %v1953, %v1952
    %v1957 = vsel %vm1309, %v1949, 0
    %1959 = vmatpush.bf16.msra.mxu0 0
    %1960 = vmatpush.bf16.msra.mxu0 0
    %1961 = vmatpush.bf16.msra.mxu0 0
    %1962 = vmatpush.bf16.msra.mxu0 0
    %1963 = vmatpush.bf16.msra.mxu0 0
    %1964 = vmatpush.bf16.msra.mxu0 0
    %1965 = vmatpush.bf16.msra.mxu0 0
    %1966 = vmatpush.bf16.msra.mxu0 %v1954
    %1967 = vmatmul.bf16.gmra.mxu0 %v1957
    %v1968 = vpop.f32.mrf.mxu0
    %v1969 = vadd.f32 0.0, %v1968
    %v1970 = vpop.f32.mrf.mxu0
    %1971 = vdwg.mxu0
    %v1972 = vadd.f32 %v1877, %v1969
    %1973 = vrot.lane.b32.xlu0 %v1307, 16
    %v1974 = vpop.permute.xlu0 %1973
    %1975 = vrot.lane.b32.xlu0 %v1308, 16
    %v1976 = vpop.permute.xlu0 %1975
    %v1978 = vsel %vm1309, %v1974, 0
    %v1981 = vsel %vm1309, %v1976, 0
    %1983 = vmatpush.bf16.xpose.msra.mxu0 0
    %1984 = vmatpush.bf16.xpose.msra.mxu0 0
    %1985 = vmatpush.bf16.xpose.msra.mxu0 0
    %1986 = vmatpush.bf16.xpose.msra.mxu0 0
    %1987 = vmatpush.bf16.xpose.msra.mxu0 0
    %1988 = vmatpush.bf16.xpose.msra.mxu0 0
    %1989 = vmatpush.bf16.xpose.msra.mxu0 0
    %1990 = vmatpush.bf16.xpose.msra.mxu0 %v1981
    %1991 = vmatmul.bf16.gmra.mxu0 %v1978
    %v1992 = vpop.f32.mrf.mxu0
    %v1993 = vadd.f32 0.0, %v1992
    %v1994 = vpop.f32.mrf.mxu0
    %1995 = vdwg.mxu0
    %v1996 = vmul.f32 %v1993, 0.25
    %v1997 = vsel %vm1082, %v1996, -1e+30
    %v1998 = vsel %vm1331, %v1997, -inf
    %1999 = vmax.xlane.f32.xlu0 %v1998
    %v2000 = vpop.xlane.xlu0 %1999
    %v2001 = vsub.f32 %v1997, %v2000
    %v2002 = vmul.f32 %v2001, 1.442695
    %v2003 = vpow.pop %v2002
    %v2004 = vsel %vm1331, %v2003, 0.0
    %2005 = vadd.xlane.f32.xlu0 %v2004
    %v2006 = vpop.xlane.xlu0 %2005
    %v2007 = vrcp.pop %v2006
    %v2008 = vmul.f32 %v2006, %v2007
    %v2009 = vsub.f32 1.0, %v2008
    %v2010 = vmul.f32 %v2007, %v2009
    %v2011 = vadd.f32 %v2007, %v2010
    %vm2012 = vweird.f32 %v2006
    %vm2013 = vweird.f32 %v2007
    %vm2014 = vmor %vm2012, %vm2013
    %v2015 = vsel %vm2014, %v2007, %v2011
    %v2016 = vand.u32 2147483647, %v2006
    %vm2017 = vcmp.eq.f32.partialorder %v2016, 8.507059e+37
    %v2018 = vand.u32 %v2006, 2147483648
    %v2019 = vor.u32 1.1754944e-38, %v2018
    %v2020 = vsel %vm2017, %v2019, %v2015
    %v2021 = vmul.f32 %v2003, %v2020
    %v2022 = vpack.c.bf16 %v2021, %v2021
    %2023 = vrot.lane.b32.xlu0 %v1357, 16
    %v2024 = vpop.permute.xlu0 %2023
    %v2026 = vsel %vm1358, %v2022, 0
    %v2029 = vsel %vm1052, %v2024, 0
    %2031 = vmatpush.bf16.msra.mxu0 0
    %2032 = vmatpush.bf16.msra.mxu0 0
    %2033 = vmatpush.bf16.msra.mxu0 0
    %2034 = vmatpush.bf16.msra.mxu0 0
    %2035 = vmatpush.bf16.msra.mxu0 0
    %2036 = vmatpush.bf16.msra.mxu0 0
    %2037 = vmatpush.bf16.msra.mxu0 0
    %2038 = vmatpush.bf16.msra.mxu0 %v2029
    %2039 = vmatmul.bf16.gmra.mxu0 %v2026
    %v2040 = vpop.f32.mrf.mxu0
    %v2041 = vadd.f32 0.0, %v2040
    %v2042 = vpop.f32.mrf.mxu0
    %2043 = vdwg.mxu0
    %v2044 = vpack.c.bf16 %v2041, %v2041
    %v2047 = vunpack.c.l.b16 %v1129
    %v2048 = vunpack.c.l.b16 %v1130
    %v2049 = vpack.c.b16 %v2048, %v2047
    %v2052 = vsel %vm1309, %v2044, 0
    %2054 = vmatpush.bf16.msra.mxu0 0
    %2055 = vmatpush.bf16.msra.mxu0 0
    %2056 = vmatpush.bf16.msra.mxu0 0
    %2057 = vmatpush.bf16.msra.mxu0 0
    %2058 = vmatpush.bf16.msra.mxu0 0
    %2059 = vmatpush.bf16.msra.mxu0 0
    %2060 = vmatpush.bf16.msra.mxu0 0
    %2061 = vmatpush.bf16.msra.mxu0 %v2049
    %2062 = vmatmul.bf16.gmra.mxu0 %v2052
    %v2063 = vpop.f32.mrf.mxu0
    %v2064 = vadd.f32 0.0, %v2063
    %v2065 = vpop.f32.mrf.mxu0
    %2066 = vdwg.mxu0
    %v2067 = vadd.f32 %v1972, %v2064
    %v2068 = vld [vmem:[%s12] sm:$0x1]
    %v2070 = vperm.slane %v2068, 0
    %v2072 = vadd.f32 %v2067, %v2070
    %v2073 = vadd.f32 %v1053, %v2072
    %v2074 = vld [vmem:[%s17] sm:$0x1]
    %v2075 = vld [vmem:[%s18] sm:$0x1]
    %vm2076 = vcmask 1043456
    %v2077 = vsel %vm2076, %v2073, 0.0
    %2078 = vadd.xlane.f32.xlu0 %v2077
    %v2079 = vpop.xlane.xlu0 %2078
    %v2080 = vrcp.pop 128.0
    %v2081 = vmul.f32 128.0, %v2080
    %v2082 = vsub.f32 1.0, %v2081
    %v2083 = vmul.f32 %v2080, %v2082
    %v2084 = vadd.f32 %v2080, %v2083
    %vm2085 = vweird.f32 %v2080
    %v2086 = vsel %vm2085, %v2080, %v2084
    %v2087 = vmul.f32 %v2079, %v2086
    %v2088 = vsub.f32 %v2073, %v2087
    %v2089 = vmul.f32 %v2088, %v2088
    %v2090 = vsel %vm2076, %v2089, 0.0
    %2091 = vadd.xlane.f32.xlu0 %v2090
    %v2092 = vpop.xlane.xlu0 %2091
    %v2093 = vmul.f32 %v2092, %v2086
    %v2094 = vadd.f32 %v2093, 1e-05
    %v2095 = vrsqrt.pop %v2094
    %v2096 = vmul.f32 %v2095, %v2094
    %v2097 = vmul.f32 %v2096, %v2095
    %v2098 = vmul.f32 0.5, %v2097
    %v2099 = vsub.f32 1.5, %v2098
    %v2100 = vmul.f32 %v2095, %v2099
    %vm2101 = vweird.f32 %v2094
    %vm2102 = vweird.f32 %v2095
    %vm2103 = vmor %vm2101, %vm2102
    %v2104 = vsel %vm2103, %v2095, %v2100
    %v2105 = vmul.f32 %v2088, %v2104
    %v2107 = vperm.slane %v2074, 0
    %v2109 = vmul.f32 %v2105, %v2107
    %v2111 = vperm.slane %v2075, 0
    %v2113 = vadd.f32 %v2109, %v2111
    %v2114 = vld [vmem:[%s13] sm:$0xff]
    %v2115 = vld [vmem:[%s13 + $0x8] sm:$0xff]
    %v2116 = vld [vmem:[%s13 + $0x10] sm:$0xff]
    %v2117 = vld [vmem:[%s13 + $0x18] sm:$0xff]
    %v2118 = vld [vmem:[%s13 + $0x20] sm:$0xff]
    %v2119 = vld [vmem:[%s13 + $0x28] sm:$0xff]
    %v2120 = vld [vmem:[%s13 + $0x30] sm:$0xff]
    %v2121 = vld [vmem:[%s13 + $0x38] sm:$0xff]
    %v2122 = vld [vmem:[%s13 + $0x40] sm:$0xff]
    %v2123 = vld [vmem:[%s13 + $0x48] sm:$0xff]
    %v2124 = vld [vmem:[%s13 + $0x50] sm:$0xff]
    %v2125 = vld [vmem:[%s13 + $0x58] sm:$0xff]
    %v2126 = vld [vmem:[%s13 + $0x60] sm:$0xff]
    %v2127 = vld [vmem:[%s13 + $0x68] sm:$0xff]
    %v2128 = vld [vmem:[%s13 + $0x70] sm:$0xff]
    %v2129 = vld [vmem:[%s13 + $0x78] sm:$0xff]
    %v2130 = vpack.c.bf16 %v2113, %v2113
    %v2131 = vld [vmem:[%s14] sm:$0x3]
    %v2133 = vperm.slane %v2131, 0
    %v2134 = vperm.slane %v2131, 1
    %v2153 = vunpack.c.l.b16 %v2114
    %v2154 = vunpack.c.h.b16 %v2114
    %v2155 = vunpack.c.l.b16 %v2115
    %v2156 = vunpack.c.h.b16 %v2115
    %v2157 = vunpack.c.l.b16 %v2116
    %v2158 = vunpack.c.h.b16 %v2116
    %v2159 = vunpack.c.l.b16 %v2117
    %v2160 = vunpack.c.h.b16 %v2117
    %v2161 = vunpack.c.l.b16 %v2118
    %v2162 = vunpack.c.h.b16 %v2118
    %v2163 = vunpack.c.l.b16 %v2119
    %v2164 = vunpack.c.h.b16 %v2119
    %v2165 = vunpack.c.l.b16 %v2120
    %v2166 = vunpack.c.h.b16 %v2120
    %v2167 = vunpack.c.l.b16 %v2121
    %v2168 = vunpack.c.h.b16 %v2121
    %v2169 = vunpack.c.l.b16 %v2122
    %v2170 = vunpack.c.h.b16 %v2122
    %v2171 = vunpack.c.l.b16 %v2123
    %v2172 = vunpack.c.h.b16 %v2123
    %v2173 = vunpack.c.l.b16 %v2124
    %v2174 = vunpack.c.h.b16 %v2124
    %v2175 = vunpack.c.l.b16 %v2125
    %v2176 = vunpack.c.h.b16 %v2125
    %v2177 = vunpack.c.l.b16 %v2126
    %v2178 = vunpack.c.h.b16 %v2126
    %v2179 = vunpack.c.l.b16 %v2127
    %v2180 = vunpack.c.h.b16 %v2127
    %v2181 = vunpack.c.l.b16 %v2128
    %v2182 = vunpack.c.h.b16 %v2128
    %v2183 = vunpack.c.l.b16 %v2129
    %v2184 = vunpack.c.h.b16 %v2129
    %v2185 = vpack.c.b16 %v2155, %v2153
    %v2186 = vpack.c.b16 %v2156, %v2154
    %v2187 = vpack.c.b16 %v2159, %v2157
    %v2188 = vpack.c.b16 %v2160, %v2158
    %v2189 = vpack.c.b16 %v2163, %v2161
    %v2190 = vpack.c.b16 %v2164, %v2162
    %v2191 = vpack.c.b16 %v2167, %v2165
    %v2192 = vpack.c.b16 %v2168, %v2166
    %v2193 = vpack.c.b16 %v2171, %v2169
    %v2194 = vpack.c.b16 %v2172, %v2170
    %v2195 = vpack.c.b16 %v2175, %v2173
    %v2196 = vpack.c.b16 %v2176, %v2174
    %v2197 = vpack.c.b16 %v2179, %v2177
    %v2198 = vpack.c.b16 %v2180, %v2178
    %v2199 = vpack.c.b16 %v2183, %v2181
    %v2200 = vpack.c.b16 %v2184, %v2182
    %2217 = vmatpush.bf16.msra.mxu0 %v2199
    %2218 = vmatpush.bf16.msra.mxu0 %v2197
    %2219 = vmatpush.bf16.msra.mxu0 %v2195
    %2220 = vmatpush.bf16.msra.mxu0 %v2193
    %2221 = vmatpush.bf16.msra.mxu0 %v2191
    %2222 = vmatpush.bf16.msra.mxu0 %v2189
    %2223 = vmatpush.bf16.msra.mxu0 %v2187
    %2224 = vmatpush.bf16.msra.mxu0 %v2185
    %2225 = vmatmul.bf16.gmra.mxu0 %v2130
    %v2226 = vpop.f32.mrf.mxu0
    %v2227 = vadd.f32 %v2133, %v2226
    %v2228 = vpop.f32.mrf.mxu0
    %2229 = vdwg.mxu0
    %2230 = vmatpush.bf16.msra.mxu0 %v2200
    %2231 = vmatpush.bf16.msra.mxu0 %v2198
    %2232 = vmatpush.bf16.msra.mxu0 %v2196
    %2233 = vmatpush.bf16.msra.mxu0 %v2194
    %2234 = vmatpush.bf16.msra.mxu0 %v2192
    %2235 = vmatpush.bf16.msra.mxu0 %v2190
    %2236 = vmatpush.bf16.msra.mxu0 %v2188
    %2237 = vmatpush.bf16.msra.mxu0 %v2186
    %2238 = vmatmul.bf16.gmra.mxu0 %v2130
    %v2239 = vpop.f32.mrf.mxu0
    %v2240 = vadd.f32 %v2134, %v2239
    %v2241 = vpop.f32.mrf.mxu0
    %2242 = vdwg.mxu0
    %v2243 = vmul.f32 %v2227, 0.5
    %v2244 = vmul.f32 %v2240, 0.5
    %v2245 = vmul.f32 %v2227, %v2227
    %v2246 = vmul.f32 %v2240, %v2240
    %v2247 = vmul.f32 %v2245, %v2227
    %v2248 = vmul.f32 %v2246, %v2240
    %v2249 = vmul.f32 %v2247, 0.044715
    %v2250 = vmul.f32 %v2248, 0.044715
    %v2251 = vadd.f32 %v2227, %v2249
    %v2252 = vadd.f32 %v2240, %v2250
    %v2253 = vmul.f32 %v2251, 0.7978846
    %v2254 = vmul.f32 %v2252, 0.7978846
    %v2255 = vtanh.pop %v2253
    %v2256 = vtanh.pop %v2254
    %v2257 = vadd.f32 %v2255, 1.0
    %v2258 = vadd.f32 %v2256, 1.0
    %v2259 = vmul.f32 %v2243, %v2257
    %v2260 = vmul.f32 %v2244, %v2258
    %v2261 = vld [vmem:[%s15] sm:$0xf]
    %v2262 = vld [vmem:[%s15 + $0x4] sm:$0xf]
    %v2263 = vld [vmem:[%s15 + $0x8] sm:$0xf]
    %v2264 = vld [vmem:[%s15 + $0xc] sm:$0xf]
    %v2265 = vld [vmem:[%s15 + $0x10] sm:$0xf]
    %v2266 = vld [vmem:[%s15 + $0x14] sm:$0xf]
    %v2267 = vld [vmem:[%s15 + $0x18] sm:$0xf]
    %v2268 = vld [vmem:[%s15 + $0x1c] sm:$0xf]
    %v2269 = vld [vmem:[%s15 + $0x20] sm:$0xf]
    %v2270 = vld [vmem:[%s15 + $0x24] sm:$0xf]
    %v2271 = vld [vmem:[%s15 + $0x28] sm:$0xf]
    %v2272 = vld [vmem:[%s15 + $0x2c] sm:$0xf]
    %v2273 = vld [vmem:[%s15 + $0x30] sm:$0xf]
    %v2274 = vld [vmem:[%s15 + $0x34] sm:$0xf]
    %v2275 = vld [vmem:[%s15 + $0x38] sm:$0xf]
    %v2276 = vld [vmem:[%s15 + $0x3c] sm:$0xf]
    %v2277 = vld [vmem:[%s15 + $0x40] sm:$0xf]
    %v2278 = vld [vmem:[%s15 + $0x44] sm:$0xf]
    %v2279 = vld [vmem:[%s15 + $0x48] sm:$0xf]
    %v2280 = vld [vmem:[%s15 + $0x4c] sm:$0xf]
    %v2281 = vld [vmem:[%s15 + $0x50] sm:$0xf]
    %v2282 = vld [vmem:[%s15 + $0x54] sm:$0xf]
    %v2283 = vld [vmem:[%s15 + $0x58] sm:$0xf]
    %v2284 = vld [vmem:[%s15 + $0x5c] sm:$0xf]
    %v2285 = vld [vmem:[%s15 + $0x60] sm:$0xf]
    %v2286 = vld [vmem:[%s15 + $0x64] sm:$0xf]
    %v2287 = vld [vmem:[%s15 + $0x68] sm:$0xf]
    %v2288 = vld [vmem:[%s15 + $0x6c] sm:$0xf]
    %v2289 = vld [vmem:[%s15 + $0x70] sm:$0xf]
    %v2290 = vld [vmem:[%s15 + $0x74] sm:$0xf]
    %v2291 = vld [vmem:[%s15 + $0x78] sm:$0xf]
    %v2292 = vld [vmem:[%s15 + $0x7c] sm:$0xf]
    %v2293 = vpack.c.bf16 %v2259, %v2259
    %v2294 = vpack.c.bf16 %v2260, %v2260
    %v2295 = vld [vmem:[%s16] sm:$0x1]
    %v2297 = vperm.slane %v2295, 0
    %v2331 = vunpack.c.l.b16 %v2261
    %v2332 = vunpack.c.l.b16 %v2262
    %v2333 = vunpack.c.l.b16 %v2263
    %v2334 = vunpack.c.l.b16 %v2264
    %v2335 = vunpack.c.l.b16 %v2265
    %v2336 = vunpack.c.l.b16 %v2266
    %v2337 = vunpack.c.l.b16 %v2267
    %v2338 = vunpack.c.l.b16 %v2268
    %v2339 = vunpack.c.l.b16 %v2269
    %v2340 = vunpack.c.l.b16 %v2270
    %v2341 = vunpack.c.l.b16 %v2271
    %v2342 = vunpack.c.l.b16 %v2272
    %v2343 = vunpack.c.l.b16 %v2273
    %v2344 = vunpack.c.l.b16 %v2274
    %v2345 = vunpack.c.l.b16 %v2275
    %v2346 = vunpack.c.l.b16 %v2276
    %v2347 = vunpack.c.l.b16 %v2277
    %v2348 = vunpack.c.l.b16 %v2278
    %v2349 = vunpack.c.l.b16 %v2279
    %v2350 = vunpack.c.l.b16 %v2280
    %v2351 = vunpack.c.l.b16 %v2281
    %v2352 = vunpack.c.l.b16 %v2282
    %v2353 = vunpack.c.l.b16 %v2283
    %v2354 = vunpack.c.l.b16 %v2284
    %v2355 = vunpack.c.l.b16 %v2285
    %v2356 = vunpack.c.l.b16 %v2286
    %v2357 = vunpack.c.l.b16 %v2287
    %v2358 = vunpack.c.l.b16 %v2288
    %v2359 = vunpack.c.l.b16 %v2289
    %v2360 = vunpack.c.l.b16 %v2290
    %v2361 = vunpack.c.l.b16 %v2291
    %v2362 = vunpack.c.l.b16 %v2292
    %v2363 = vpack.c.b16 %v2332, %v2331
    %v2364 = vpack.c.b16 %v2334, %v2333
    %v2365 = vpack.c.b16 %v2336, %v2335
    %v2366 = vpack.c.b16 %v2338, %v2337
    %v2367 = vpack.c.b16 %v2340, %v2339
    %v2368 = vpack.c.b16 %v2342, %v2341
    %v2369 = vpack.c.b16 %v2344, %v2343
    %v2370 = vpack.c.b16 %v2346, %v2345
    %v2371 = vpack.c.b16 %v2348, %v2347
    %v2372 = vpack.c.b16 %v2350, %v2349
    %v2373 = vpack.c.b16 %v2352, %v2351
    %v2374 = vpack.c.b16 %v2354, %v2353
    %v2375 = vpack.c.b16 %v2356, %v2355
    %v2376 = vpack.c.b16 %v2358, %v2357
    %v2377 = vpack.c.b16 %v2360, %v2359
    %v2378 = vpack.c.b16 %v2362, %v2361
    %2395 = vmatpush.bf16.msra.mxu0 %v2370
    %2396 = vmatpush.bf16.msra.mxu0 %v2369
    %2397 = vmatpush.bf16.msra.mxu0 %v2368
    %2398 = vmatpush.bf16.msra.mxu0 %v2367
    %2399 = vmatpush.bf16.msra.mxu0 %v2366
    %2400 = vmatpush.bf16.msra.mxu0 %v2365
    %2401 = vmatpush.bf16.msra.mxu0 %v2364
    %2402 = vmatpush.bf16.msra.mxu0 %v2363
    %2403 = vmatmul.bf16.gmra.mxu0 %v2293
    %v2404 = vpop.f32.mrf.mxu0
    %v2405 = vadd.f32 %v2297, %v2404
    %v2406 = vpop.f32.mrf.mxu0
    %2407 = vdwg.mxu0
    %2408 = vmatpush.bf16.msra.mxu0 %v2378
    %2409 = vmatpush.bf16.msra.mxu0 %v2377
    %2410 = vmatpush.bf16.msra.mxu0 %v2376
    %2411 = vmatpush.bf16.msra.mxu0 %v2375
    %2412 = vmatpush.bf16.msra.mxu0 %v2374
    %2413 = vmatpush.bf16.msra.mxu0 %v2373
    %2414 = vmatpush.bf16.msra.mxu0 %v2372
    %2415 = vmatpush.bf16.msra.mxu0 %v2371
    %2416 = vmatmul.bf16.gmra.mxu0 %v2294
    %v2417 = vpop.f32.mrf.mxu0
    %v2418 = vadd.f32 %v2405, %v2417
    %v2419 = vpop.f32.mrf.mxu0
    %2420 = vdwg.mxu0
    %v2421 = vadd.f32 %v2113, %v2418
    %v2422 = vld [vmem:[%s19] sm:$0x1]
    %v2423 = vld [vmem:[%s20] sm:$0x1]
    %v2424 = vsel %vm2076, %v2421, 0.0
    %2425 = vadd.xlane.f32.xlu0 %v2424
    %v2426 = vpop.xlane.xlu0 %2425
    %v2427 = vmul.f32 %v2426, %v2086
    %v2428 = vsub.f32 %v2421, %v2427
    %v2429 = vmul.f32 %v2428, %v2428
    %v2430 = vsel %vm2076, %v2429, 0.0
    %2431 = vadd.xlane.f32.xlu0 %v2430
    %v2432 = vpop.xlane.xlu0 %2431
    %v2433 = vmul.f32 %v2432, %v2086
    %v2434 = vadd.f32 %v2433, 1e-05
    %v2435 = vrsqrt.pop %v2434
    %v2436 = vmul.f32 %v2435, %v2434
    %v2437 = vmul.f32 %v2436, %v2435
    %v2438 = vmul.f32 0.5, %v2437
    %v2439 = vsub.f32 1.5, %v2438
    %v2440 = vmul.f32 %v2435, %v2439
    %vm2441 = vweird.f32 %v2434
    %vm2442 = vweird.f32 %v2435
    %vm2443 = vmor %vm2441, %vm2442
    %v2444 = vsel %vm2443, %v2435, %v2440
    %v2445 = vmul.f32 %v2428, %v2444
    %v2447 = vperm.slane %v2422, 0
    %v2449 = vmul.f32 %v2445, %v2447
    %v2451 = vperm.slane %v2423, 0
    %v2453 = vadd.f32 %v2449, %v2451
    %s2454 = scalar_lea.vmem %s9, 192
    %v2455 = vld [vmem:[%s2454] sm:$0xff]
    %v2456 = vld [vmem:[%s2454 + $0x8] sm:$0xf]
    %v2457 = vld [vmem:[%s2454 + $0xc] sm:$0xff]
    %v2458 = vld [vmem:[%s2454 + $0x14] sm:$0xf]
    %v2459 = vld [vmem:[%s2454 + $0x18] sm:$0xff]
    %v2460 = vld [vmem:[%s2454 + $0x20] sm:$0xf]
    %v2461 = vld [vmem:[%s2454 + $0x24] sm:$0xff]
    %v2462 = vld [vmem:[%s2454 + $0x2c] sm:$0xf]
    %v2463 = vld [vmem:[%s2454 + $0x30] sm:$0xff]
    %v2464 = vld [vmem:[%s2454 + $0x38] sm:$0xf]
    %v2465 = vld [vmem:[%s2454 + $0x3c] sm:$0xff]
    %v2466 = vld [vmem:[%s2454 + $0x44] sm:$0xf]
    %v2467 = vld [vmem:[%s2454 + $0x48] sm:$0xff]
    %v2468 = vld [vmem:[%s2454 + $0x50] sm:$0xf]
    %v2469 = vld [vmem:[%s2454 + $0x54] sm:$0xff]
    %v2470 = vld [vmem:[%s2454 + $0x5c] sm:$0xf]
    %v2471 = vld [vmem:[%s2454 + $0x60] sm:$0xff]
    %v2472 = vld [vmem:[%s2454 + $0x68] sm:$0xf]
    %v2473 = vld [vmem:[%s2454 + $0x6c] sm:$0xff]
    %v2474 = vld [vmem:[%s2454 + $0x74] sm:$0xf]
    %v2475 = vld [vmem:[%s2454 + $0x78] sm:$0xff]
    %v2476 = vld [vmem:[%s2454 + $0x80] sm:$0xf]
    %v2477 = vld [vmem:[%s2454 + $0x84] sm:$0xff]
    %v2478 = vld [vmem:[%s2454 + $0x8c] sm:$0xf]
    %v2479 = vld [vmem:[%s2454 + $0x90] sm:$0xff]
    %v2480 = vld [vmem:[%s2454 + $0x98] sm:$0xf]
    %v2481 = vld [vmem:[%s2454 + $0x9c] sm:$0xff]
    %v2482 = vld [vmem:[%s2454 + $0xa4] sm:$0xf]
    %v2483 = vld [vmem:[%s2454 + $0xa8] sm:$0xff]
    %v2484 = vld [vmem:[%s2454 + $0xb0] sm:$0xf]
    %v2485 = vld [vmem:[%s2454 + $0xb4] sm:$0xff]
    %v2486 = vld [vmem:[%s2454 + $0xbc] sm:$0xf]
    %s2487 = scalar_lea.vmem [#allocation14], 64
    %v2488 = vld [vmem:[%s2487] sm:$0xf]
    %v2489 = vld [vmem:[%s2487 + $0x4] sm:$0xf]
    %v2490 = vld [vmem:[%s2487 + $0x8] sm:$0xf]
    %v2491 = vld [vmem:[%s2487 + $0xc] sm:$0xf]
    %v2492 = vld [vmem:[%s2487 + $0x10] sm:$0xf]
    %v2493 = vld [vmem:[%s2487 + $0x14] sm:$0xf]
    %v2494 = vld [vmem:[%s2487 + $0x18] sm:$0xf]
    %v2495 = vld [vmem:[%s2487 + $0x1c] sm:$0xf]
    %v2496 = vld [vmem:[%s2487 + $0x20] sm:$0xf]
    %v2497 = vld [vmem:[%s2487 + $0x24] sm:$0xf]
    %v2498 = vld [vmem:[%s2487 + $0x28] sm:$0xf]
    %v2499 = vld [vmem:[%s2487 + $0x2c] sm:$0xf]
    %v2500 = vld [vmem:[%s2487 + $0x30] sm:$0xf]
    %v2501 = vld [vmem:[%s2487 + $0x34] sm:$0xf]
    %v2502 = vld [vmem:[%s2487 + $0x38] sm:$0xf]
    %v2503 = vld [vmem:[%s2487 + $0x3c] sm:$0xf]
    %v2504 = vpack.c.bf16 %v2453, %v2453
    %s2505 = scalar_lea.vmem %s10, 3
    %v2506 = vld [vmem:[%s2505] sm:$0x7]
    %v2508 = vperm.slane %v2506, 0
    %v2509 = vperm.slane %v2506, 1
    %v2510 = vperm.slane %v2506, 2
    %v2546 = vunpack.c.l.b16 %v2455
    %v2547 = vunpack.c.h.b16 %v2455
    %v2548 = vunpack.c.l.b16 %v2456
    %v2549 = vunpack.c.l.b16 %v2457
    %v2550 = vunpack.c.h.b16 %v2457
    %v2551 = vunpack.c.l.b16 %v2458
    %v2552 = vunpack.c.l.b16 %v2459
    %v2553 = vunpack.c.h.b16 %v2459
    %v2554 = vunpack.c.l.b16 %v2460
    %v2555 = vunpack.c.l.b16 %v2461
    %v2556 = vunpack.c.h.b16 %v2461
    %v2557 = vunpack.c.l.b16 %v2462
    %v2558 = vunpack.c.l.b16 %v2463
    %v2559 = vunpack.c.h.b16 %v2463
    %v2560 = vunpack.c.l.b16 %v2464
    %v2561 = vunpack.c.l.b16 %v2465
    %v2562 = vunpack.c.h.b16 %v2465
    %v2563 = vunpack.c.l.b16 %v2466
    %v2564 = vunpack.c.l.b16 %v2467
    %v2565 = vunpack.c.h.b16 %v2467
    %v2566 = vunpack.c.l.b16 %v2468
    %v2567 = vunpack.c.l.b16 %v2469
    %v2568 = vunpack.c.h.b16 %v2469
    %v2569 = vunpack.c.l.b16 %v2470
    %v2570 = vunpack.c.l.b16 %v2471
    %v2571 = vunpack.c.h.b16 %v2471
    %v2572 = vunpack.c.l.b16 %v2472
    %v2573 = vunpack.c.l.b16 %v2473
    %v2574 = vunpack.c.h.b16 %v2473
    %v2575 = vunpack.c.l.b16 %v2474
    %v2576 = vunpack.c.l.b16 %v2475
    %v2577 = vunpack.c.h.b16 %v2475
    %v2578 = vunpack.c.l.b16 %v2476
    %v2579 = vunpack.c.l.b16 %v2477
    %v2580 = vunpack.c.h.b16 %v2477
    %v2581 = vunpack.c.l.b16 %v2478
    %v2582 = vunpack.c.l.b16 %v2479
    %v2583 = vunpack.c.h.b16 %v2479
    %v2584 = vunpack.c.l.b16 %v2480
    %v2585 = vunpack.c.l.b16 %v2481
    %v2586 = vunpack.c.h.b16 %v2481
    %v2587 = vunpack.c.l.b16 %v2482
    %v2588 = vunpack.c.l.b16 %v2483
    %v2589 = vunpack.c.h.b16 %v2483
    %v2590 = vunpack.c.l.b16 %v2484
    %v2591 = vunpack.c.l.b16 %v2485
    %v2592 = vunpack.c.h.b16 %v2485
    %v2593 = vunpack.c.l.b16 %v2486
    %v2594 = vpack.c.b16 %v2549, %v2546
    %v2595 = vpack.c.b16 %v2550, %v2547
    %v2596 = vpack.c.b16 %v2551, %v2548
    %v2597 = vpack.c.b16 %v2555, %v2552
    %v2598 = vpack.c.b16 %v2556, %v2553
    %v2599 = vpack.c.b16 %v2557, %v2554
    %v2600 = vpack.c.b16 %v2561, %v2558
    %v2601 = vpack.c.b16 %v2562, %v2559
    %v2602 = vpack.c.b16 %v2563, %v2560
    %v2603 = vpack.c.b16 %v2567, %v2564
    %v2604 = vpack.c.b16 %v2568, %v2565
    %v2605 = vpack.c.b16 %v2569, %v2566
    %v2606 = vpack.c.b16 %v2573, %v2570
    %v2607 = vpack.c.b16 %v2574, %v2571
    %v2608 = vpack.c.b16 %v2575, %v2572
    %v2609 = vpack.c.b16 %v2579, %v2576
    %v2610 = vpack.c.b16 %v2580, %v2577
    %v2611 = vpack.c.b16 %v2581, %v2578
    %v2612 = vpack.c.b16 %v2585, %v2582
    %v2613 = vpack.c.b16 %v2586, %v2583
    %v2614 = vpack.c.b16 %v2587, %v2584
    %v2615 = vpack.c.b16 %v2591, %v2588
    %v2616 = vpack.c.b16 %v2592, %v2589
    %v2617 = vpack.c.b16 %v2593, %v2590
    %2642 = vmatpush.bf16.msra.mxu0 %v2615
    %2643 = vmatpush.bf16.msra.mxu0 %v2612
    %2644 = vmatpush.bf16.msra.mxu0 %v2609
    %2645 = vmatpush.bf16.msra.mxu0 %v2606
    %2646 = vmatpush.bf16.msra.mxu0 %v2603
    %2647 = vmatpush.bf16.msra.mxu0 %v2600
    %2648 = vmatpush.bf16.msra.mxu0 %v2597
    %2649 = vmatpush.bf16.msra.mxu0 %v2594
    %2650 = vmatmul.bf16.gmra.mxu0 %v2504
    %v2651 = vpop.f32.mrf.mxu0
    %v2652 = vadd.f32 %v2508, %v2651
    %v2653 = vpop.f32.mrf.mxu0
    %2654 = vdwg.mxu0
    %2655 = vmatpush.bf16.msra.mxu0 %v2616
    %2656 = vmatpush.bf16.msra.mxu0 %v2613
    %2657 = vmatpush.bf16.msra.mxu0 %v2610
    %2658 = vmatpush.bf16.msra.mxu0 %v2607
    %2659 = vmatpush.bf16.msra.mxu0 %v2604
    %2660 = vmatpush.bf16.msra.mxu0 %v2601
    %2661 = vmatpush.bf16.msra.mxu0 %v2598
    %2662 = vmatpush.bf16.msra.mxu0 %v2595
    %2663 = vmatmul.bf16.gmra.mxu0 %v2504
    %v2664 = vpop.f32.mrf.mxu0
    %v2665 = vadd.f32 %v2509, %v2664
    %v2666 = vpop.f32.mrf.mxu0
    %2667 = vdwg.mxu0
    %2668 = vmatpush.bf16.msra.mxu0 %v2617
    %2669 = vmatpush.bf16.msra.mxu0 %v2614
    %2670 = vmatpush.bf16.msra.mxu0 %v2611
    %2671 = vmatpush.bf16.msra.mxu0 %v2608
    %2672 = vmatpush.bf16.msra.mxu0 %v2605
    %2673 = vmatpush.bf16.msra.mxu0 %v2602
    %2674 = vmatpush.bf16.msra.mxu0 %v2599
    %2675 = vmatpush.bf16.msra.mxu0 %v2596
    %2676 = vmatmul.bf16.gmra.mxu0 %v2504
    %v2677 = vpop.f32.mrf.mxu0
    %v2678 = vadd.f32 %v2510, %v2677
    %v2679 = vpop.f32.mrf.mxu0
    %2680 = vdwg.mxu0
    %v2681 = vpack.c.bf16 %v2652, %v2652
    %v2682 = vpack.c.bf16 %v2665, %v2665
    %v2684 = vsel %vm1309, %v2681, 0
    %v2687 = vsel %vm1309, %v2682, 0
    %2689 = vmatpush.bf16.xpose.msra.mxu0 0
    %2690 = vmatpush.bf16.xpose.msra.mxu0 0
    %2691 = vmatpush.bf16.xpose.msra.mxu0 0
    %2692 = vmatpush.bf16.xpose.msra.mxu0 0
    %2693 = vmatpush.bf16.xpose.msra.mxu0 0
    %2694 = vmatpush.bf16.xpose.msra.mxu0 0
    %2695 = vmatpush.bf16.xpose.msra.mxu0 0
    %2696 = vmatpush.bf16.xpose.msra.mxu0 %v2687
    %2697 = vmatmul.bf16.gmra.mxu0 %v2684
    %v2698 = vpop.f32.mrf.mxu0
    %v2699 = vadd.f32 0.0, %v2698
    %v2700 = vpop.f32.mrf.mxu0
    %2701 = vdwg.mxu0
    %v2702 = vmul.f32 %v2699, 0.25
    %v2703 = vsel %vm1082, %v2702, -1e+30
    %v2704 = vsel %vm1331, %v2703, -inf
    %2705 = vmax.xlane.f32.xlu0 %v2704
    %v2706 = vpop.xlane.xlu0 %2705
    %v2707 = vsub.f32 %v2703, %v2706
    %v2708 = vmul.f32 %v2707, 1.442695
    %v2709 = vpow.pop %v2708
    %v2710 = vsel %vm1331, %v2709, 0.0
    %2711 = vadd.xlane.f32.xlu0 %v2710
    %v2712 = vpop.xlane.xlu0 %2711
    %v2713 = vrcp.pop %v2712
    %v2714 = vmul.f32 %v2712, %v2713
    %v2715 = vsub.f32 1.0, %v2714
    %v2716 = vmul.f32 %v2713, %v2715
    %v2717 = vadd.f32 %v2713, %v2716
    %vm2718 = vweird.f32 %v2712
    %vm2719 = vweird.f32 %v2713
    %vm2720 = vmor %vm2718, %vm2719
    %v2721 = vsel %vm2720, %v2713, %v2717
    %v2722 = vand.u32 2147483647, %v2712
    %vm2723 = vcmp.eq.f32.partialorder %v2722, 8.507059e+37
    %v2724 = vand.u32 %v2712, 2147483648
    %v2725 = vor.u32 1.1754944e-38, %v2724
    %v2726 = vsel %vm2723, %v2725, %v2721
    %v2727 = vmul.f32 %v2709, %v2726
    %v2728 = vpack.c.bf16 %v2727, %v2727
    %v2729 = vpack.c.bf16 %v2678, %v2678
    %v2731 = vsel %vm1358, %v2728, 0
    %v2734 = vsel %vm1052, %v2729, 0
    %2736 = vmatpush.bf16.msra.mxu0 0
    %2737 = vmatpush.bf16.msra.mxu0 0
    %2738 = vmatpush.bf16.msra.mxu0 0
    %2739 = vmatpush.bf16.msra.mxu0 0
    %2740 = vmatpush.bf16.msra.mxu0 0
    %2741 = vmatpush.bf16.msra.mxu0 0
    %2742 = vmatpush.bf16.msra.mxu0 0
    %2743 = vmatpush.bf16.msra.mxu0 %v2734
    %2744 = vmatmul.bf16.gmra.mxu0 %v2731
    %v2745 = vpop.f32.mrf.mxu0
    %v2746 = vadd.f32 0.0, %v2745
    %v2747 = vpop.f32.mrf.mxu0
    %2748 = vdwg.mxu0
    %v2749 = vpack.c.bf16 %v2746, %v2746
    %2751 = vrot.lane.b32.xlu0 %v2681, 112
    %v2752 = vpop.permute.xlu0 %2751
    %2754 = vrot.lane.b32.xlu0 %v2682, 112
    %v2755 = vpop.permute.xlu0 %2754
    %v2757 = vsel %vm1309, %v2752, 0
    %v2760 = vsel %vm1309, %v2755, 0
    %2762 = vmatpush.bf16.xpose.msra.mxu0 0
    %2763 = vmatpush.bf16.xpose.msra.mxu0 0
    %2764 = vmatpush.bf16.xpose.msra.mxu0 0
    %2765 = vmatpush.bf16.xpose.msra.mxu0 0
    %2766 = vmatpush.bf16.xpose.msra.mxu0 0
    %2767 = vmatpush.bf16.xpose.msra.mxu0 0
    %2768 = vmatpush.bf16.xpose.msra.mxu0 0
    %2769 = vmatpush.bf16.xpose.msra.mxu0 %v2760
    %2770 = vmatmul.bf16.gmra.mxu0 %v2757
    %v2771 = vpop.f32.mrf.mxu0
    %v2772 = vadd.f32 0.0, %v2771
    %v2773 = vpop.f32.mrf.mxu0
    %2774 = vdwg.mxu0
    %v2775 = vmul.f32 %v2772, 0.25
    %v2776 = vsel %vm1082, %v2775, -1e+30
    %v2777 = vsel %vm1331, %v2776, -inf
    %2778 = vmax.xlane.f32.xlu0 %v2777
    %v2779 = vpop.xlane.xlu0 %2778
    %v2780 = vsub.f32 %v2776, %v2779
    %v2781 = vmul.f32 %v2780, 1.442695
    %v2782 = vpow.pop %v2781
    %v2783 = vsel %vm1331, %v2782, 0.0
    %2784 = vadd.xlane.f32.xlu0 %v2783
    %v2785 = vpop.xlane.xlu0 %2784
    %v2786 = vrcp.pop %v2785
    %v2787 = vmul.f32 %v2785, %v2786
    %v2788 = vsub.f32 1.0, %v2787
    %v2789 = vmul.f32 %v2786, %v2788
    %v2790 = vadd.f32 %v2786, %v2789
    %vm2791 = vweird.f32 %v2785
    %vm2792 = vweird.f32 %v2786
    %vm2793 = vmor %vm2791, %vm2792
    %v2794 = vsel %vm2793, %v2786, %v2790
    %v2795 = vand.u32 2147483647, %v2785
    %vm2796 = vcmp.eq.f32.partialorder %v2795, 8.507059e+37
    %v2797 = vand.u32 %v2785, 2147483648
    %v2798 = vor.u32 1.1754944e-38, %v2797
    %v2799 = vsel %vm2796, %v2798, %v2794
    %v2800 = vmul.f32 %v2782, %v2799
    %v2801 = vpack.c.bf16 %v2800, %v2800
    %2803 = vrot.lane.b32.xlu0 %v2729, 112
    %v2804 = vpop.permute.xlu0 %2803
    %v2806 = vsel %vm1358, %v2801, 0
    %v2809 = vsel %vm1052, %v2804, 0
    %2811 = vmatpush.bf16.msra.mxu0 0
    %2812 = vmatpush.bf16.msra.mxu0 0
    %2813 = vmatpush.bf16.msra.mxu0 0
    %2814 = vmatpush.bf16.msra.mxu0 0
    %2815 = vmatpush.bf16.msra.mxu0 0
    %2816 = vmatpush.bf16.msra.mxu0 0
    %2817 = vmatpush.bf16.msra.mxu0 0
    %2818 = vmatpush.bf16.msra.mxu0 %v2809
    %2819 = vmatmul.bf16.gmra.mxu0 %v2806
    %v2820 = vpop.f32.mrf.mxu0
    %v2821 = vadd.f32 0.0, %v2820
    %v2822 = vpop.f32.mrf.mxu0
    %2823 = vdwg.mxu0
    %v2824 = vpack.c.bf16 %v2821, %v2821
    %v2827 = vunpack.c.l.b16 %v2490
    %v2828 = vunpack.c.l.b16 %v2491
    %v2829 = vpack.c.b16 %v2828, %v2827
    %v2832 = vsel %vm1309, %v2824, 0
    %2834 = vmatpush.bf16.msra.mxu0 0
    %2835 = vmatpush.bf16.msra.mxu0 0
    %2836 = vmatpush.bf16.msra.mxu0 0
    %2837 = vmatpush.bf16.msra.mxu0 0
    %2838 = vmatpush.bf16.msra.mxu0 0
    %2839 = vmatpush.bf16.msra.mxu0 0
    %2840 = vmatpush.bf16.msra.mxu0 0
    %2841 = vmatpush.bf16.msra.mxu0 %v2829
    %2842 = vmatmul.bf16.gmra.mxu0 %v2832
    %v2843 = vpop.f32.mrf.mxu0
    %v2844 = vadd.f32 0.0, %v2843
    %v2845 = vpop.f32.mrf.mxu0
    %2846 = vdwg.mxu0
    %v2849 = vunpack.c.l.b16 %v2488
    %v2850 = vunpack.c.l.b16 %v2489
    %v2851 = vpack.c.b16 %v2850, %v2849
    %v2854 = vsel %vm1309, %v2749, 0
    %2856 = vmatpush.bf16.msra.mxu0 0
    %2857 = vmatpush.bf16.msra.mxu0 0
    %2858 = vmatpush.bf16.msra.mxu0 0
    %2859 = vmatpush.bf16.msra.mxu0 0
    %2860 = vmatpush.bf16.msra.mxu0 0
    %2861 = vmatpush.bf16.msra.mxu0 0
    %2862 = vmatpush.bf16.msra.mxu0 0
    %2863 = vmatpush.bf16.msra.mxu0 %v2851
    %2864 = vmatmul.bf16.gmra.mxu0 %v2854
    %v2865 = vpop.f32.mrf.mxu0
    %v2866 = vadd.f32 %v2844, %v2865
    %v2867 = vpop.f32.mrf.mxu0
    %2868 = vdwg.mxu0
    %2869 = vrot.lane.b32.xlu0 %v2681, 96
    %v2870 = vpop.permute.xlu0 %2869
    %2871 = vrot.lane.b32.xlu0 %v2682, 96
    %v2872 = vpop.permute.xlu0 %2871
    %v2874 = vsel %vm1309, %v2870, 0
    %v2877 = vsel %vm1309, %v2872, 0
    %2879 = vmatpush.bf16.xpose.msra.mxu0 0
    %2880 = vmatpush.bf16.xpose.msra.mxu0 0
    %2881 = vmatpush.bf16.xpose.msra.mxu0 0
    %2882 = vmatpush.bf16.xpose.msra.mxu0 0
    %2883 = vmatpush.bf16.xpose.msra.mxu0 0
    %2884 = vmatpush.bf16.xpose.msra.mxu0 0
    %2885 = vmatpush.bf16.xpose.msra.mxu0 0
    %2886 = vmatpush.bf16.xpose.msra.mxu0 %v2877
    %2887 = vmatmul.bf16.gmra.mxu0 %v2874
    %v2888 = vpop.f32.mrf.mxu0
    %v2889 = vadd.f32 0.0, %v2888
    %v2890 = vpop.f32.mrf.mxu0
    %2891 = vdwg.mxu0
    %v2892 = vmul.f32 %v2889, 0.25
    %v2893 = vsel %vm1082, %v2892, -1e+30
    %v2894 = vsel %vm1331, %v2893, -inf
    %2895 = vmax.xlane.f32.xlu0 %v2894
    %v2896 = vpop.xlane.xlu0 %2895
    %v2897 = vsub.f32 %v2893, %v2896
    %v2898 = vmul.f32 %v2897, 1.442695
    %v2899 = vpow.pop %v2898
    %v2900 = vsel %vm1331, %v2899, 0.0
    %2901 = vadd.xlane.f32.xlu0 %v2900
    %v2902 = vpop.xlane.xlu0 %2901
    %v2903 = vrcp.pop %v2902
    %v2904 = vmul.f32 %v2902, %v2903
    %v2905 = vsub.f32 1.0, %v2904
    %v2906 = vmul.f32 %v2903, %v2905
    %v2907 = vadd.f32 %v2903, %v2906
    %vm2908 = vweird.f32 %v2902
    %vm2909 = vweird.f32 %v2903
    %vm2910 = vmor %vm2908, %vm2909
    %v2911 = vsel %vm2910, %v2903, %v2907
    %v2912 = vand.u32 2147483647, %v2902
    %vm2913 = vcmp.eq.f32.partialorder %v2912, 8.507059e+37
    %v2914 = vand.u32 %v2902, 2147483648
    %v2915 = vor.u32 1.1754944e-38, %v2914
    %v2916 = vsel %vm2913, %v2915, %v2911
    %v2917 = vmul.f32 %v2899, %v2916
    %v2918 = vpack.c.bf16 %v2917, %v2917
    %2919 = vrot.lane.b32.xlu0 %v2729, 96
    %v2920 = vpop.permute.xlu0 %2919
    %v2922 = vsel %vm1358, %v2918, 0
    %v2925 = vsel %vm1052, %v2920, 0
    %2927 = vmatpush.bf16.msra.mxu0 0
    %2928 = vmatpush.bf16.msra.mxu0 0
    %2929 = vmatpush.bf16.msra.mxu0 0
    %2930 = vmatpush.bf16.msra.mxu0 0
    %2931 = vmatpush.bf16.msra.mxu0 0
    %2932 = vmatpush.bf16.msra.mxu0 0
    %2933 = vmatpush.bf16.msra.mxu0 0
    %2934 = vmatpush.bf16.msra.mxu0 %v2925
    %2935 = vmatmul.bf16.gmra.mxu0 %v2922
    %v2936 = vpop.f32.mrf.mxu0
    %v2937 = vadd.f32 0.0, %v2936
    %v2938 = vpop.f32.mrf.mxu0
    %2939 = vdwg.mxu0
    %v2940 = vpack.c.bf16 %v2937, %v2937
    %v2943 = vunpack.c.l.b16 %v2492
    %v2944 = vunpack.c.l.b16 %v2493
    %v2945 = vpack.c.b16 %v2944, %v2943
    %v2948 = vsel %vm1309, %v2940, 0
    %2950 = vmatpush.bf16.msra.mxu0 0
    %2951 = vmatpush.bf16.msra.mxu0 0
    %2952 = vmatpush.bf16.msra.mxu0 0
    %2953 = vmatpush.bf16.msra.mxu0 0
    %2954 = vmatpush.bf16.msra.mxu0 0
    %2955 = vmatpush.bf16.msra.mxu0 0
    %2956 = vmatpush.bf16.msra.mxu0 0
    %2957 = vmatpush.bf16.msra.mxu0 %v2945
    %2958 = vmatmul.bf16.gmra.mxu0 %v2948
    %v2959 = vpop.f32.mrf.mxu0
    %v2960 = vadd.f32 0.0, %v2959
    %v2961 = vpop.f32.mrf.mxu0
    %2962 = vdwg.mxu0
    %v2963 = vadd.f32 %v2866, %v2960
    %2964 = vrot.lane.b32.xlu0 %v2681, 80
    %v2965 = vpop.permute.xlu0 %2964
    %2966 = vrot.lane.b32.xlu0 %v2682, 80
    %v2967 = vpop.permute.xlu0 %2966
    %v2969 = vsel %vm1309, %v2965, 0
    %v2972 = vsel %vm1309, %v2967, 0
    %2974 = vmatpush.bf16.xpose.msra.mxu0 0
    %2975 = vmatpush.bf16.xpose.msra.mxu0 0
    %2976 = vmatpush.bf16.xpose.msra.mxu0 0
    %2977 = vmatpush.bf16.xpose.msra.mxu0 0
    %2978 = vmatpush.bf16.xpose.msra.mxu0 0
    %2979 = vmatpush.bf16.xpose.msra.mxu0 0
    %2980 = vmatpush.bf16.xpose.msra.mxu0 0
    %2981 = vmatpush.bf16.xpose.msra.mxu0 %v2972
    %2982 = vmatmul.bf16.gmra.mxu0 %v2969
    %v2983 = vpop.f32.mrf.mxu0
    %v2984 = vadd.f32 0.0, %v2983
    %v2985 = vpop.f32.mrf.mxu0
    %2986 = vdwg.mxu0
    %v2987 = vmul.f32 %v2984, 0.25
    %v2988 = vsel %vm1082, %v2987, -1e+30
    %v2989 = vsel %vm1331, %v2988, -inf
    %2990 = vmax.xlane.f32.xlu0 %v2989
    %v2991 = vpop.xlane.xlu0 %2990
    %v2992 = vsub.f32 %v2988, %v2991
    %v2993 = vmul.f32 %v2992, 1.442695
    %v2994 = vpow.pop %v2993
    %v2995 = vsel %vm1331, %v2994, 0.0
    %2996 = vadd.xlane.f32.xlu0 %v2995
    %v2997 = vpop.xlane.xlu0 %2996
    %v2998 = vrcp.pop %v2997
    %v2999 = vmul.f32 %v2997, %v2998
    %v3000 = vsub.f32 1.0, %v2999
    %v3001 = vmul.f32 %v2998, %v3000
    %v3002 = vadd.f32 %v2998, %v3001
    %vm3003 = vweird.f32 %v2997
    %vm3004 = vweird.f32 %v2998
    %vm3005 = vmor %vm3003, %vm3004
    %v3006 = vsel %vm3005, %v2998, %v3002
    %v3007 = vand.u32 2147483647, %v2997
    %vm3008 = vcmp.eq.f32.partialorder %v3007, 8.507059e+37
    %v3009 = vand.u32 %v2997, 2147483648
    %v3010 = vor.u32 1.1754944e-38, %v3009
    %v3011 = vsel %vm3008, %v3010, %v3006
    %v3012 = vmul.f32 %v2994, %v3011
    %v3013 = vpack.c.bf16 %v3012, %v3012
    %3014 = vrot.lane.b32.xlu0 %v2729, 80
    %v3015 = vpop.permute.xlu0 %3014
    %v3017 = vsel %vm1358, %v3013, 0
    %v3020 = vsel %vm1052, %v3015, 0
    %3022 = vmatpush.bf16.msra.mxu0 0
    %3023 = vmatpush.bf16.msra.mxu0 0
    %3024 = vmatpush.bf16.msra.mxu0 0
    %3025 = vmatpush.bf16.msra.mxu0 0
    %3026 = vmatpush.bf16.msra.mxu0 0
    %3027 = vmatpush.bf16.msra.mxu0 0
    %3028 = vmatpush.bf16.msra.mxu0 0
    %3029 = vmatpush.bf16.msra.mxu0 %v3020
    %3030 = vmatmul.bf16.gmra.mxu0 %v3017
    %v3031 = vpop.f32.mrf.mxu0
    %v3032 = vadd.f32 0.0, %v3031
    %v3033 = vpop.f32.mrf.mxu0
    %3034 = vdwg.mxu0
    %v3035 = vpack.c.bf16 %v3032, %v3032
    %v3038 = vunpack.c.l.b16 %v2494
    %v3039 = vunpack.c.l.b16 %v2495
    %v3040 = vpack.c.b16 %v3039, %v3038
    %v3043 = vsel %vm1309, %v3035, 0
    %3045 = vmatpush.bf16.msra.mxu0 0
    %3046 = vmatpush.bf16.msra.mxu0 0
    %3047 = vmatpush.bf16.msra.mxu0 0
    %3048 = vmatpush.bf16.msra.mxu0 0
    %3049 = vmatpush.bf16.msra.mxu0 0
    %3050 = vmatpush.bf16.msra.mxu0 0
    %3051 = vmatpush.bf16.msra.mxu0 0
    %3052 = vmatpush.bf16.msra.mxu0 %v3040
    %3053 = vmatmul.bf16.gmra.mxu0 %v3043
    %v3054 = vpop.f32.mrf.mxu0
    %v3055 = vadd.f32 0.0, %v3054
    %v3056 = vpop.f32.mrf.mxu0
    %3057 = vdwg.mxu0
    %v3058 = vadd.f32 %v2963, %v3055
    %3059 = vrot.lane.b32.xlu0 %v2681, 64
    %v3060 = vpop.permute.xlu0 %3059
    %3061 = vrot.lane.b32.xlu0 %v2682, 64
    %v3062 = vpop.permute.xlu0 %3061
    %v3064 = vsel %vm1309, %v3060, 0
    %v3067 = vsel %vm1309, %v3062, 0
    %3069 = vmatpush.bf16.xpose.msra.mxu0 0
    %3070 = vmatpush.bf16.xpose.msra.mxu0 0
    %3071 = vmatpush.bf16.xpose.msra.mxu0 0
    %3072 = vmatpush.bf16.xpose.msra.mxu0 0
    %3073 = vmatpush.bf16.xpose.msra.mxu0 0
    %3074 = vmatpush.bf16.xpose.msra.mxu0 0
    %3075 = vmatpush.bf16.xpose.msra.mxu0 0
    %3076 = vmatpush.bf16.xpose.msra.mxu0 %v3067
    %3077 = vmatmul.bf16.gmra.mxu0 %v3064
    %v3078 = vpop.f32.mrf.mxu0
    %v3079 = vadd.f32 0.0, %v3078
    %v3080 = vpop.f32.mrf.mxu0
    %3081 = vdwg.mxu0
    %v3082 = vmul.f32 %v3079, 0.25
    %v3083 = vsel %vm1082, %v3082, -1e+30
    %v3084 = vsel %vm1331, %v3083, -inf
    %3085 = vmax.xlane.f32.xlu0 %v3084
    %v3086 = vpop.xlane.xlu0 %3085
    %v3087 = vsub.f32 %v3083, %v3086
    %v3088 = vmul.f32 %v3087, 1.442695
    %v3089 = vpow.pop %v3088
    %v3090 = vsel %vm1331, %v3089, 0.0
    %3091 = vadd.xlane.f32.xlu0 %v3090
    %v3092 = vpop.xlane.xlu0 %3091
    %v3093 = vrcp.pop %v3092
    %v3094 = vmul.f32 %v3092, %v3093
    %v3095 = vsub.f32 1.0, %v3094
    %v3096 = vmul.f32 %v3093, %v3095
    %v3097 = vadd.f32 %v3093, %v3096
    %vm3098 = vweird.f32 %v3092
    %vm3099 = vweird.f32 %v3093
    %vm3100 = vmor %vm3098, %vm3099
    %v3101 = vsel %vm3100, %v3093, %v3097
    %v3102 = vand.u32 2147483647, %v3092
    %vm3103 = vcmp.eq.f32.partialorder %v3102, 8.507059e+37
    %v3104 = vand.u32 %v3092, 2147483648
    %v3105 = vor.u32 1.1754944e-38, %v3104
    %v3106 = vsel %vm3103, %v3105, %v3101
    %v3107 = vmul.f32 %v3089, %v3106
    %v3108 = vpack.c.bf16 %v3107, %v3107
    %3109 = vrot.lane.b32.xlu0 %v2729, 64
    %v3110 = vpop.permute.xlu0 %3109
    %v3112 = vsel %vm1358, %v3108, 0
    %v3115 = vsel %vm1052, %v3110, 0
    %3117 = vmatpush.bf16.msra.mxu0 0
    %3118 = vmatpush.bf16.msra.mxu0 0
    %3119 = vmatpush.bf16.msra.mxu0 0
    %3120 = vmatpush.bf16.msra.mxu0 0
    %3121 = vmatpush.bf16.msra.mxu0 0
    %3122 = vmatpush.bf16.msra.mxu0 0
    %3123 = vmatpush.bf16.msra.mxu0 0
    %3124 = vmatpush.bf16.msra.mxu0 %v3115
    %3125 = vmatmul.bf16.gmra.mxu0 %v3112
    %v3126 = vpop.f32.mrf.mxu0
    %v3127 = vadd.f32 0.0, %v3126
    %v3128 = vpop.f32.mrf.mxu0
    %3129 = vdwg.mxu0
    %v3130 = vpack.c.bf16 %v3127, %v3127
    %v3133 = vunpack.c.l.b16 %v2496
    %v3134 = vunpack.c.l.b16 %v2497
    %v3135 = vpack.c.b16 %v3134, %v3133
    %v3138 = vsel %vm1309, %v3130, 0
    %3140 = vmatpush.bf16.msra.mxu0 0
    %3141 = vmatpush.bf16.msra.mxu0 0
    %3142 = vmatpush.bf16.msra.mxu0 0
    %3143 = vmatpush.bf16.msra.mxu0 0
    %3144 = vmatpush.bf16.msra.mxu0 0
    %3145 = vmatpush.bf16.msra.mxu0 0
    %3146 = vmatpush.bf16.msra.mxu0 0
    %3147 = vmatpush.bf16.msra.mxu0 %v3135
    %3148 = vmatmul.bf16.gmra.mxu0 %v3138
    %v3149 = vpop.f32.mrf.mxu0
    %v3150 = vadd.f32 0.0, %v3149
    %v3151 = vpop.f32.mrf.mxu0
    %3152 = vdwg.mxu0
    %v3153 = vadd.f32 %v3058, %v3150
    %3154 = vrot.lane.b32.xlu0 %v2681, 48
    %v3155 = vpop.permute.xlu0 %3154
    %3156 = vrot.lane.b32.xlu0 %v2682, 48
    %v3157 = vpop.permute.xlu0 %3156
    %v3159 = vsel %vm1309, %v3155, 0
    %v3162 = vsel %vm1309, %v3157, 0
    %3164 = vmatpush.bf16.xpose.msra.mxu0 0
    %3165 = vmatpush.bf16.xpose.msra.mxu0 0
    %3166 = vmatpush.bf16.xpose.msra.mxu0 0
    %3167 = vmatpush.bf16.xpose.msra.mxu0 0
    %3168 = vmatpush.bf16.xpose.msra.mxu0 0
    %3169 = vmatpush.bf16.xpose.msra.mxu0 0
    %3170 = vmatpush.bf16.xpose.msra.mxu0 0
    %3171 = vmatpush.bf16.xpose.msra.mxu0 %v3162
    %3172 = vmatmul.bf16.gmra.mxu0 %v3159
    %v3173 = vpop.f32.mrf.mxu0
    %v3174 = vadd.f32 0.0, %v3173
    %v3175 = vpop.f32.mrf.mxu0
    %3176 = vdwg.mxu0
    %v3177 = vmul.f32 %v3174, 0.25
    %v3178 = vsel %vm1082, %v3177, -1e+30
    %v3179 = vsel %vm1331, %v3178, -inf
    %3180 = vmax.xlane.f32.xlu0 %v3179
    %v3181 = vpop.xlane.xlu0 %3180
    %v3182 = vsub.f32 %v3178, %v3181
    %v3183 = vmul.f32 %v3182, 1.442695
    %v3184 = vpow.pop %v3183
    %v3185 = vsel %vm1331, %v3184, 0.0
    %3186 = vadd.xlane.f32.xlu0 %v3185
    %v3187 = vpop.xlane.xlu0 %3186
    %v3188 = vrcp.pop %v3187
    %v3189 = vmul.f32 %v3187, %v3188
    %v3190 = vsub.f32 1.0, %v3189
    %v3191 = vmul.f32 %v3188, %v3190
    %v3192 = vadd.f32 %v3188, %v3191
    %vm3193 = vweird.f32 %v3187
    %vm3194 = vweird.f32 %v3188
    %vm3195 = vmor %vm3193, %vm3194
    %v3196 = vsel %vm3195, %v3188, %v3192
    %v3197 = vand.u32 2147483647, %v3187
    %vm3198 = vcmp.eq.f32.partialorder %v3197, 8.507059e+37
    %v3199 = vand.u32 %v3187, 2147483648
    %v3200 = vor.u32 1.1754944e-38, %v3199
    %v3201 = vsel %vm3198, %v3200, %v3196
    %v3202 = vmul.f32 %v3184, %v3201
    %v3203 = vpack.c.bf16 %v3202, %v3202
    %3204 = vrot.lane.b32.xlu0 %v2729, 48
    %v3205 = vpop.permute.xlu0 %3204
    %v3207 = vsel %vm1358, %v3203, 0
    %v3210 = vsel %vm1052, %v3205, 0
    %3212 = vmatpush.bf16.msra.mxu0 0
    %3213 = vmatpush.bf16.msra.mxu0 0
    %3214 = vmatpush.bf16.msra.mxu0 0
    %3215 = vmatpush.bf16.msra.mxu0 0
    %3216 = vmatpush.bf16.msra.mxu0 0
    %3217 = vmatpush.bf16.msra.mxu0 0
    %3218 = vmatpush.bf16.msra.mxu0 0
    %3219 = vmatpush.bf16.msra.mxu0 %v3210
    %3220 = vmatmul.bf16.gmra.mxu0 %v3207
    %v3221 = vpop.f32.mrf.mxu0
    %v3222 = vadd.f32 0.0, %v3221
    %v3223 = vpop.f32.mrf.mxu0
    %3224 = vdwg.mxu0
    %v3225 = vpack.c.bf16 %v3222, %v3222
    %v3228 = vunpack.c.l.b16 %v2498
    %v3229 = vunpack.c.l.b16 %v2499
    %v3230 = vpack.c.b16 %v3229, %v3228
    %v3233 = vsel %vm1309, %v3225, 0
    %3235 = vmatpush.bf16.msra.mxu0 0
    %3236 = vmatpush.bf16.msra.mxu0 0
    %3237 = vmatpush.bf16.msra.mxu0 0
    %3238 = vmatpush.bf16.msra.mxu0 0
    %3239 = vmatpush.bf16.msra.mxu0 0
    %3240 = vmatpush.bf16.msra.mxu0 0
    %3241 = vmatpush.bf16.msra.mxu0 0
    %3242 = vmatpush.bf16.msra.mxu0 %v3230
    %3243 = vmatmul.bf16.gmra.mxu0 %v3233
    %v3244 = vpop.f32.mrf.mxu0
    %v3245 = vadd.f32 0.0, %v3244
    %v3246 = vpop.f32.mrf.mxu0
    %3247 = vdwg.mxu0
    %v3248 = vadd.f32 %v3153, %v3245
    %3249 = vrot.lane.b32.xlu0 %v2681, 32
    %v3250 = vpop.permute.xlu0 %3249
    %3251 = vrot.lane.b32.xlu0 %v2682, 32
    %v3252 = vpop.permute.xlu0 %3251
    %v3254 = vsel %vm1309, %v3250, 0
    %v3257 = vsel %vm1309, %v3252, 0
    %3259 = vmatpush.bf16.xpose.msra.mxu0 0
    %3260 = vmatpush.bf16.xpose.msra.mxu0 0
    %3261 = vmatpush.bf16.xpose.msra.mxu0 0
    %3262 = vmatpush.bf16.xpose.msra.mxu0 0
    %3263 = vmatpush.bf16.xpose.msra.mxu0 0
    %3264 = vmatpush.bf16.xpose.msra.mxu0 0
    %3265 = vmatpush.bf16.xpose.msra.mxu0 0
    %3266 = vmatpush.bf16.xpose.msra.mxu0 %v3257
    %3267 = vmatmul.bf16.gmra.mxu0 %v3254
    %v3268 = vpop.f32.mrf.mxu0
    %v3269 = vadd.f32 0.0, %v3268
    %v3270 = vpop.f32.mrf.mxu0
    %3271 = vdwg.mxu0
    %v3272 = vmul.f32 %v3269, 0.25
    %v3273 = vsel %vm1082, %v3272, -1e+30
    %v3274 = vsel %vm1331, %v3273, -inf
    %3275 = vmax.xlane.f32.xlu0 %v3274
    %v3276 = vpop.xlane.xlu0 %3275
    %v3277 = vsub.f32 %v3273, %v3276
    %v3278 = vmul.f32 %v3277, 1.442695
    %v3279 = vpow.pop %v3278
    %v3280 = vsel %vm1331, %v3279, 0.0
    %3281 = vadd.xlane.f32.xlu0 %v3280
    %v3282 = vpop.xlane.xlu0 %3281
    %v3283 = vrcp.pop %v3282
    %v3284 = vmul.f32 %v3282, %v3283
    %v3285 = vsub.f32 1.0, %v3284
    %v3286 = vmul.f32 %v3283, %v3285
    %v3287 = vadd.f32 %v3283, %v3286
    %vm3288 = vweird.f32 %v3282
    %vm3289 = vweird.f32 %v3283
    %vm3290 = vmor %vm3288, %vm3289
    %v3291 = vsel %vm3290, %v3283, %v3287
    %v3292 = vand.u32 2147483647, %v3282
    %vm3293 = vcmp.eq.f32.partialorder %v3292, 8.507059e+37
    %v3294 = vand.u32 %v3282, 2147483648
    %v3295 = vor.u32 1.1754944e-38, %v3294
    %v3296 = vsel %vm3293, %v3295, %v3291
    %v3297 = vmul.f32 %v3279, %v3296
    %v3298 = vpack.c.bf16 %v3297, %v3297
    %3299 = vrot.lane.b32.xlu0 %v2729, 32
    %v3300 = vpop.permute.xlu0 %3299
    %v3302 = vsel %vm1358, %v3298, 0
    %v3305 = vsel %vm1052, %v3300, 0
    %3307 = vmatpush.bf16.msra.mxu0 0
    %3308 = vmatpush.bf16.msra.mxu0 0
    %3309 = vmatpush.bf16.msra.mxu0 0
    %3310 = vmatpush.bf16.msra.mxu0 0
    %3311 = vmatpush.bf16.msra.mxu0 0
    %3312 = vmatpush.bf16.msra.mxu0 0
    %3313 = vmatpush.bf16.msra.mxu0 0
    %3314 = vmatpush.bf16.msra.mxu0 %v3305
    %3315 = vmatmul.bf16.gmra.mxu0 %v3302
    %v3316 = vpop.f32.mrf.mxu0
    %v3317 = vadd.f32 0.0, %v3316
    %v3318 = vpop.f32.mrf.mxu0
    %3319 = vdwg.mxu0
    %v3320 = vpack.c.bf16 %v3317, %v3317
    %v3323 = vunpack.c.l.b16 %v2500
    %v3324 = vunpack.c.l.b16 %v2501
    %v3325 = vpack.c.b16 %v3324, %v3323
    %v3328 = vsel %vm1309, %v3320, 0
    %3330 = vmatpush.bf16.msra.mxu0 0
    %3331 = vmatpush.bf16.msra.mxu0 0
    %3332 = vmatpush.bf16.msra.mxu0 0
    %3333 = vmatpush.bf16.msra.mxu0 0
    %3334 = vmatpush.bf16.msra.mxu0 0
    %3335 = vmatpush.bf16.msra.mxu0 0
    %3336 = vmatpush.bf16.msra.mxu0 0
    %3337 = vmatpush.bf16.msra.mxu0 %v3325
    %3338 = vmatmul.bf16.gmra.mxu0 %v3328
    %v3339 = vpop.f32.mrf.mxu0
    %v3340 = vadd.f32 0.0, %v3339
    %v3341 = vpop.f32.mrf.mxu0
    %3342 = vdwg.mxu0
    %v3343 = vadd.f32 %v3248, %v3340
    %3344 = vrot.lane.b32.xlu0 %v2681, 16
    %v3345 = vpop.permute.xlu0 %3344
    %3346 = vrot.lane.b32.xlu0 %v2682, 16
    %v3347 = vpop.permute.xlu0 %3346
    %v3349 = vsel %vm1309, %v3345, 0
    %v3352 = vsel %vm1309, %v3347, 0
    %3354 = vmatpush.bf16.xpose.msra.mxu0 0
    %3355 = vmatpush.bf16.xpose.msra.mxu0 0
    %3356 = vmatpush.bf16.xpose.msra.mxu0 0
    %3357 = vmatpush.bf16.xpose.msra.mxu0 0
    %3358 = vmatpush.bf16.xpose.msra.mxu0 0
    %3359 = vmatpush.bf16.xpose.msra.mxu0 0
    %3360 = vmatpush.bf16.xpose.msra.mxu0 0
    %3361 = vmatpush.bf16.xpose.msra.mxu0 %v3352
    %3362 = vmatmul.bf16.gmra.mxu0 %v3349
    %v3363 = vpop.f32.mrf.mxu0
    %v3364 = vadd.f32 0.0, %v3363
    %v3365 = vpop.f32.mrf.mxu0
    %3366 = vdwg.mxu0
    %v3367 = vmul.f32 %v3364, 0.25
    %v3368 = vsel %vm1082, %v3367, -1e+30
    %v3369 = vsel %vm1331, %v3368, -inf
    %3370 = vmax.xlane.f32.xlu0 %v3369
    %v3371 = vpop.xlane.xlu0 %3370
    %v3372 = vsub.f32 %v3368, %v3371
    %v3373 = vmul.f32 %v3372, 1.442695
    %v3374 = vpow.pop %v3373
    %v3375 = vsel %vm1331, %v3374, 0.0
    %3376 = vadd.xlane.f32.xlu0 %v3375
    %v3377 = vpop.xlane.xlu0 %3376
    %v3378 = vrcp.pop %v3377
    %v3379 = vmul.f32 %v3377, %v3378
    %v3380 = vsub.f32 1.0, %v3379
    %v3381 = vmul.f32 %v3378, %v3380
    %v3382 = vadd.f32 %v3378, %v3381
    %vm3383 = vweird.f32 %v3377
    %vm3384 = vweird.f32 %v3378
    %vm3385 = vmor %vm3383, %vm3384
    %v3386 = vsel %vm3385, %v3378, %v3382
    %v3387 = vand.u32 2147483647, %v3377
    %vm3388 = vcmp.eq.f32.partialorder %v3387, 8.507059e+37
    %v3389 = vand.u32 %v3377, 2147483648
    %v3390 = vor.u32 1.1754944e-38, %v3389
    %v3391 = vsel %vm3388, %v3390, %v3386
    %v3392 = vmul.f32 %v3374, %v3391
    %v3393 = vpack.c.bf16 %v3392, %v3392
    %3394 = vrot.lane.b32.xlu0 %v2729, 16
    %v3395 = vpop.permute.xlu0 %3394
    %v3397 = vsel %vm1358, %v3393, 0
    %v3400 = vsel %vm1052, %v3395, 0
    %3402 = vmatpush.bf16.msra.mxu0 0
    %3403 = vmatpush.bf16.msra.mxu0 0
    %3404 = vmatpush.bf16.msra.mxu0 0
    %3405 = vmatpush.bf16.msra.mxu0 0
    %3406 = vmatpush.bf16.msra.mxu0 0
    %3407 = vmatpush.bf16.msra.mxu0 0
    %3408 = vmatpush.bf16.msra.mxu0 0
    %3409 = vmatpush.bf16.msra.mxu0 %v3400
    %3410 = vmatmul.bf16.gmra.mxu0 %v3397
    %v3411 = vpop.f32.mrf.mxu0
    %v3412 = vadd.f32 0.0, %v3411
    %v3413 = vpop.f32.mrf.mxu0
    %3414 = vdwg.mxu0
    %v3415 = vpack.c.bf16 %v3412, %v3412
    %v3418 = vunpack.c.l.b16 %v2502
    %v3419 = vunpack.c.l.b16 %v2503
    %v3420 = vpack.c.b16 %v3419, %v3418
    %v3423 = vsel %vm1309, %v3415, 0
    %3425 = vmatpush.bf16.msra.mxu0 0
    %3426 = vmatpush.bf16.msra.mxu0 0
    %3427 = vmatpush.bf16.msra.mxu0 0
    %3428 = vmatpush.bf16.msra.mxu0 0
    %3429 = vmatpush.bf16.msra.mxu0 0
    %3430 = vmatpush.bf16.msra.mxu0 0
    %3431 = vmatpush.bf16.msra.mxu0 0
    %3432 = vmatpush.bf16.msra.mxu0 %v3420
    %3433 = vmatmul.bf16.gmra.mxu0 %v3423
    %v3434 = vpop.f32.mrf.mxu0
    %v3435 = vadd.f32 0.0, %v3434
    %v3436 = vpop.f32.mrf.mxu0
    %3437 = vdwg.mxu0
    %v3438 = vadd.f32 %v3343, %v3435
    %s3439 = scalar_lea.vmem %s12, 1
    %v3440 = vld [vmem:[%s3439] sm:$0x1]
    %v3442 = vperm.slane %v3440, 0
    %v3444 = vadd.f32 %v3438, %v3442
    %v3445 = vadd.f32 %v2453, %v3444
    %s3446 = scalar_lea.vmem %s17, 1
    %v3447 = vld [vmem:[%s3446] sm:$0x1]
    %s3448 = scalar_lea.vmem %s18, 1
    %v3449 = vld [vmem:[%s3448] sm:$0x1]
    %v3450 = vsel %vm2076, %v3445, 0.0
    %3451 = vadd.xlane.f32.xlu0 %v3450
    %v3452 = vpop.xlane.xlu0 %3451
    %v3453 = vmul.f32 %v3452, %v2086
    %v3454 = vsub.f32 %v3445, %v3453
    %v3455 = vmul.f32 %v3454, %v3454
    %v3456 = vsel %vm2076, %v3455, 0.0
    %3457 = vadd.xlane.f32.xlu0 %v3456
    %v3458 = vpop.xlane.xlu0 %3457
    %v3459 = vmul.f32 %v3458, %v2086
    %v3460 = vadd.f32 %v3459, 1e-05
    %v3461 = vrsqrt.pop %v3460
    %v3462 = vmul.f32 %v3461, %v3460
    %v3463 = vmul.f32 %v3462, %v3461
    %v3464 = vmul.f32 0.5, %v3463
    %v3465 = vsub.f32 1.5, %v3464
    %v3466 = vmul.f32 %v3461, %v3465
    %vm3467 = vweird.f32 %v3460
    %vm3468 = vweird.f32 %v3461
    %vm3469 = vmor %vm3467, %vm3468
    %v3470 = vsel %vm3469, %v3461, %v3466
    %v3471 = vmul.f32 %v3454, %v3470
    %v3473 = vperm.slane %v3447, 0
    %v3475 = vmul.f32 %v3471, %v3473
    %v3477 = vperm.slane %v3449, 0
    %v3479 = vadd.f32 %v3475, %v3477
    %s3480 = scalar_lea.vmem %s13, 128
    %v3481 = vld [vmem:[%s3480] sm:$0xff]
    %v3482 = vld [vmem:[%s3480 + $0x8] sm:$0xff]
    %v3483 = vld [vmem:[%s3480 + $0x10] sm:$0xff]
    %v3484 = vld [vmem:[%s3480 + $0x18] sm:$0xff]
    %v3485 = vld [vmem:[%s3480 + $0x20] sm:$0xff]
    %v3486 = vld [vmem:[%s3480 + $0x28] sm:$0xff]
    %v3487 = vld [vmem:[%s3480 + $0x30] sm:$0xff]
    %v3488 = vld [vmem:[%s3480 + $0x38] sm:$0xff]
    %v3489 = vld [vmem:[%s3480 + $0x40] sm:$0xff]
    %v3490 = vld [vmem:[%s3480 + $0x48] sm:$0xff]
    %v3491 = vld [vmem:[%s3480 + $0x50] sm:$0xff]
    %v3492 = vld [vmem:[%s3480 + $0x58] sm:$0xff]
    %v3493 = vld [vmem:[%s3480 + $0x60] sm:$0xff]
    %v3494 = vld [vmem:[%s3480 + $0x68] sm:$0xff]
    %v3495 = vld [vmem:[%s3480 + $0x70] sm:$0xff]
    %v3496 = vld [vmem:[%s3480 + $0x78] sm:$0xff]
    %v3497 = vpack.c.bf16 %v3479, %v3479
    %s3498 = scalar_lea.vmem %s14, 2
    %v3499 = vld [vmem:[%s3498] sm:$0x3]
    %v3501 = vperm.slane %v3499, 0
    %v3502 = vperm.slane %v3499, 1
    %v3521 = vunpack.c.l.b16 %v3481
    %v3522 = vunpack.c.h.b16 %v3481
    %v3523 = vunpack.c.l.b16 %v3482
    %v3524 = vunpack.c.h.b16 %v3482
    %v3525 = vunpack.c.l.b16 %v3483
    %v3526 = vunpack.c.h.b16 %v3483
    %v3527 = vunpack.c.l.b16 %v3484
    %v3528 = vunpack.c.h.b16 %v3484
    %v3529 = vunpack.c.l.b16 %v3485
    %v3530 = vunpack.c.h.b16 %v3485
    %v3531 = vunpack.c.l.b16 %v3486
    %v3532 = vunpack.c.h.b16 %v3486
    %v3533 = vunpack.c.l.b16 %v3487
    %v3534 = vunpack.c.h.b16 %v3487
    %v3535 = vunpack.c.l.b16 %v3488
    %v3536 = vunpack.c.h.b16 %v3488
    %v3537 = vunpack.c.l.b16 %v3489
    %v3538 = vunpack.c.h.b16 %v3489
    %v3539 = vunpack.c.l.b16 %v3490
    %v3540 = vunpack.c.h.b16 %v3490
    %v3541 = vunpack.c.l.b16 %v3491
    %v3542 = vunpack.c.h.b16 %v3491
    %v3543 = vunpack.c.l.b16 %v3492
    %v3544 = vunpack.c.h.b16 %v3492
    %v3545 = vunpack.c.l.b16 %v3493
    %v3546 = vunpack.c.h.b16 %v3493
    %v3547 = vunpack.c.l.b16 %v3494
    %v3548 = vunpack.c.h.b16 %v3494
    %v3549 = vunpack.c.l.b16 %v3495
    %v3550 = vunpack.c.h.b16 %v3495
    %v3551 = vunpack.c.l.b16 %v3496
    %v3552 = vunpack.c.h.b16 %v3496
    %v3553 = vpack.c.b16 %v3523, %v3521
    %v3554 = vpack.c.b16 %v3524, %v3522
    %v3555 = vpack.c.b16 %v3527, %v3525
    %v3556 = vpack.c.b16 %v3528, %v3526
    %v3557 = vpack.c.b16 %v3531, %v3529
    %v3558 = vpack.c.b16 %v3532, %v3530
    %v3559 = vpack.c.b16 %v3535, %v3533
    %v3560 = vpack.c.b16 %v3536, %v3534
    %v3561 = vpack.c.b16 %v3539, %v3537
    %v3562 = vpack.c.b16 %v3540, %v3538
    %v3563 = vpack.c.b16 %v3543, %v3541
    %v3564 = vpack.c.b16 %v3544, %v3542
    %v3565 = vpack.c.b16 %v3547, %v3545
    %v3566 = vpack.c.b16 %v3548, %v3546
    %v3567 = vpack.c.b16 %v3551, %v3549
    %v3568 = vpack.c.b16 %v3552, %v3550
    %3585 = vmatpush.bf16.msra.mxu0 %v3567
    %3586 = vmatpush.bf16.msra.mxu0 %v3565
    %3587 = vmatpush.bf16.msra.mxu0 %v3563
    %3588 = vmatpush.bf16.msra.mxu0 %v3561
    %3589 = vmatpush.bf16.msra.mxu0 %v3559
    %3590 = vmatpush.bf16.msra.mxu0 %v3557
    %3591 = vmatpush.bf16.msra.mxu0 %v3555
    %3592 = vmatpush.bf16.msra.mxu0 %v3553
    %3593 = vmatmul.bf16.gmra.mxu0 %v3497
    %v3594 = vpop.f32.mrf.mxu0
    %v3595 = vadd.f32 %v3501, %v3594
    %v3596 = vpop.f32.mrf.mxu0
    %3597 = vdwg.mxu0
    %3598 = vmatpush.bf16.msra.mxu0 %v3568
    %3599 = vmatpush.bf16.msra.mxu0 %v3566
    %3600 = vmatpush.bf16.msra.mxu0 %v3564
    %3601 = vmatpush.bf16.msra.mxu0 %v3562
    %3602 = vmatpush.bf16.msra.mxu0 %v3560
    %3603 = vmatpush.bf16.msra.mxu0 %v3558
    %3604 = vmatpush.bf16.msra.mxu0 %v3556
    %3605 = vmatpush.bf16.msra.mxu0 %v3554
    %3606 = vmatmul.bf16.gmra.mxu0 %v3497
    %v3607 = vpop.f32.mrf.mxu0
    %v3608 = vadd.f32 %v3502, %v3607
    %v3609 = vpop.f32.mrf.mxu0
    %3610 = vdwg.mxu0
    %v3611 = vmul.f32 %v3595, 0.5
    %v3612 = vmul.f32 %v3608, 0.5
    %v3613 = vmul.f32 %v3595, %v3595
    %v3614 = vmul.f32 %v3608, %v3608
    %v3615 = vmul.f32 %v3613, %v3595
    %v3616 = vmul.f32 %v3614, %v3608
    %v3617 = vmul.f32 %v3615, 0.044715
    %v3618 = vmul.f32 %v3616, 0.044715
    %v3619 = vadd.f32 %v3595, %v3617
    %v3620 = vadd.f32 %v3608, %v3618
    %v3621 = vmul.f32 %v3619, 0.7978846
    %v3622 = vmul.f32 %v3620, 0.7978846
    %v3623 = vtanh.pop %v3621
    %v3624 = vtanh.pop %v3622
    %v3625 = vadd.f32 %v3623, 1.0
    %v3626 = vadd.f32 %v3624, 1.0
    %v3627 = vmul.f32 %v3611, %v3625
    %v3628 = vmul.f32 %v3612, %v3626
    %s3629 = scalar_lea.vmem %s15, 128
    %v3630 = vld [vmem:[%s3629] sm:$0xf]
    %v3631 = vld [vmem:[%s3629 + $0x4] sm:$0xf]
    %v3632 = vld [vmem:[%s3629 + $0x8] sm:$0xf]
    %v3633 = vld [vmem:[%s3629 + $0xc] sm:$0xf]
    %v3634 = vld [vmem:[%s3629 + $0x10] sm:$0xf]
    %v3635 = vld [vmem:[%s3629 + $0x14] sm:$0xf]
    %v3636 = vld [vmem:[%s3629 + $0x18] sm:$0xf]
    %v3637 = vld [vmem:[%s3629 + $0x1c] sm:$0xf]
    %v3638 = vld [vmem:[%s3629 + $0x20] sm:$0xf]
    %v3639 = vld [vmem:[%s3629 + $0x24] sm:$0xf]
    %v3640 = vld [vmem:[%s3629 + $0x28] sm:$0xf]
    %v3641 = vld [vmem:[%s3629 + $0x2c] sm:$0xf]
    %v3642 = vld [vmem:[%s3629 + $0x30] sm:$0xf]
    %v3643 = vld [vmem:[%s3629 + $0x34] sm:$0xf]
    %v3644 = vld [vmem:[%s3629 + $0x38] sm:$0xf]
    %v3645 = vld [vmem:[%s3629 + $0x3c] sm:$0xf]
    %v3646 = vld [vmem:[%s3629 + $0x40] sm:$0xf]
    %v3647 = vld [vmem:[%s3629 + $0x44] sm:$0xf]
    %v3648 = vld [vmem:[%s3629 + $0x48] sm:$0xf]
    %v3649 = vld [vmem:[%s3629 + $0x4c] sm:$0xf]
    %v3650 = vld [vmem:[%s3629 + $0x50] sm:$0xf]
    %v3651 = vld [vmem:[%s3629 + $0x54] sm:$0xf]
    %v3652 = vld [vmem:[%s3629 + $0x58] sm:$0xf]
    %v3653 = vld [vmem:[%s3629 + $0x5c] sm:$0xf]
    %v3654 = vld [vmem:[%s3629 + $0x60] sm:$0xf]
    %v3655 = vld [vmem:[%s3629 + $0x64] sm:$0xf]
    %v3656 = vld [vmem:[%s3629 + $0x68] sm:$0xf]
    %v3657 = vld [vmem:[%s3629 + $0x6c] sm:$0xf]
    %v3658 = vld [vmem:[%s3629 + $0x70] sm:$0xf]
    %v3659 = vld [vmem:[%s3629 + $0x74] sm:$0xf]
    %v3660 = vld [vmem:[%s3629 + $0x78] sm:$0xf]
    %v3661 = vld [vmem:[%s3629 + $0x7c] sm:$0xf]
    %v3662 = vpack.c.bf16 %v3627, %v3627
    %v3663 = vpack.c.bf16 %v3628, %v3628
    %s3664 = scalar_lea.vmem %s16, 1
    %v3665 = vld [vmem:[%s3664] sm:$0x1]
    %v3667 = vperm.slane %v3665, 0
    %v3701 = vunpack.c.l.b16 %v3630
    %v3702 = vunpack.c.l.b16 %v3631
    %v3703 = vunpack.c.l.b16 %v3632
    %v3704 = vunpack.c.l.b16 %v3633
    %v3705 = vunpack.c.l.b16 %v3634
    %v3706 = vunpack.c.l.b16 %v3635
    %v3707 = vunpack.c.l.b16 %v3636
    %v3708 = vunpack.c.l.b16 %v3637
    %v3709 = vunpack.c.l.b16 %v3638
    %v3710 = vunpack.c.l.b16 %v3639
    %v3711 = vunpack.c.l.b16 %v3640
    %v3712 = vunpack.c.l.b16 %v3641
    %v3713 = vunpack.c.l.b16 %v3642
    %v3714 = vunpack.c.l.b16 %v3643
    %v3715 = vunpack.c.l.b16 %v3644
    %v3716 = vunpack.c.l.b16 %v3645
    %v3717 = vunpack.c.l.b16 %v3646
    %v3718 = vunpack.c.l.b16 %v3647
    %v3719 = vunpack.c.l.b16 %v3648
    %v3720 = vunpack.c.l.b16 %v3649
    %v3721 = vunpack.c.l.b16 %v3650
    %v3722 = vunpack.c.l.b16 %v3651
    %v3723 = vunpack.c.l.b16 %v3652
    %v3724 = vunpack.c.l.b16 %v3653
    %v3725 = vunpack.c.l.b16 %v3654
    %v3726 = vunpack.c.l.b16 %v3655
    %v3727 = vunpack.c.l.b16 %v3656
    %v3728 = vunpack.c.l.b16 %v3657
    %v3729 = vunpack.c.l.b16 %v3658
    %v3730 = vunpack.c.l.b16 %v3659
    %v3731 = vunpack.c.l.b16 %v3660
    %v3732 = vunpack.c.l.b16 %v3661
    %v3733 = vpack.c.b16 %v3702, %v3701
    %v3734 = vpack.c.b16 %v3704, %v3703
    %v3735 = vpack.c.b16 %v3706, %v3705
    %v3736 = vpack.c.b16 %v3708, %v3707
    %v3737 = vpack.c.b16 %v3710, %v3709
    %v3738 = vpack.c.b16 %v3712, %v3711
    %v3739 = vpack.c.b16 %v3714, %v3713
    %v3740 = vpack.c.b16 %v3716, %v3715
    %v3741 = vpack.c.b16 %v3718, %v3717
    %v3742 = vpack.c.b16 %v3720, %v3719
    %v3743 = vpack.c.b16 %v3722, %v3721
    %v3744 = vpack.c.b16 %v3724, %v3723
    %v3745 = vpack.c.b16 %v3726, %v3725
    %v3746 = vpack.c.b16 %v3728, %v3727
    %v3747 = vpack.c.b16 %v3730, %v3729
    %v3748 = vpack.c.b16 %v3732, %v3731
    %3765 = vmatpush.bf16.msra.mxu0 %v3740
    %3766 = vmatpush.bf16.msra.mxu0 %v3739
    %3767 = vmatpush.bf16.msra.mxu0 %v3738
    %3768 = vmatpush.bf16.msra.mxu0 %v3737
    %3769 = vmatpush.bf16.msra.mxu0 %v3736
    %3770 = vmatpush.bf16.msra.mxu0 %v3735
    %3771 = vmatpush.bf16.msra.mxu0 %v3734
    %3772 = vmatpush.bf16.msra.mxu0 %v3733
    %3773 = vmatmul.bf16.gmra.mxu0 %v3662
    %v3774 = vpop.f32.mrf.mxu0
    %v3775 = vadd.f32 %v3667, %v3774
    %v3776 = vpop.f32.mrf.mxu0
    %3777 = vdwg.mxu0
    %3778 = vmatpush.bf16.msra.mxu0 %v3748
    %3779 = vmatpush.bf16.msra.mxu0 %v3747
    %3780 = vmatpush.bf16.msra.mxu0 %v3746
    %3781 = vmatpush.bf16.msra.mxu0 %v3745
    %3782 = vmatpush.bf16.msra.mxu0 %v3744
    %3783 = vmatpush.bf16.msra.mxu0 %v3743
    %3784 = vmatpush.bf16.msra.mxu0 %v3742
    %3785 = vmatpush.bf16.msra.mxu0 %v3741
    %3786 = vmatmul.bf16.gmra.mxu0 %v3663
    %v3787 = vpop.f32.mrf.mxu0
    %v3788 = vadd.f32 %v3775, %v3787
    %v3789 = vpop.f32.mrf.mxu0
    %3790 = vdwg.mxu0
    %v3791 = vadd.f32 %v3479, %v3788
    %s3792 = scalar_lea.vmem %s19, 1
    %v3793 = vld [vmem:[%s3792] sm:$0x1]
    %s3794 = scalar_lea.vmem %s20, 1
    %v3795 = vld [vmem:[%s3794] sm:$0x1]
    %v3796 = vsel %vm2076, %v3791, 0.0
    %3797 = vadd.xlane.f32.xlu0 %v3796
    %v3798 = vpop.xlane.xlu0 %3797
    %v3799 = vmul.f32 %v3798, %v2086
    %v3800 = vsub.f32 %v3791, %v3799
    %v3801 = vmul.f32 %v3800, %v3800
    %v3802 = vsel %vm2076, %v3801, 0.0
    %3803 = vadd.xlane.f32.xlu0 %v3802
    %v3804 = vpop.xlane.xlu0 %3803
    %v3805 = vmul.f32 %v3804, %v2086
    %v3806 = vadd.f32 %v3805, 1e-05
    %v3807 = vrsqrt.pop %v3806
    %v3808 = vmul.f32 %v3807, %v3806
    %v3809 = vmul.f32 %v3808, %v3807
    %v3810 = vmul.f32 0.5, %v3809
    %v3811 = vsub.f32 1.5, %v3810
    %v3812 = vmul.f32 %v3807, %v3811
    %vm3813 = vweird.f32 %v3806
    %vm3814 = vweird.f32 %v3807
    %vm3815 = vmor %vm3813, %vm3814
    %v3816 = vsel %vm3815, %v3807, %v3812
    %v3817 = vmul.f32 %v3800, %v3816
    %v3819 = vperm.slane %v3793, 0
    %v3821 = vmul.f32 %v3817, %v3819
    %v3823 = vperm.slane %v3795, 0
    %v3825 = vadd.f32 %v3821, %v3823
    %v3826 = vld [vmem:[#allocation16] sm:$0xf]
    %v3827 = vld [vmem:[#allocation16 + $0x4] sm:$0xf]
    %v3828 = vld [vmem:[#allocation16 + $0x8] sm:$0xf]
    %v3829 = vld [vmem:[#allocation16 + $0xc] sm:$0xf]
    %v3830 = vld [vmem:[#allocation16 + $0x10] sm:$0xf]
    %v3831 = vld [vmem:[#allocation16 + $0x14] sm:$0xf]
    %v3832 = vld [vmem:[#allocation16 + $0x18] sm:$0xf]
    %v3833 = vld [vmem:[#allocation16 + $0x1c] sm:$0xf]
    %v3834 = vld [vmem:[#allocation16 + $0x20] sm:$0xf]
    %v3835 = vld [vmem:[#allocation16 + $0x24] sm:$0xf]
    %v3836 = vld [vmem:[#allocation16 + $0x28] sm:$0xf]
    %v3837 = vld [vmem:[#allocation16 + $0x2c] sm:$0xf]
    %v3838 = vld [vmem:[#allocation16 + $0x30] sm:$0xf]
    %v3839 = vld [vmem:[#allocation16 + $0x34] sm:$0xf]
    %v3840 = vld [vmem:[#allocation16 + $0x38] sm:$0xf]
    %v3841 = vld [vmem:[#allocation16 + $0x3c] sm:$0xf]
    %v3842 = vpack.c.bf16 %v3825, %v3825
    %v3843 = vld [vmem:[%s22] sm:$0x1]
    %v3845 = vperm.slane %v3843, 0
    %v3863 = vunpack.c.l.b16 %v3826
    %v3864 = vunpack.c.l.b16 %v3827
    %v3865 = vunpack.c.l.b16 %v3828
    %v3866 = vunpack.c.l.b16 %v3829
    %v3867 = vunpack.c.l.b16 %v3830
    %v3868 = vunpack.c.l.b16 %v3831
    %v3869 = vunpack.c.l.b16 %v3832
    %v3870 = vunpack.c.l.b16 %v3833
    %v3871 = vunpack.c.l.b16 %v3834
    %v3872 = vunpack.c.l.b16 %v3835
    %v3873 = vunpack.c.l.b16 %v3836
    %v3874 = vunpack.c.l.b16 %v3837
    %v3875 = vunpack.c.l.b16 %v3838
    %v3876 = vunpack.c.l.b16 %v3839
    %v3877 = vunpack.c.l.b16 %v3840
    %v3878 = vunpack.c.l.b16 %v3841
    %v3879 = vpack.c.b16 %v3864, %v3863
    %v3880 = vpack.c.b16 %v3866, %v3865
    %v3881 = vpack.c.b16 %v3868, %v3867
    %v3882 = vpack.c.b16 %v3870, %v3869
    %v3883 = vpack.c.b16 %v3872, %v3871
    %v3884 = vpack.c.b16 %v3874, %v3873
    %v3885 = vpack.c.b16 %v3876, %v3875
    %v3886 = vpack.c.b16 %v3878, %v3877
    %3895 = vmatpush.bf16.msra.mxu0 %v3886
    %3896 = vmatpush.bf16.msra.mxu0 %v3885
    %3897 = vmatpush.bf16.msra.mxu0 %v3884
    %3898 = vmatpush.bf16.msra.mxu0 %v3883
    %3899 = vmatpush.bf16.msra.mxu0 %v3882
    %3900 = vmatpush.bf16.msra.mxu0 %v3881
    %3901 = vmatpush.bf16.msra.mxu0 %v3880
    %3902 = vmatpush.bf16.msra.mxu0 %v3879
    %3903 = vmatmul.bf16.gmra.mxu0 %v3842
    %v3904 = vpop.f32.mrf.mxu0
    %v3905 = vadd.f32 %v3845, %v3904
    %v3906 = vpop.f32.mrf.mxu0
    %3907 = vdwg.mxu0
    %3908 = vst [vmem:[#allocation17] sm:$0x3] %v3905
    // Predicated region
    $region130: #{meta_transformer_forward.1} parent=1 // pred_check
      _
    $region131: #{meta_transformer_forward.1} parent=1 // pred_check_branch
      %3910 = sbr.rel (0) target = $region133
    $region132: #{meta_transformer_forward.1} parent=1 // pred_region
      %3912 = vsyncadd [#allocation4], 0
      %s3914 = sshll.u32 [#allocation17], 4
      %s3915 = int_to_ptr.vmem [resolvable:$true] %s3914
      %s3916 = sshll.u32 %s23, 4
      %s3917 = int_to_ptr.hbm [resolvable:$true] %s3916
      %3919 = dma.vmem_to_hbm [thread:$0]  %s3915, 32, %s3917, [#allocation4]
    $region133: #{meta_transformer_forward.1} parent=1 // pred_fallthru
      _
    // Predicated region
    $region134: #{meta_transformer_forward.1} parent=1 // pred_check
      _
    $region135: #{meta_transformer_forward.1} parent=1 // pred_check_branch
      %3921 = sbr.rel (0) target = $region137
    $region136: #{meta_transformer_forward.1} parent=1 // pred_region
      %3923 = dma.done [#allocation4], 32
    $region137: #{meta_transformer_forward.1} parent=1 // pred_fallthru
      _
    %3924 = vsyncpa [#allocation3], 1
    %3925 = vsyncpa [#allocation6], 1
    %3926 = vsyncpa [#allocation9], 1
    %3927 = vsyncpa [#allocation12], 1
    %3928 = vsyncpa [#allocation15], 1
    %3929 = vsyncpa [#allocation4], 1

</llo_original>
